<compile_context>
chip_gen: v7x
topology: tpu7x:2x2x1
jax: 0.10.0
libtpu: 0.0.40
codegen_flags: <defaults>
</compile_context>

<pallas_src>
import functools

import jax
import jax.numpy as jnp
from jax.experimental import pallas as pl
from jax.experimental.pallas import tpu as pltpu

# ------------------------- model config (small, synthetic) -------------------------
VOCAB = 128
MAX_POS = 32
TYPE_VOCAB = 2
HIDDEN = 32
NUM_LAYERS = 2
NUM_HEADS = 2
HEAD_DIM = HIDDEN // NUM_HEADS
INTERMEDIATE = 64
LN_EPS = 1e-12

_VMEM = pl.BlockSpec(memory_space=pltpu.MemorySpace.VMEM)


# ------------------------------- kernel helpers -------------------------------
def _layernorm(x, gamma, beta):
    """LayerNorm over the last axis, f32 math, eps=1e-12."""
    mean = jnp.mean(x, axis=-1, keepdims=True)
    xc = x - mean
    var = jnp.mean(xc * xc, axis=-1, keepdims=True)
    return xc * jax.lax.rsqrt(var + LN_EPS) * gamma + beta


# ------------------------------- fused Pallas kernel -------------------------------
def _bert_fused_kernel(word_ref, pos_ref, type_ref, mask_ref, eg_ref, eb_ref,
                       qkv_w_ref, qkv_b_ref, o_w_ref, o_b_ref,
                       ln1_g_ref, ln1_b_ref, i_w_ref, i_b_ref,
                       f_w_ref, f_b_ref, ln2_g_ref, ln2_b_ref,
                       pool_w_ref, pool_b_ref, fc1_w_ref, fc1_b_ref,
                       fc2_w_ref, fc2_b_ref, out_ref,
                       *, num_layers, num_heads, head_dim, scale):
    """Whole BERT-sentiment forward (post-gather) for the full batch.

    word_ref: (B, S, H) gathered word embeddings
    pos_ref:  (1, S, H), type_ref: (1, 1, H)
    mask_ref: (B, 1, S) additive attention mask (0 / -10000)
    qkv_w_ref etc.: stacked per-layer weights, leading axis = layer
    out_ref:  (B, 1) logits
    """
    B, S, _ = word_ref.shape
    H = num_heads * head_dim

    # ---- embedding sum + LayerNorm ----
    x3 = _layernorm(word_ref[...] + pos_ref[...] + type_ref[...],
                    eg_ref[...], eb_ref[...])                      # (B, S, H)
    add_mask = mask_ref[...]                                       # (B, 1, S)

    # Keep activations as a single lane/sublane-dense (B*S, H) slab for all matmuls.
    x = x3.reshape(B * S, H)

    for l in range(num_layers):                                    # static unroll
        # ---- fused QKV projection: one (B*S, 3H) matmul ----
        qkv = jnp.dot(x, qkv_w_ref[l],
                      preferred_element_type=jnp.float32) + qkv_b_ref[l]
        qkv3 = qkv.reshape(B, S, 3 * H)

        # ---- batched per-head attention (static unroll over heads only) ----
        ctx_heads = []
        for h in range(num_heads):
            lo = h * head_dim
            qh = qkv3[:, :, lo:lo + head_dim]                      # (B, S, d)
            kh = qkv3[:, :, H + lo:H + lo + head_dim]
            vh = qkv3[:, :, 2 * H + lo:2 * H + lo + head_dim]
            s = jnp.einsum('bqd,bkd->bqk', qh, kh,
                           preferred_element_type=jnp.float32) * scale + add_mask
            s = s - jnp.max(s, axis=-1, keepdims=True)
            p = jnp.exp(s)
            p = p * pl.reciprocal(jnp.sum(p, axis=-1, keepdims=True), approx=True)
            ctx_heads.append(jnp.einsum('bqk,bkd->bqd', p, vh,
                                        preferred_element_type=jnp.float32))
        ctx = jnp.concatenate(ctx_heads, axis=-1).reshape(B * S, H)

        # ---- output projection + residual + LN1 ----
        attn = jnp.dot(ctx, o_w_ref[l],
                       preferred_element_type=jnp.float32) + o_b_ref[l]
        h1 = _layernorm(attn + x, ln1_g_ref[l], ln1_b_ref[l])

        # ---- FFN (GELU) + residual + LN2 ----
        inter = jnp.dot(h1, i_w_ref[l],
                        preferred_element_type=jnp.float32) + i_b_ref[l]
        inter = jax.nn.gelu(inter, approximate=True)
        ffn = jnp.dot(inter, f_w_ref[l],
                      preferred_element_type=jnp.float32) + f_b_ref[l]
        x = _layernorm(ffn + h1, ln2_g_ref[l], ln2_b_ref[l])

    # ---- pooler (tanh on [CLS]) -> dropout(id) -> fc1 -> ReLU -> dropout(id) -> fc2 ----
    cls = x.reshape(B, S, H)[:, 0, :]                              # (B, H)
    pooled = jnp.tanh(jnp.dot(cls, pool_w_ref[...],
                              preferred_element_type=jnp.float32) + pool_b_ref[...])
    hid = jnp.maximum(jnp.dot(pooled, fc1_w_ref[...],
                              preferred_element_type=jnp.float32) + fc1_b_ref[...], 0.0)
    out_ref[...] = jnp.dot(hid, fc2_w_ref[...],
                           preferred_element_type=jnp.float32) + fc2_b_ref[...]


# ------------------------------- parameter init -------------------------------
def init_params(key):
    def nrm(k, shape):
        return jax.random.normal(k, shape, jnp.float32) * 0.02

    ks = iter(jax.random.split(key, 12))
    H, I, L = HIDDEN, INTERMEDIATE, NUM_LAYERS
    return {
        "word_emb": nrm(next(ks), (VOCAB, H)),
        "pos_emb": nrm(next(ks), (MAX_POS, H)),
        "type_emb": nrm(next(ks), (TYPE_VOCAB, H)),
        "emb_ln_g": jnp.ones((1, 1, H), jnp.float32),
        "emb_ln_b": jnp.zeros((1, 1, H), jnp.float32),
        # Per-encoder-layer weights stacked on a leading layer axis; Q/K/V are
        # concatenated along the output dim: y = x @ qkv_w + qkv_b -> [q | k | v].
        "qkv_w": nrm(next(ks), (L, H, 3 * H)),
        "qkv_b": jnp.zeros((L, 1, 3 * H), jnp.float32),
        "o_w": nrm(next(ks), (L, H, H)),
        "o_b": jnp.zeros((L, 1, H), jnp.float32),
        "ln1_g": jnp.ones((L, 1, H), jnp.float32),
        "ln1_b": jnp.zeros((L, 1, H), jnp.float32),
        "i_w": nrm(next(ks), (L, H, I)),
        "i_b": jnp.zeros((L, 1, I), jnp.float32),
        "f_w": nrm(next(ks), (L, I, H)),
        "f_b": jnp.zeros((L, 1, H), jnp.float32),
        "ln2_g": jnp.ones((L, 1, H), jnp.float32),
        "ln2_b": jnp.zeros((L, 1, H), jnp.float32),
        "pooler_w": nrm(next(ks), (H, H)),
        "pooler_b": jnp.zeros((1, H), jnp.float32),
        "fc1_w": nrm(next(ks), (H, H)),
        "fc1_b": jnp.zeros((1, H), jnp.float32),
        "fc2_w": nrm(next(ks), (H, 1)),
        "fc2_b": jnp.zeros((1, 1), jnp.float32),
    }


# ------------------------------- forward pass -------------------------------
@jax.jit
def bert_sentiment_forward(params, input_ids, attention_mask):
    B, S = input_ids.shape
    H = HIDDEN

    # Embedding lookups (data-dependent row gathers) stay in XLA glue; everything
    # else runs inside one fused Pallas kernel.
    word = params["word_emb"][input_ids]                           # (B, S, H)
    pos = params["pos_emb"][:S][None]                              # (1, S, H)
    # TODO(synk): token_type_ids assumed all-zero (segment 0), as in the reference call.
    typ = params["type_emb"][0][None, None]                        # (1, 1, H)
    add_mask = (1.0 - attention_mask.astype(jnp.float32))[:, None, :] * -10000.0  # (B,1,S)

    kernel = functools.partial(
        _bert_fused_kernel, num_layers=NUM_LAYERS, num_heads=NUM_HEADS,
        head_dim=HEAD_DIM, scale=1.0 / (HEAD_DIM ** 0.5))

    args = (word, pos, typ, add_mask,
            params["emb_ln_g"], params["emb_ln_b"],
            params["qkv_w"], params["qkv_b"], params["o_w"], params["o_b"],
            params["ln1_g"], params["ln1_b"], params["i_w"], params["i_b"],
            params["f_w"], params["f_b"], params["ln2_g"], params["ln2_b"],
            params["pooler_w"], params["pooler_b"],
            params["fc1_w"], params["fc1_b"],
            params["fc2_w"], params["fc2_b"])

    return pl.pallas_call(
        kernel,
        out_shape=jax.ShapeDtypeStruct((B, 1), jnp.float32),
        in_specs=[_VMEM] * len(args),
        out_specs=_VMEM,
    )(*args)


# ------------------------------- pure-JAX reference -------------------------------
def _reference_forward(params, input_ids, attention_mask):
    """Non-Pallas reference with identical math (f32, HIGHEST matmul precision)."""
    B, S = input_ids.shape
    H, hd, nh = HIDDEN, HEAD_DIM, NUM_HEADS
    hi = jax.lax.Precision.HIGHEST

    def ln(v, g, b):
        m = jnp.mean(v, -1, keepdims=True)
        c = v - m
        return c * jax.lax.rsqrt(jnp.mean(c * c, -1, keepdims=True) + LN_EPS) * g + b

    x = (params["word_emb"][input_ids] + params["pos_emb"][:S][None]
         + params["type_emb"][0][None, None])
    x = ln(x, params["emb_ln_g"], params["emb_ln_b"])
    mask = (1.0 - attention_mask.astype(jnp.float32))[:, None, None, :] * -10000.0

    for l in range(NUM_LAYERS):
        qkv = jnp.einsum('bsh,hk->bsk', x, params["qkv_w"][l], precision=hi) + params["qkv_b"][l]
        q, k, v = jnp.split(qkv, 3, axis=-1)
        sh = lambda t: t.reshape(B, S, nh, hd).transpose(0, 2, 1, 3)
        s = jnp.einsum('bhqd,bhkd->bhqk', sh(q), sh(k), precision=hi) / (hd ** 0.5) + mask
        p = jax.nn.softmax(s, axis=-1)
        ctx = jnp.einsum('bhqk,bhkd->bhqd', p, sh(v), precision=hi)
        ctx = ctx.transpose(0, 2, 1, 3).reshape(B, S, H)
        attn = jnp.einsum('bsh,hk->bsk', ctx, params["o_w"][l], precision=hi) + params["o_b"][l]
        h1 = ln(attn + x, params["ln1_g"][l], params["ln1_b"][l])
        inter = jax.nn.gelu(
            jnp.einsum('bsh,hk->bsk', h1, params["i_w"][l], precision=hi) + params["i_b"][l],
            approximate=True)
        ffn = jnp.einsum('bsh,hk->bsk', inter, params["f_w"][l], precision=hi) + params["f_b"][l]
        x = ln(ffn + h1, params["ln2_g"][l], params["ln2_b"][l])

    cls = x[:, 0, :]
    pooled = jnp.tanh(jnp.dot(cls, params["pooler_w"], precision=hi) + params["pooler_b"])
    h = jnp.maximum(jnp.dot(pooled, params["fc1_w"], precision=hi) + params["fc1_b"], 0.0)
    return jnp.dot(h, params["fc2_w"], precision=hi) + params["fc2_b"]


if __name__ == "__main__":
    key = jax.random.PRNGKey(0)
    pkey, ikey = jax.random.split(key)
    params = init_params(pkey)

    B, S = 2, 8
    input_ids = jax.random.randint(ikey, (B, S), 0, VOCAB, dtype=jnp.int32)
    attention_mask = jnp.ones((B, S), dtype=jnp.int32).at[1, 6:].set(0)  # pad tail of seq 1

    out = jax.block_until_ready(bert_sentiment_forward(params, input_ids, attention_mask))
    assert out.shape == (B, 1) and out.dtype == jnp.float32
    assert bool(jnp.all(jnp.isfinite(out)))

    ref = _reference_forward(params, input_ids, attention_mask)
    assert bool(jnp.allclose(out, ref, atol=2e-3, rtol=2e-2)), (out, ref)

    print("KERNEL_OK")
</pallas_src>

<mosaic_0001>
module attributes {stable_mosaic.version = 11 : i64} {
  func.func @_bert_fused_kernel(%arg0: memref<2x8x32xf32, #tpu.memory_space<vmem>>, %arg1: memref<1x8x32xf32, #tpu.memory_space<vmem>>, %arg2: memref<1x1x32xf32, #tpu.memory_space<vmem>>, %arg3: memref<2x1x8xf32, #tpu.memory_space<vmem>>, %arg4: memref<1x1x32xf32, #tpu.memory_space<vmem>>, %arg5: memref<1x1x32xf32, #tpu.memory_space<vmem>>, %arg6: memref<2x32x96xf32, #tpu.memory_space<vmem>>, %arg7: memref<2x1x96xf32, #tpu.memory_space<vmem>>, %arg8: memref<2x32x32xf32, #tpu.memory_space<vmem>>, %arg9: memref<2x1x32xf32, #tpu.memory_space<vmem>>, %arg10: memref<2x1x32xf32, #tpu.memory_space<vmem>>, %arg11: memref<2x1x32xf32, #tpu.memory_space<vmem>>, %arg12: memref<2x32x64xf32, #tpu.memory_space<vmem>>, %arg13: memref<2x1x64xf32, #tpu.memory_space<vmem>>, %arg14: memref<2x64x32xf32, #tpu.memory_space<vmem>>, %arg15: memref<2x1x32xf32, #tpu.memory_space<vmem>>, %arg16: memref<2x1x32xf32, #tpu.memory_space<vmem>>, %arg17: memref<2x1x32xf32, #tpu.memory_space<vmem>>, %arg18: memref<32x32xf32, #tpu.memory_space<vmem>>, %arg19: memref<1x32xf32, #tpu.memory_space<vmem>>, %arg20: memref<32x32xf32, #tpu.memory_space<vmem>>, %arg21: memref<1x32xf32, #tpu.memory_space<vmem>>, %arg22: memref<32x1xf32, #tpu.memory_space<vmem>>, %arg23: memref<1x1xf32, #tpu.memory_space<vmem>>, %arg24: memref<2x1xf32, #tpu.memory_space<vmem>>) attributes {dimension_semantics = [], scalar_prefetch = 0 : i64, scratch_operands = 0 : i64, tpu.core_type = #tpu.core_type<tc>} {
    %c0 = arith.constant 0 : index
    %c0_0 = arith.constant 0 : index
    %c0_1 = arith.constant 0 : index
    %0 = vector.load %arg0[%c0, %c0_0, %c0_1] : memref<2x8x32xf32, #tpu.memory_space<vmem>>, vector<2x8x32xf32>
    %c0_2 = arith.constant 0 : index
    %c0_3 = arith.constant 0 : index
    %c0_4 = arith.constant 0 : index
    %1 = vector.load %arg1[%c0_2, %c0_3, %c0_4] : memref<1x8x32xf32, #tpu.memory_space<vmem>>, vector<1x8x32xf32>
    %2 = vector.broadcast %1 : vector<1x8x32xf32> to vector<2x8x32xf32>
    %3 = arith.addf %0, %2 : vector<2x8x32xf32>
    %c0_5 = arith.constant 0 : index
    %c0_6 = arith.constant 0 : index
    %c0_7 = arith.constant 0 : index
    %4 = vector.load %arg2[%c0_5, %c0_6, %c0_7] : memref<1x1x32xf32, #tpu.memory_space<vmem>>, vector<1x1x32xf32>
    %5 = vector.broadcast %4 : vector<1x1x32xf32> to vector<2x8x32xf32>
    %6 = arith.addf %3, %5 : vector<2x8x32xf32>
    %c0_8 = arith.constant 0 : index
    %c0_9 = arith.constant 0 : index
    %c0_10 = arith.constant 0 : index
    %7 = vector.load %arg4[%c0_8, %c0_9, %c0_10] : memref<1x1x32xf32, #tpu.memory_space<vmem>>, vector<1x1x32xf32>
    %c0_11 = arith.constant 0 : index
    %c0_12 = arith.constant 0 : index
    %c0_13 = arith.constant 0 : index
    %8 = vector.load %arg5[%c0_11, %c0_12, %c0_13] : memref<1x1x32xf32, #tpu.memory_space<vmem>>, vector<1x1x32xf32>
    %cst = arith.constant dense<0.000000e+00> : vector<2x8xf32>
    %9 = vector.multi_reduction <add>, %6, %cst [2] : vector<2x8x32xf32> to vector<2x8xf32>
    %10 = vector.shape_cast %9 : vector<2x8xf32> to vector<2x8x1xf32>
    %cst_14 = arith.constant 3.200000e+01 : f32
    %11 = vector.broadcast %cst_14 : f32 to vector<2x8x1xf32>
    %12 = arith.divf %10, %11 : vector<2x8x1xf32>
    %13 = vector.broadcast %12 : vector<2x8x1xf32> to vector<2x8x32xf32>
    %14 = arith.subf %6, %13 : vector<2x8x32xf32>
    %15 = arith.mulf %14, %14 : vector<2x8x32xf32>
    %cst_15 = arith.constant dense<0.000000e+00> : vector<2x8xf32>
    %16 = vector.multi_reduction <add>, %15, %cst_15 [2] : vector<2x8x32xf32> to vector<2x8xf32>
    %17 = vector.shape_cast %16 : vector<2x8xf32> to vector<2x8x1xf32>
    %cst_16 = arith.constant 3.200000e+01 : f32
    %18 = vector.broadcast %cst_16 : f32 to vector<2x8x1xf32>
    %19 = arith.divf %17, %18 : vector<2x8x1xf32>
    %cst_17 = arith.constant 9.99999996E-13 : f32
    %20 = vector.broadcast %cst_17 : f32 to vector<2x8x1xf32>
    %21 = arith.addf %19, %20 : vector<2x8x1xf32>
    %22 = math.rsqrt %21 : vector<2x8x1xf32>
    %23 = vector.broadcast %22 : vector<2x8x1xf32> to vector<2x8x32xf32>
    %24 = arith.mulf %14, %23 : vector<2x8x32xf32>
    %25 = vector.broadcast %7 : vector<1x1x32xf32> to vector<2x8x32xf32>
    %26 = arith.mulf %24, %25 : vector<2x8x32xf32>
    %27 = vector.broadcast %8 : vector<1x1x32xf32> to vector<2x8x32xf32>
    %28 = arith.addf %26, %27 : vector<2x8x32xf32>
    %c0_18 = arith.constant 0 : index
    %c0_19 = arith.constant 0 : index
    %c0_20 = arith.constant 0 : index
    %29 = vector.load %arg3[%c0_18, %c0_19, %c0_20] : memref<2x1x8xf32, #tpu.memory_space<vmem>>, vector<2x1x8xf32>
    %30 = vector.shape_cast %28 : vector<2x8x32xf32> to vector<16x32xf32>
    %c0_21 = arith.constant 0 : index
    %c0_22 = arith.constant 0 : index
    %c0_23 = arith.constant 0 : index
    %31 = vector.load %arg6[%c0_21, %c0_22, %c0_23] : memref<2x32x96xf32, #tpu.memory_space<vmem>>, vector<1x32x96xf32>
    %32 = vector.shape_cast %31 : vector<1x32x96xf32> to vector<32x96xf32>
    %cst_24 = arith.constant dense<0.000000e+00> : vector<16x96xf32>
    %33 = tpu.matmul %30, %32, %cst_24 {dimension_numbers = #tpu.dot_dimension_numbers<[1], [0], [0], [1], [0, 0, 1, 1], [], []>} : vector<16x32xf32>, vector<32x96xf32>, vector<16x96xf32> -> vector<16x96xf32>
    %c0_25 = arith.constant 0 : index
    %c0_26 = arith.constant 0 : index
    %c0_27 = arith.constant 0 : index
    %34 = vector.load %arg7[%c0_25, %c0_26, %c0_27] : memref<2x1x96xf32, #tpu.memory_space<vmem>>, vector<1x1x96xf32>
    %35 = vector.shape_cast %34 : vector<1x1x96xf32> to vector<1x96xf32>
    %36 = vector.broadcast %35 : vector<1x96xf32> to vector<16x96xf32>
    %37 = arith.addf %33, %36 : vector<16x96xf32>
    %38 = vector.shape_cast %37 : vector<16x96xf32> to vector<2x8x96xf32>
    %39 = vector.extract_strided_slice %38 {offsets = [0, 0, 0], sizes = [2, 8, 16], strides = [1, 1, 1]} : vector<2x8x96xf32> to vector<2x8x16xf32>
    %40 = vector.extract_strided_slice %38 {offsets = [0, 0, 32], sizes = [2, 8, 16], strides = [1, 1, 1]} : vector<2x8x96xf32> to vector<2x8x16xf32>
    %41 = vector.extract_strided_slice %38 {offsets = [0, 0, 64], sizes = [2, 8, 16], strides = [1, 1, 1]} : vector<2x8x96xf32> to vector<2x8x16xf32>
    "tpu.trace_start"() <{level = 10 : i32, message = "bqd,bkd->bqk"}> : () -> ()
    %cst_28 = arith.constant dense<0.000000e+00> : vector<2x8x8xf32>
    %42 = tpu.matmul %39, %40, %cst_28 {dimension_numbers = #tpu.dot_dimension_numbers<[2], [2], [1], [1], [0, 0, 0, 1, 1, 1], [0], [0]>} : vector<2x8x16xf32>, vector<2x8x16xf32>, vector<2x8x8xf32> -> vector<2x8x8xf32>
    "tpu.trace_stop"() : () -> ()
    %cst_29 = arith.constant 2.500000e-01 : f32
    %43 = vector.broadcast %cst_29 : f32 to vector<2x8x8xf32>
    %44 = arith.mulf %42, %43 : vector<2x8x8xf32>
    %45 = vector.broadcast %29 : vector<2x1x8xf32> to vector<2x8x8xf32>
    %46 = arith.addf %44, %45 : vector<2x8x8xf32>
    %cst_30 = arith.constant dense<0xFF800000> : vector<2x8xf32>
    %47 = vector.multi_reduction <maximumf>, %46, %cst_30 [2] : vector<2x8x8xf32> to vector<2x8xf32>
    %48 = vector.shape_cast %47 : vector<2x8xf32> to vector<2x8x1xf32>
    %49 = vector.broadcast %48 : vector<2x8x1xf32> to vector<2x8x8xf32>
    %50 = arith.subf %46, %49 : vector<2x8x8xf32>
    %51 = math.exp %50 : vector<2x8x8xf32>
    %cst_31 = arith.constant dense<0.000000e+00> : vector<2x8xf32>
    %52 = vector.multi_reduction <add>, %51, %cst_31 [2] : vector<2x8x8xf32> to vector<2x8xf32>
    %53 = vector.shape_cast %52 : vector<2x8xf32> to vector<2x8x1xf32>
    %54 = tpu.reciprocal %53 {approx = true} : vector<2x8x1xf32> -> vector<2x8x1xf32>
    %55 = vector.broadcast %54 : vector<2x8x1xf32> to vector<2x8x8xf32>
    %56 = arith.mulf %51, %55 : vector<2x8x8xf32>
    "tpu.trace_start"() <{level = 10 : i32, message = "bqk,bkd->bqd"}> : () -> ()
    %cst_32 = arith.constant dense<0.000000e+00> : vector<2x8x16xf32>
    %57 = tpu.matmul %56, %41, %cst_32 {dimension_numbers = #tpu.dot_dimension_numbers<[2], [1], [1], [2], [0, 0, 0, 1, 1, 2], [0], [0]>} : vector<2x8x8xf32>, vector<2x8x16xf32>, vector<2x8x16xf32> -> vector<2x8x16xf32>
    "tpu.trace_stop"() : () -> ()
    %58 = vector.extract_strided_slice %38 {offsets = [0, 0, 16], sizes = [2, 8, 16], strides = [1, 1, 1]} : vector<2x8x96xf32> to vector<2x8x16xf32>
    %59 = vector.extract_strided_slice %38 {offsets = [0, 0, 48], sizes = [2, 8, 16], strides = [1, 1, 1]} : vector<2x8x96xf32> to vector<2x8x16xf32>
    %60 = vector.extract_strided_slice %38 {offsets = [0, 0, 80], sizes = [2, 8, 16], strides = [1, 1, 1]} : vector<2x8x96xf32> to vector<2x8x16xf32>
    "tpu.trace_start"() <{level = 10 : i32, message = "bqd,bkd->bqk"}> : () -> ()
    %cst_33 = arith.constant dense<0.000000e+00> : vector<2x8x8xf32>
    %61 = tpu.matmul %58, %59, %cst_33 {dimension_numbers = #tpu.dot_dimension_numbers<[2], [2], [1], [1], [0, 0, 0, 1, 1, 1], [0], [0]>} : vector<2x8x16xf32>, vector<2x8x16xf32>, vector<2x8x8xf32> -> vector<2x8x8xf32>
    "tpu.trace_stop"() : () -> ()
    %cst_34 = arith.constant 2.500000e-01 : f32
    %62 = vector.broadcast %cst_34 : f32 to vector<2x8x8xf32>
    %63 = arith.mulf %61, %62 : vector<2x8x8xf32>
    %64 = vector.broadcast %29 : vector<2x1x8xf32> to vector<2x8x8xf32>
    %65 = arith.addf %63, %64 : vector<2x8x8xf32>
    %cst_35 = arith.constant dense<0xFF800000> : vector<2x8xf32>
    %66 = vector.multi_reduction <maximumf>, %65, %cst_35 [2] : vector<2x8x8xf32> to vector<2x8xf32>
    %67 = vector.shape_cast %66 : vector<2x8xf32> to vector<2x8x1xf32>
    %68 = vector.broadcast %67 : vector<2x8x1xf32> to vector<2x8x8xf32>
    %69 = arith.subf %65, %68 : vector<2x8x8xf32>
    %70 = math.exp %69 : vector<2x8x8xf32>
    %cst_36 = arith.constant dense<0.000000e+00> : vector<2x8xf32>
    %71 = vector.multi_reduction <add>, %70, %cst_36 [2] : vector<2x8x8xf32> to vector<2x8xf32>
    %72 = vector.shape_cast %71 : vector<2x8xf32> to vector<2x8x1xf32>
    %73 = tpu.reciprocal %72 {approx = true} : vector<2x8x1xf32> -> vector<2x8x1xf32>
    %74 = vector.broadcast %73 : vector<2x8x1xf32> to vector<2x8x8xf32>
    %75 = arith.mulf %70, %74 : vector<2x8x8xf32>
    "tpu.trace_start"() <{level = 10 : i32, message = "bqk,bkd->bqd"}> : () -> ()
    %cst_37 = arith.constant dense<0.000000e+00> : vector<2x8x16xf32>
    %76 = tpu.matmul %75, %60, %cst_37 {dimension_numbers = #tpu.dot_dimension_numbers<[2], [1], [1], [2], [0, 0, 0, 1, 1, 2], [0], [0]>} : vector<2x8x8xf32>, vector<2x8x16xf32>, vector<2x8x16xf32> -> vector<2x8x16xf32>
    "tpu.trace_stop"() : () -> ()
    %77 = tpu.concatenate %57, %76 in 2 : vector<2x8x16xf32>, vector<2x8x16xf32> -> vector<2x8x32xf32>
    %78 = vector.shape_cast %77 : vector<2x8x32xf32> to vector<16x32xf32>
    %c0_38 = arith.constant 0 : index
    %c0_39 = arith.constant 0 : index
    %c0_40 = arith.constant 0 : index
    %79 = vector.load %arg8[%c0_38, %c0_39, %c0_40] : memref<2x32x32xf32, #tpu.memory_space<vmem>>, vector<1x32x32xf32>
    %80 = vector.shape_cast %79 : vector<1x32x32xf32> to vector<32x32xf32>
    %cst_41 = arith.constant dense<0.000000e+00> : vector<16x32xf32>
    %81 = tpu.matmul %78, %80, %cst_41 {dimension_numbers = #tpu.dot_dimension_numbers<[1], [0], [0], [1], [0, 0, 1, 1], [], []>} : vector<16x32xf32>, vector<32x32xf32>, vector<16x32xf32> -> vector<16x32xf32>
    %c0_42 = arith.constant 0 : index
    %c0_43 = arith.constant 0 : index
    %c0_44 = arith.constant 0 : index
    %82 = vector.load %arg9[%c0_42, %c0_43, %c0_44] : memref<2x1x32xf32, #tpu.memory_space<vmem>>, vector<1x1x32xf32>
    %83 = vector.shape_cast %82 : vector<1x1x32xf32> to vector<1x32xf32>
    %84 = vector.broadcast %83 : vector<1x32xf32> to vector<16x32xf32>
    %85 = arith.addf %81, %84 : vector<16x32xf32>
    %86 = arith.addf %85, %30 : vector<16x32xf32>
    %c0_45 = arith.constant 0 : index
    %c0_46 = arith.constant 0 : index
    %c0_47 = arith.constant 0 : index
    %87 = vector.load %arg10[%c0_45, %c0_46, %c0_47] : memref<2x1x32xf32, #tpu.memory_space<vmem>>, vector<1x1x32xf32>
    %88 = vector.shape_cast %87 : vector<1x1x32xf32> to vector<1x32xf32>
    %c0_48 = arith.constant 0 : index
    %c0_49 = arith.constant 0 : index
    %c0_50 = arith.constant 0 : index
    %89 = vector.load %arg11[%c0_48, %c0_49, %c0_50] : memref<2x1x32xf32, #tpu.memory_space<vmem>>, vector<1x1x32xf32>
    %90 = vector.shape_cast %89 : vector<1x1x32xf32> to vector<1x32xf32>
    %cst_51 = arith.constant dense<0.000000e+00> : vector<16xf32>
    %91 = vector.multi_reduction <add>, %86, %cst_51 [1] : vector<16x32xf32> to vector<16xf32>
    %92 = vector.shape_cast %91 : vector<16xf32> to vector<16x1xf32>
    %cst_52 = arith.constant 3.200000e+01 : f32
    %93 = vector.broadcast %cst_52 : f32 to vector<16x1xf32>
    %94 = arith.divf %92, %93 : vector<16x1xf32>
    %95 = vector.broadcast %94 : vector<16x1xf32> to vector<16x32xf32>
    %96 = arith.subf %86, %95 : vector<16x32xf32>
    %97 = arith.mulf %96, %96 : vector<16x32xf32>
    %cst_53 = arith.constant dense<0.000000e+00> : vector<16xf32>
    %98 = vector.multi_reduction <add>, %97, %cst_53 [1] : vector<16x32xf32> to vector<16xf32>
    %99 = vector.shape_cast %98 : vector<16xf32> to vector<16x1xf32>
    %cst_54 = arith.constant 3.200000e+01 : f32
    %100 = vector.broadcast %cst_54 : f32 to vector<16x1xf32>
    %101 = arith.divf %99, %100 : vector<16x1xf32>
    %cst_55 = arith.constant 9.99999996E-13 : f32
    %102 = vector.broadcast %cst_55 : f32 to vector<16x1xf32>
    %103 = arith.addf %101, %102 : vector<16x1xf32>
    %104 = math.rsqrt %103 : vector<16x1xf32>
    %105 = vector.broadcast %104 : vector<16x1xf32> to vector<16x32xf32>
    %106 = arith.mulf %96, %105 : vector<16x32xf32>
    %107 = vector.broadcast %88 : vector<1x32xf32> to vector<16x32xf32>
    %108 = arith.mulf %106, %107 : vector<16x32xf32>
    %109 = vector.broadcast %90 : vector<1x32xf32> to vector<16x32xf32>
    %110 = arith.addf %108, %109 : vector<16x32xf32>
    %c0_56 = arith.constant 0 : index
    %c0_57 = arith.constant 0 : index
    %c0_58 = arith.constant 0 : index
    %111 = vector.load %arg12[%c0_56, %c0_57, %c0_58] : memref<2x32x64xf32, #tpu.memory_space<vmem>>, vector<1x32x64xf32>
    %112 = vector.shape_cast %111 : vector<1x32x64xf32> to vector<32x64xf32>
    %cst_59 = arith.constant dense<0.000000e+00> : vector<16x64xf32>
    %113 = tpu.matmul %110, %112, %cst_59 {dimension_numbers = #tpu.dot_dimension_numbers<[1], [0], [0], [1], [0, 0, 1, 1], [], []>} : vector<16x32xf32>, vector<32x64xf32>, vector<16x64xf32> -> vector<16x64xf32>
    %c0_60 = arith.constant 0 : index
    %c0_61 = arith.constant 0 : index
    %c0_62 = arith.constant 0 : index
    %114 = vector.load %arg13[%c0_60, %c0_61, %c0_62] : memref<2x1x64xf32, #tpu.memory_space<vmem>>, vector<1x1x64xf32>
    %115 = vector.shape_cast %114 : vector<1x1x64xf32> to vector<1x64xf32>
    %116 = vector.broadcast %115 : vector<1x64xf32> to vector<16x64xf32>
    %117 = arith.addf %113, %116 : vector<16x64xf32>
    %118 = arith.mulf %117, %117 : vector<16x64xf32>
    %119 = arith.mulf %117, %118 : vector<16x64xf32>
    %cst_63 = arith.constant 4.471500e-02 : f32
    %120 = vector.broadcast %cst_63 : f32 to vector<16x64xf32>
    %121 = arith.mulf %120, %119 : vector<16x64xf32>
    %122 = arith.addf %117, %121 : vector<16x64xf32>
    %cst_64 = arith.constant 0.797884583 : f32
    %123 = vector.broadcast %cst_64 : f32 to vector<16x64xf32>
    %124 = arith.mulf %123, %122 : vector<16x64xf32>
    %125 = math.tanh %124 : vector<16x64xf32>
    %cst_65 = arith.constant 1.000000e+00 : f32
    %126 = vector.broadcast %cst_65 : f32 to vector<16x64xf32>
    %127 = arith.addf %126, %125 : vector<16x64xf32>
    %cst_66 = arith.constant 5.000000e-01 : f32
    %128 = vector.broadcast %cst_66 : f32 to vector<16x64xf32>
    %129 = arith.mulf %128, %127 : vector<16x64xf32>
    %130 = arith.mulf %117, %129 : vector<16x64xf32>
    %c0_67 = arith.constant 0 : index
    %c0_68 = arith.constant 0 : index
    %c0_69 = arith.constant 0 : index
    %131 = vector.load %arg14[%c0_67, %c0_68, %c0_69] : memref<2x64x32xf32, #tpu.memory_space<vmem>>, vector<1x64x32xf32>
    %132 = vector.shape_cast %131 : vector<1x64x32xf32> to vector<64x32xf32>
    %cst_70 = arith.constant dense<0.000000e+00> : vector<16x32xf32>
    %133 = tpu.matmul %130, %132, %cst_70 {dimension_numbers = #tpu.dot_dimension_numbers<[1], [0], [0], [1], [0, 0, 1, 1], [], []>} : vector<16x64xf32>, vector<64x32xf32>, vector<16x32xf32> -> vector<16x32xf32>
    %c0_71 = arith.constant 0 : index
    %c0_72 = arith.constant 0 : index
    %c0_73 = arith.constant 0 : index
    %134 = vector.load %arg15[%c0_71, %c0_72, %c0_73] : memref<2x1x32xf32, #tpu.memory_space<vmem>>, vector<1x1x32xf32>
    %135 = vector.shape_cast %134 : vector<1x1x32xf32> to vector<1x32xf32>
    %136 = vector.broadcast %135 : vector<1x32xf32> to vector<16x32xf32>
    %137 = arith.addf %133, %136 : vector<16x32xf32>
    %138 = arith.addf %137, %110 : vector<16x32xf32>
    %c0_74 = arith.constant 0 : index
    %c0_75 = arith.constant 0 : index
    %c0_76 = arith.constant 0 : index
    %139 = vector.load %arg16[%c0_74, %c0_75, %c0_76] : memref<2x1x32xf32, #tpu.memory_space<vmem>>, vector<1x1x32xf32>
    %140 = vector.shape_cast %139 : vector<1x1x32xf32> to vector<1x32xf32>
    %c0_77 = arith.constant 0 : index
    %c0_78 = arith.constant 0 : index
    %c0_79 = arith.constant 0 : index
    %141 = vector.load %arg17[%c0_77, %c0_78, %c0_79] : memref<2x1x32xf32, #tpu.memory_space<vmem>>, vector<1x1x32xf32>
    %142 = vector.shape_cast %141 : vector<1x1x32xf32> to vector<1x32xf32>
    %cst_80 = arith.constant dense<0.000000e+00> : vector<16xf32>
    %143 = vector.multi_reduction <add>, %138, %cst_80 [1] : vector<16x32xf32> to vector<16xf32>
    %144 = vector.shape_cast %143 : vector<16xf32> to vector<16x1xf32>
    %cst_81 = arith.constant 3.200000e+01 : f32
    %145 = vector.broadcast %cst_81 : f32 to vector<16x1xf32>
    %146 = arith.divf %144, %145 : vector<16x1xf32>
    %147 = vector.broadcast %146 : vector<16x1xf32> to vector<16x32xf32>
    %148 = arith.subf %138, %147 : vector<16x32xf32>
    %149 = arith.mulf %148, %148 : vector<16x32xf32>
    %cst_82 = arith.constant dense<0.000000e+00> : vector<16xf32>
    %150 = vector.multi_reduction <add>, %149, %cst_82 [1] : vector<16x32xf32> to vector<16xf32>
    %151 = vector.shape_cast %150 : vector<16xf32> to vector<16x1xf32>
    %cst_83 = arith.constant 3.200000e+01 : f32
    %152 = vector.broadcast %cst_83 : f32 to vector<16x1xf32>
    %153 = arith.divf %151, %152 : vector<16x1xf32>
    %cst_84 = arith.constant 9.99999996E-13 : f32
    %154 = vector.broadcast %cst_84 : f32 to vector<16x1xf32>
    %155 = arith.addf %153, %154 : vector<16x1xf32>
    %156 = math.rsqrt %155 : vector<16x1xf32>
    %157 = vector.broadcast %156 : vector<16x1xf32> to vector<16x32xf32>
    %158 = arith.mulf %148, %157 : vector<16x32xf32>
    %159 = vector.broadcast %140 : vector<1x32xf32> to vector<16x32xf32>
    %160 = arith.mulf %158, %159 : vector<16x32xf32>
    %161 = vector.broadcast %142 : vector<1x32xf32> to vector<16x32xf32>
    %162 = arith.addf %160, %161 : vector<16x32xf32>
    %c1 = arith.constant 1 : index
    %c0_85 = arith.constant 0 : index
    %c0_86 = arith.constant 0 : index
    %163 = vector.load %arg6[%c1, %c0_85, %c0_86] : memref<2x32x96xf32, #tpu.memory_space<vmem>>, vector<1x32x96xf32>
    %164 = vector.shape_cast %163 : vector<1x32x96xf32> to vector<32x96xf32>
    %cst_87 = arith.constant dense<0.000000e+00> : vector<16x96xf32>
    %165 = tpu.matmul %162, %164, %cst_87 {dimension_numbers = #tpu.dot_dimension_numbers<[1], [0], [0], [1], [0, 0, 1, 1], [], []>} : vector<16x32xf32>, vector<32x96xf32>, vector<16x96xf32> -> vector<16x96xf32>
    %c1_88 = arith.constant 1 : index
    %c0_89 = arith.constant 0 : index
    %c0_90 = arith.constant 0 : index
    %166 = vector.load %arg7[%c1_88, %c0_89, %c0_90] : memref<2x1x96xf32, #tpu.memory_space<vmem>>, vector<1x1x96xf32>
    %167 = vector.shape_cast %166 : vector<1x1x96xf32> to vector<1x96xf32>
    %168 = vector.broadcast %167 : vector<1x96xf32> to vector<16x96xf32>
    %169 = arith.addf %165, %168 : vector<16x96xf32>
    %170 = vector.shape_cast %169 : vector<16x96xf32> to vector<2x8x96xf32>
    %171 = vector.extract_strided_slice %170 {offsets = [0, 0, 0], sizes = [2, 8, 16], strides = [1, 1, 1]} : vector<2x8x96xf32> to vector<2x8x16xf32>
    %172 = vector.extract_strided_slice %170 {offsets = [0, 0, 32], sizes = [2, 8, 16], strides = [1, 1, 1]} : vector<2x8x96xf32> to vector<2x8x16xf32>
    %173 = vector.extract_strided_slice %170 {offsets = [0, 0, 64], sizes = [2, 8, 16], strides = [1, 1, 1]} : vector<2x8x96xf32> to vector<2x8x16xf32>
    "tpu.trace_start"() <{level = 10 : i32, message = "bqd,bkd->bqk"}> : () -> ()
    %cst_91 = arith.constant dense<0.000000e+00> : vector<2x8x8xf32>
    %174 = tpu.matmul %171, %172, %cst_91 {dimension_numbers = #tpu.dot_dimension_numbers<[2], [2], [1], [1], [0, 0, 0, 1, 1, 1], [0], [0]>} : vector<2x8x16xf32>, vector<2x8x16xf32>, vector<2x8x8xf32> -> vector<2x8x8xf32>
    "tpu.trace_stop"() : () -> ()
    %cst_92 = arith.constant 2.500000e-01 : f32
    %175 = vector.broadcast %cst_92 : f32 to vector<2x8x8xf32>
    %176 = arith.mulf %174, %175 : vector<2x8x8xf32>
    %177 = vector.broadcast %29 : vector<2x1x8xf32> to vector<2x8x8xf32>
    %178 = arith.addf %176, %177 : vector<2x8x8xf32>
    %cst_93 = arith.constant dense<0xFF800000> : vector<2x8xf32>
    %179 = vector.multi_reduction <maximumf>, %178, %cst_93 [2] : vector<2x8x8xf32> to vector<2x8xf32>
    %180 = vector.shape_cast %179 : vector<2x8xf32> to vector<2x8x1xf32>
    %181 = vector.broadcast %180 : vector<2x8x1xf32> to vector<2x8x8xf32>
    %182 = arith.subf %178, %181 : vector<2x8x8xf32>
    %183 = math.exp %182 : vector<2x8x8xf32>
    %cst_94 = arith.constant dense<0.000000e+00> : vector<2x8xf32>
    %184 = vector.multi_reduction <add>, %183, %cst_94 [2] : vector<2x8x8xf32> to vector<2x8xf32>
    %185 = vector.shape_cast %184 : vector<2x8xf32> to vector<2x8x1xf32>
    %186 = tpu.reciprocal %185 {approx = true} : vector<2x8x1xf32> -> vector<2x8x1xf32>
    %187 = vector.broadcast %186 : vector<2x8x1xf32> to vector<2x8x8xf32>
    %188 = arith.mulf %183, %187 : vector<2x8x8xf32>
    "tpu.trace_start"() <{level = 10 : i32, message = "bqk,bkd->bqd"}> : () -> ()
    %cst_95 = arith.constant dense<0.000000e+00> : vector<2x8x16xf32>
    %189 = tpu.matmul %188, %173, %cst_95 {dimension_numbers = #tpu.dot_dimension_numbers<[2], [1], [1], [2], [0, 0, 0, 1, 1, 2], [0], [0]>} : vector<2x8x8xf32>, vector<2x8x16xf32>, vector<2x8x16xf32> -> vector<2x8x16xf32>
    "tpu.trace_stop"() : () -> ()
    %190 = vector.extract_strided_slice %170 {offsets = [0, 0, 16], sizes = [2, 8, 16], strides = [1, 1, 1]} : vector<2x8x96xf32> to vector<2x8x16xf32>
    %191 = vector.extract_strided_slice %170 {offsets = [0, 0, 48], sizes = [2, 8, 16], strides = [1, 1, 1]} : vector<2x8x96xf32> to vector<2x8x16xf32>
    %192 = vector.extract_strided_slice %170 {offsets = [0, 0, 80], sizes = [2, 8, 16], strides = [1, 1, 1]} : vector<2x8x96xf32> to vector<2x8x16xf32>
    "tpu.trace_start"() <{level = 10 : i32, message = "bqd,bkd->bqk"}> : () -> ()
    %cst_96 = arith.constant dense<0.000000e+00> : vector<2x8x8xf32>
    %193 = tpu.matmul %190, %191, %cst_96 {dimension_numbers = #tpu.dot_dimension_numbers<[2], [2], [1], [1], [0, 0, 0, 1, 1, 1], [0], [0]>} : vector<2x8x16xf32>, vector<2x8x16xf32>, vector<2x8x8xf32> -> vector<2x8x8xf32>
    "tpu.trace_stop"() : () -> ()
    %cst_97 = arith.constant 2.500000e-01 : f32
    %194 = vector.broadcast %cst_97 : f32 to vector<2x8x8xf32>
    %195 = arith.mulf %193, %194 : vector<2x8x8xf32>
    %196 = vector.broadcast %29 : vector<2x1x8xf32> to vector<2x8x8xf32>
    %197 = arith.addf %195, %196 : vector<2x8x8xf32>
    %cst_98 = arith.constant dense<0xFF800000> : vector<2x8xf32>
    %198 = vector.multi_reduction <maximumf>, %197, %cst_98 [2] : vector<2x8x8xf32> to vector<2x8xf32>
    %199 = vector.shape_cast %198 : vector<2x8xf32> to vector<2x8x1xf32>
    %200 = vector.broadcast %199 : vector<2x8x1xf32> to vector<2x8x8xf32>
    %201 = arith.subf %197, %200 : vector<2x8x8xf32>
    %202 = math.exp %201 : vector<2x8x8xf32>
    %cst_99 = arith.constant dense<0.000000e+00> : vector<2x8xf32>
    %203 = vector.multi_reduction <add>, %202, %cst_99 [2] : vector<2x8x8xf32> to vector<2x8xf32>
    %204 = vector.shape_cast %203 : vector<2x8xf32> to vector<2x8x1xf32>
    %205 = tpu.reciprocal %204 {approx = true} : vector<2x8x1xf32> -> vector<2x8x1xf32>
    %206 = vector.broadcast %205 : vector<2x8x1xf32> to vector<2x8x8xf32>
    %207 = arith.mulf %202, %206 : vector<2x8x8xf32>
    "tpu.trace_start"() <{level = 10 : i32, message = "bqk,bkd->bqd"}> : () -> ()
    %cst_100 = arith.constant dense<0.000000e+00> : vector<2x8x16xf32>
    %208 = tpu.matmul %207, %192, %cst_100 {dimension_numbers = #tpu.dot_dimension_numbers<[2], [1], [1], [2], [0, 0, 0, 1, 1, 2], [0], [0]>} : vector<2x8x8xf32>, vector<2x8x16xf32>, vector<2x8x16xf32> -> vector<2x8x16xf32>
    "tpu.trace_stop"() : () -> ()
    %209 = tpu.concatenate %189, %208 in 2 : vector<2x8x16xf32>, vector<2x8x16xf32> -> vector<2x8x32xf32>
    %210 = vector.shape_cast %209 : vector<2x8x32xf32> to vector<16x32xf32>
    %c1_101 = arith.constant 1 : index
    %c0_102 = arith.constant 0 : index
    %c0_103 = arith.constant 0 : index
    %211 = vector.load %arg8[%c1_101, %c0_102, %c0_103] : memref<2x32x32xf32, #tpu.memory_space<vmem>>, vector<1x32x32xf32>
    %212 = vector.shape_cast %211 : vector<1x32x32xf32> to vector<32x32xf32>
    %cst_104 = arith.constant dense<0.000000e+00> : vector<16x32xf32>
    %213 = tpu.matmul %210, %212, %cst_104 {dimension_numbers = #tpu.dot_dimension_numbers<[1], [0], [0], [1], [0, 0, 1, 1], [], []>} : vector<16x32xf32>, vector<32x32xf32>, vector<16x32xf32> -> vector<16x32xf32>
    %c1_105 = arith.constant 1 : index
    %c0_106 = arith.constant 0 : index
    %c0_107 = arith.constant 0 : index
    %214 = vector.load %arg9[%c1_105, %c0_106, %c0_107] : memref<2x1x32xf32, #tpu.memory_space<vmem>>, vector<1x1x32xf32>
    %215 = vector.shape_cast %214 : vector<1x1x32xf32> to vector<1x32xf32>
    %216 = vector.broadcast %215 : vector<1x32xf32> to vector<16x32xf32>
    %217 = arith.addf %213, %216 : vector<16x32xf32>
    %218 = arith.addf %217, %162 : vector<16x32xf32>
    %c1_108 = arith.constant 1 : index
    %c0_109 = arith.constant 0 : index
    %c0_110 = arith.constant 0 : index
    %219 = vector.load %arg10[%c1_108, %c0_109, %c0_110] : memref<2x1x32xf32, #tpu.memory_space<vmem>>, vector<1x1x32xf32>
    %220 = vector.shape_cast %219 : vector<1x1x32xf32> to vector<1x32xf32>
    %c1_111 = arith.constant 1 : index
    %c0_112 = arith.constant 0 : index
    %c0_113 = arith.constant 0 : index
    %221 = vector.load %arg11[%c1_111, %c0_112, %c0_113] : memref<2x1x32xf32, #tpu.memory_space<vmem>>, vector<1x1x32xf32>
    %222 = vector.shape_cast %221 : vector<1x1x32xf32> to vector<1x32xf32>
    %cst_114 = arith.constant dense<0.000000e+00> : vector<16xf32>
    %223 = vector.multi_reduction <add>, %218, %cst_114 [1] : vector<16x32xf32> to vector<16xf32>
    %224 = vector.shape_cast %223 : vector<16xf32> to vector<16x1xf32>
    %cst_115 = arith.constant 3.200000e+01 : f32
    %225 = vector.broadcast %cst_115 : f32 to vector<16x1xf32>
    %226 = arith.divf %224, %225 : vector<16x1xf32>
    %227 = vector.broadcast %226 : vector<16x1xf32> to vector<16x32xf32>
    %228 = arith.subf %218, %227 : vector<16x32xf32>
    %229 = arith.mulf %228, %228 : vector<16x32xf32>
    %cst_116 = arith.constant dense<0.000000e+00> : vector<16xf32>
    %230 = vector.multi_reduction <add>, %229, %cst_116 [1] : vector<16x32xf32> to vector<16xf32>
    %231 = vector.shape_cast %230 : vector<16xf32> to vector<16x1xf32>
    %cst_117 = arith.constant 3.200000e+01 : f32
    %232 = vector.broadcast %cst_117 : f32 to vector<16x1xf32>
    %233 = arith.divf %231, %232 : vector<16x1xf32>
    %cst_118 = arith.constant 9.99999996E-13 : f32
    %234 = vector.broadcast %cst_118 : f32 to vector<16x1xf32>
    %235 = arith.addf %233, %234 : vector<16x1xf32>
    %236 = math.rsqrt %235 : vector<16x1xf32>
    %237 = vector.broadcast %236 : vector<16x1xf32> to vector<16x32xf32>
    %238 = arith.mulf %228, %237 : vector<16x32xf32>
    %239 = vector.broadcast %220 : vector<1x32xf32> to vector<16x32xf32>
    %240 = arith.mulf %238, %239 : vector<16x32xf32>
    %241 = vector.broadcast %222 : vector<1x32xf32> to vector<16x32xf32>
    %242 = arith.addf %240, %241 : vector<16x32xf32>
    %c1_119 = arith.constant 1 : index
    %c0_120 = arith.constant 0 : index
    %c0_121 = arith.constant 0 : index
    %243 = vector.load %arg12[%c1_119, %c0_120, %c0_121] : memref<2x32x64xf32, #tpu.memory_space<vmem>>, vector<1x32x64xf32>
    %244 = vector.shape_cast %243 : vector<1x32x64xf32> to vector<32x64xf32>
    %cst_122 = arith.constant dense<0.000000e+00> : vector<16x64xf32>
    %245 = tpu.matmul %242, %244, %cst_122 {dimension_numbers = #tpu.dot_dimension_numbers<[1], [0], [0], [1], [0, 0, 1, 1], [], []>} : vector<16x32xf32>, vector<32x64xf32>, vector<16x64xf32> -> vector<16x64xf32>
    %c1_123 = arith.constant 1 : index
    %c0_124 = arith.constant 0 : index
    %c0_125 = arith.constant 0 : index
    %246 = vector.load %arg13[%c1_123, %c0_124, %c0_125] : memref<2x1x64xf32, #tpu.memory_space<vmem>>, vector<1x1x64xf32>
    %247 = vector.shape_cast %246 : vector<1x1x64xf32> to vector<1x64xf32>
    %248 = vector.broadcast %247 : vector<1x64xf32> to vector<16x64xf32>
    %249 = arith.addf %245, %248 : vector<16x64xf32>
    %250 = arith.mulf %249, %249 : vector<16x64xf32>
    %251 = arith.mulf %249, %250 : vector<16x64xf32>
    %cst_126 = arith.constant 4.471500e-02 : f32
    %252 = vector.broadcast %cst_126 : f32 to vector<16x64xf32>
    %253 = arith.mulf %252, %251 : vector<16x64xf32>
    %254 = arith.addf %249, %253 : vector<16x64xf32>
    %cst_127 = arith.constant 0.797884583 : f32
    %255 = vector.broadcast %cst_127 : f32 to vector<16x64xf32>
    %256 = arith.mulf %255, %254 : vector<16x64xf32>
    %257 = math.tanh %256 : vector<16x64xf32>
    %cst_128 = arith.constant 1.000000e+00 : f32
    %258 = vector.broadcast %cst_128 : f32 to vector<16x64xf32>
    %259 = arith.addf %258, %257 : vector<16x64xf32>
    %cst_129 = arith.constant 5.000000e-01 : f32
    %260 = vector.broadcast %cst_129 : f32 to vector<16x64xf32>
    %261 = arith.mulf %260, %259 : vector<16x64xf32>
    %262 = arith.mulf %249, %261 : vector<16x64xf32>
    %c1_130 = arith.constant 1 : index
    %c0_131 = arith.constant 0 : index
    %c0_132 = arith.constant 0 : index
    %263 = vector.load %arg14[%c1_130, %c0_131, %c0_132] : memref<2x64x32xf32, #tpu.memory_space<vmem>>, vector<1x64x32xf32>
    %264 = vector.shape_cast %263 : vector<1x64x32xf32> to vector<64x32xf32>
    %cst_133 = arith.constant dense<0.000000e+00> : vector<16x32xf32>
    %265 = tpu.matmul %262, %264, %cst_133 {dimension_numbers = #tpu.dot_dimension_numbers<[1], [0], [0], [1], [0, 0, 1, 1], [], []>} : vector<16x64xf32>, vector<64x32xf32>, vector<16x32xf32> -> vector<16x32xf32>
    %c1_134 = arith.constant 1 : index
    %c0_135 = arith.constant 0 : index
    %c0_136 = arith.constant 0 : index
    %266 = vector.load %arg15[%c1_134, %c0_135, %c0_136] : memref<2x1x32xf32, #tpu.memory_space<vmem>>, vector<1x1x32xf32>
    %267 = vector.shape_cast %266 : vector<1x1x32xf32> to vector<1x32xf32>
    %268 = vector.broadcast %267 : vector<1x32xf32> to vector<16x32xf32>
    %269 = arith.addf %265, %268 : vector<16x32xf32>
    %270 = arith.addf %269, %242 : vector<16x32xf32>
    %c1_137 = arith.constant 1 : index
    %c0_138 = arith.constant 0 : index
    %c0_139 = arith.constant 0 : index
    %271 = vector.load %arg16[%c1_137, %c0_138, %c0_139] : memref<2x1x32xf32, #tpu.memory_space<vmem>>, vector<1x1x32xf32>
    %272 = vector.shape_cast %271 : vector<1x1x32xf32> to vector<1x32xf32>
    %c1_140 = arith.constant 1 : index
    %c0_141 = arith.constant 0 : index
    %c0_142 = arith.constant 0 : index
    %273 = vector.load %arg17[%c1_140, %c0_141, %c0_142] : memref<2x1x32xf32, #tpu.memory_space<vmem>>, vector<1x1x32xf32>
    %274 = vector.shape_cast %273 : vector<1x1x32xf32> to vector<1x32xf32>
    %cst_143 = arith.constant dense<0.000000e+00> : vector<16xf32>
    %275 = vector.multi_reduction <add>, %270, %cst_143 [1] : vector<16x32xf32> to vector<16xf32>
    %276 = vector.shape_cast %275 : vector<16xf32> to vector<16x1xf32>
    %cst_144 = arith.constant 3.200000e+01 : f32
    %277 = vector.broadcast %cst_144 : f32 to vector<16x1xf32>
    %278 = arith.divf %276, %277 : vector<16x1xf32>
    %279 = vector.broadcast %278 : vector<16x1xf32> to vector<16x32xf32>
    %280 = arith.subf %270, %279 : vector<16x32xf32>
    %281 = arith.mulf %280, %280 : vector<16x32xf32>
    %cst_145 = arith.constant dense<0.000000e+00> : vector<16xf32>
    %282 = vector.multi_reduction <add>, %281, %cst_145 [1] : vector<16x32xf32> to vector<16xf32>
    %283 = vector.shape_cast %282 : vector<16xf32> to vector<16x1xf32>
    %cst_146 = arith.constant 3.200000e+01 : f32
    %284 = vector.broadcast %cst_146 : f32 to vector<16x1xf32>
    %285 = arith.divf %283, %284 : vector<16x1xf32>
    %cst_147 = arith.constant 9.99999996E-13 : f32
    %286 = vector.broadcast %cst_147 : f32 to vector<16x1xf32>
    %287 = arith.addf %285, %286 : vector<16x1xf32>
    %288 = math.rsqrt %287 : vector<16x1xf32>
    %289 = vector.broadcast %288 : vector<16x1xf32> to vector<16x32xf32>
    %290 = arith.mulf %280, %289 : vector<16x32xf32>
    %291 = vector.broadcast %272 : vector<1x32xf32> to vector<16x32xf32>
    %292 = arith.mulf %290, %291 : vector<16x32xf32>
    %293 = vector.broadcast %274 : vector<1x32xf32> to vector<16x32xf32>
    %294 = arith.addf %292, %293 : vector<16x32xf32>
    %295 = vector.shape_cast %294 : vector<16x32xf32> to vector<2x8x32xf32>
    %296 = vector.extract_strided_slice %295 {offsets = [0, 0, 0], sizes = [2, 1, 32], strides = [1, 1, 1]} : vector<2x8x32xf32> to vector<2x1x32xf32>
    %297 = vector.shape_cast %296 : vector<2x1x32xf32> to vector<2x32xf32>
    %c0_148 = arith.constant 0 : index
    %c0_149 = arith.constant 0 : index
    %298 = vector.load %arg18[%c0_148, %c0_149] : memref<32x32xf32, #tpu.memory_space<vmem>>, vector<32x32xf32>
    %cst_150 = arith.constant dense<0.000000e+00> : vector<2x32xf32>
    %299 = tpu.matmul %297, %298, %cst_150 {dimension_numbers = #tpu.dot_dimension_numbers<[1], [0], [0], [1], [0, 0, 1, 1], [], []>} : vector<2x32xf32>, vector<32x32xf32>, vector<2x32xf32> -> vector<2x32xf32>
    %c0_151 = arith.constant 0 : index
    %c0_152 = arith.constant 0 : index
    %300 = vector.load %arg19[%c0_151, %c0_152] : memref<1x32xf32, #tpu.memory_space<vmem>>, vector<1x32xf32>
    %301 = vector.broadcast %300 : vector<1x32xf32> to vector<2x32xf32>
    %302 = arith.addf %299, %301 : vector<2x32xf32>
    %303 = math.tanh %302 : vector<2x32xf32>
    %c0_153 = arith.constant 0 : index
    %c0_154 = arith.constant 0 : index
    %304 = vector.load %arg20[%c0_153, %c0_154] : memref<32x32xf32, #tpu.memory_space<vmem>>, vector<32x32xf32>
    %cst_155 = arith.constant dense<0.000000e+00> : vector<2x32xf32>
    %305 = tpu.matmul %303, %304, %cst_155 {dimension_numbers = #tpu.dot_dimension_numbers<[1], [0], [0], [1], [0, 0, 1, 1], [], []>} : vector<2x32xf32>, vector<32x32xf32>, vector<2x32xf32> -> vector<2x32xf32>
    %c0_156 = arith.constant 0 : index
    %c0_157 = arith.constant 0 : index
    %306 = vector.load %arg21[%c0_156, %c0_157] : memref<1x32xf32, #tpu.memory_space<vmem>>, vector<1x32xf32>
    %307 = vector.broadcast %306 : vector<1x32xf32> to vector<2x32xf32>
    %308 = arith.addf %305, %307 : vector<2x32xf32>
    %cst_158 = arith.constant 0.000000e+00 : f32
    %309 = vector.broadcast %cst_158 : f32 to vector<2x32xf32>
    %310 = arith.maximumf %308, %309 : vector<2x32xf32>
    %c0_159 = arith.constant 0 : index
    %c0_160 = arith.constant 0 : index
    %311 = vector.load %arg22[%c0_159, %c0_160] : memref<32x1xf32, #tpu.memory_space<vmem>>, vector<32x1xf32>
    %cst_161 = arith.constant dense<0.000000e+00> : vector<2x1xf32>
    %312 = tpu.matmul %310, %311, %cst_161 {dimension_numbers = #tpu.dot_dimension_numbers<[1], [0], [0], [1], [0, 0, 1, 1], [], []>} : vector<2x32xf32>, vector<32x1xf32>, vector<2x1xf32> -> vector<2x1xf32>
    %c0_162 = arith.constant 0 : index
    %c0_163 = arith.constant 0 : index
    %313 = vector.load %arg23[%c0_162, %c0_163] : memref<1x1xf32, #tpu.memory_space<vmem>>, vector<1x1xf32>
    %314 = vector.broadcast %313 : vector<1x1xf32> to vector<2x1xf32>
    %315 = arith.addf %312, %314 : vector<2x1xf32>
    %c0_164 = arith.constant 0 : index
    %c0_165 = arith.constant 0 : index
    %316 = vector.load %arg24[%c0_164, %c0_165] : memref<2x1xf32, #tpu.memory_space<vmem>>, vector<2x1xf32>
    tpu.vector_store %arg24[%c0_164, %c0_165], %315 {strides = array<i32>} : memref<2x1xf32, #tpu.memory_space<vmem>>, vector<2x1xf32>,
    return
  }
}

</mosaic_0001>

<llo_original>
// kernel: bert_sentiment_forward.1
$region0: #{bert_sentiment_forward.1}
  #allocation0 [shape = 'u32[]', space=smem, size = 0x4, offset = 0x4, fixed_abs, tag = 'smem constant byte address 0x4 - core index']
  #allocation1 [shape = 'u32[144,128]{1,0:T(1,128)}', space=vmem, size = 0x12000, scoped, tag = 'internal scratch']
  #allocation2 [shape = 'f32[1,1]{1,0:T(1,128)S(1)}', space=vmem, size = 0x200, scoped, tag = 'scoped memory for bert_sentiment_forward.1']
  %s0 = inlined_call_operand.vmem [shape: f32[2,8,32], index: 0, kind: input, shape index: {}]
  %s1 = inlined_call_operand.vmem [shape: f32[1,8,32], index: 1, kind: input, shape index: {}]
  %s2 = inlined_call_operand.vmem [shape: f32[1,1,32], index: 2, kind: input, shape index: {}]
  %s3 = inlined_call_operand.vmem [shape: f32[2,1,8], index: 3, kind: input, shape index: {}]
  %s4 = inlined_call_operand.vmem [shape: f32[1,1,32], index: 4, kind: input, shape index: {}]
  %s5 = inlined_call_operand.vmem [shape: f32[1,1,32], index: 5, kind: input, shape index: {}]
  %s6 = inlined_call_operand.vmem [shape: f32[2,32,96], index: 6, kind: input, shape index: {}]
  %s7 = inlined_call_operand.vmem [shape: f32[2,1,96], index: 7, kind: input, shape index: {}]
  %s8 = inlined_call_operand.vmem [shape: f32[2,32,32], index: 8, kind: input, shape index: {}]
  %s9 = inlined_call_operand.vmem [shape: f32[2,1,32], index: 9, kind: input, shape index: {}]
  %s10 = inlined_call_operand.vmem [shape: f32[2,1,32], index: 10, kind: input, shape index: {}]
  %s11 = inlined_call_operand.vmem [shape: f32[2,1,32], index: 11, kind: input, shape index: {}]
  %s12 = inlined_call_operand.vmem [shape: f32[2,32,64], index: 12, kind: input, shape index: {}]
  %s13 = inlined_call_operand.vmem [shape: f32[2,1,64], index: 13, kind: input, shape index: {}]
  %s14 = inlined_call_operand.vmem [shape: f32[2,64,32], index: 14, kind: input, shape index: {}]
  %s15 = inlined_call_operand.vmem [shape: f32[2,1,32], index: 15, kind: input, shape index: {}]
  %s16 = inlined_call_operand.vmem [shape: f32[2,1,32], index: 16, kind: input, shape index: {}]
  %s17 = inlined_call_operand.vmem [shape: f32[2,1,32], index: 17, kind: input, shape index: {}]
  %s18 = inlined_call_operand.vmem [shape: f32[32,32], index: 18, kind: input, shape index: {}]
  %s19 = inlined_call_operand.vmem [shape: f32[1,32], index: 19, kind: input, shape index: {}]
  %s20 = inlined_call_operand.vmem [shape: f32[32,32], index: 20, kind: input, shape index: {}]
  %s21 = inlined_call_operand.vmem [shape: f32[1,32], index: 21, kind: input, shape index: {}]
  %s22 = inlined_call_operand.vmem [shape: f32[32,1], index: 22, kind: input, shape index: {}]
  %s23 = inlined_call_operand.<no memory space> [shape: f32[1,1], index: 23, kind: input, shape index: {}]
  %s24 = inlined_call_operand.vmem [shape: f32[2,1], index: 24, kind: output, shape index: {}]
  %s25 = sld [smem:[#allocation0]]
  $region106: #{bert_sentiment_forward.1} parent=0
    _
  %s27 = ssub.s32 1, %s25
  %s28 = scalar_select 0, %s27, %s25
  %v29 = vstv %s23
  %30 = vst [vmem:[#allocation2] sm:$0x1] %v29
  // Predicated region
  $region2: #{bert_sentiment_forward.1} parent=0 // pred_check
    _
  $region3: #{bert_sentiment_forward.1} parent=0 // pred_check_branch
    %32 = sbr.rel (0) target = $region5
  $region4: #{bert_sentiment_forward.1} parent=0 // pred_region
    _
  $region5: #{bert_sentiment_forward.1} parent=0 // pred_fallthru
    _
  // Predicated region
  $region6: #{bert_sentiment_forward.1} parent=0 // pred_check
    _
  $region7: #{bert_sentiment_forward.1} parent=0 // pred_check_branch
    %34 = sbr.rel (0) target = $region9
  $region8: #{bert_sentiment_forward.1} parent=0 // pred_region
    _
  $region9: #{bert_sentiment_forward.1} parent=0 // pred_fallthru
    _
  // Predicated region
  $region10: #{bert_sentiment_forward.1} parent=0 // pred_check
    _
  $region11: #{bert_sentiment_forward.1} parent=0 // pred_check_branch
    %36 = sbr.rel (0) target = $region13
  $region12: #{bert_sentiment_forward.1} parent=0 // pred_region
    _
  $region13: #{bert_sentiment_forward.1} parent=0 // pred_fallthru
    _
  // Predicated region
  $region14: #{bert_sentiment_forward.1} parent=0 // pred_check
    _
  $region15: #{bert_sentiment_forward.1} parent=0 // pred_check_branch
    %38 = sbr.rel (0) target = $region17
  $region16: #{bert_sentiment_forward.1} parent=0 // pred_region
    _
  $region17: #{bert_sentiment_forward.1} parent=0 // pred_fallthru
    _
  // Predicated region
  $region18: #{bert_sentiment_forward.1} parent=0 // pred_check
    _
  $region19: #{bert_sentiment_forward.1} parent=0 // pred_check_branch
    %40 = sbr.rel (0) target = $region21
  $region20: #{bert_sentiment_forward.1} parent=0 // pred_region
    _
  $region21: #{bert_sentiment_forward.1} parent=0 // pred_fallthru
    _
  // Predicated region
  $region22: #{bert_sentiment_forward.1} parent=0 // pred_check
    _
  $region23: #{bert_sentiment_forward.1} parent=0 // pred_check_branch
    %42 = sbr.rel (0) target = $region25
  $region24: #{bert_sentiment_forward.1} parent=0 // pred_region
    _
  $region25: #{bert_sentiment_forward.1} parent=0 // pred_fallthru
    _
  // Predicated region
  $region26: #{bert_sentiment_forward.1} parent=0 // pred_check
    _
  $region27: #{bert_sentiment_forward.1} parent=0 // pred_check_branch
    %44 = sbr.rel (0) target = $region29
  $region28: #{bert_sentiment_forward.1} parent=0 // pred_region
    _
  $region29: #{bert_sentiment_forward.1} parent=0 // pred_fallthru
    _
  // Predicated region
  $region30: #{bert_sentiment_forward.1} parent=0 // pred_check
    _
  $region31: #{bert_sentiment_forward.1} parent=0 // pred_check_branch
    %46 = sbr.rel (0) target = $region33
  $region32: #{bert_sentiment_forward.1} parent=0 // pred_region
    _
  $region33: #{bert_sentiment_forward.1} parent=0 // pred_fallthru
    _
  // Predicated region
  $region34: #{bert_sentiment_forward.1} parent=0 // pred_check
    _
  $region35: #{bert_sentiment_forward.1} parent=0 // pred_check_branch
    %48 = sbr.rel (0) target = $region37
  $region36: #{bert_sentiment_forward.1} parent=0 // pred_region
    _
  $region37: #{bert_sentiment_forward.1} parent=0 // pred_fallthru
    _
  // Predicated region
  $region38: #{bert_sentiment_forward.1} parent=0 // pred_check
    _
  $region39: #{bert_sentiment_forward.1} parent=0 // pred_check_branch
    %50 = sbr.rel (0) target = $region41
  $region40: #{bert_sentiment_forward.1} parent=0 // pred_region
    _
  $region41: #{bert_sentiment_forward.1} parent=0 // pred_fallthru
    _
  // Predicated region
  $region42: #{bert_sentiment_forward.1} parent=0 // pred_check
    _
  $region43: #{bert_sentiment_forward.1} parent=0 // pred_check_branch
    %52 = sbr.rel (0) target = $region45
  $region44: #{bert_sentiment_forward.1} parent=0 // pred_region
    _
  $region45: #{bert_sentiment_forward.1} parent=0 // pred_fallthru
    _
  // Predicated region
  $region46: #{bert_sentiment_forward.1} parent=0 // pred_check
    _
  $region47: #{bert_sentiment_forward.1} parent=0 // pred_check_branch
    %54 = sbr.rel (0) target = $region49
  $region48: #{bert_sentiment_forward.1} parent=0 // pred_region
    _
  $region49: #{bert_sentiment_forward.1} parent=0 // pred_fallthru
    _
  // Predicated region
  $region50: #{bert_sentiment_forward.1} parent=0 // pred_check
    _
  $region51: #{bert_sentiment_forward.1} parent=0 // pred_check_branch
    %56 = sbr.rel (0) target = $region53
  $region52: #{bert_sentiment_forward.1} parent=0 // pred_region
    _
  $region53: #{bert_sentiment_forward.1} parent=0 // pred_fallthru
    _
  // Predicated region
  $region54: #{bert_sentiment_forward.1} parent=0 // pred_check
    _
  $region55: #{bert_sentiment_forward.1} parent=0 // pred_check_branch
    %58 = sbr.rel (0) target = $region57
  $region56: #{bert_sentiment_forward.1} parent=0 // pred_region
    _
  $region57: #{bert_sentiment_forward.1} parent=0 // pred_fallthru
    _
  // Predicated region
  $region58: #{bert_sentiment_forward.1} parent=0 // pred_check
    _
  $region59: #{bert_sentiment_forward.1} parent=0 // pred_check_branch
    %60 = sbr.rel (0) target = $region61
  $region60: #{bert_sentiment_forward.1} parent=0 // pred_region
    _
  $region61: #{bert_sentiment_forward.1} parent=0 // pred_fallthru
    _
  // Predicated region
  $region62: #{bert_sentiment_forward.1} parent=0 // pred_check
    _
  $region63: #{bert_sentiment_forward.1} parent=0 // pred_check_branch
    %62 = sbr.rel (0) target = $region65
  $region64: #{bert_sentiment_forward.1} parent=0 // pred_region
    _
  $region65: #{bert_sentiment_forward.1} parent=0 // pred_fallthru
    _
  // Predicated region
  $region66: #{bert_sentiment_forward.1} parent=0 // pred_check
    _
  $region67: #{bert_sentiment_forward.1} parent=0 // pred_check_branch
    %64 = sbr.rel (0) target = $region69
  $region68: #{bert_sentiment_forward.1} parent=0 // pred_region
    _
  $region69: #{bert_sentiment_forward.1} parent=0 // pred_fallthru
    _
  // Predicated region
  $region70: #{bert_sentiment_forward.1} parent=0 // pred_check
    _
  $region71: #{bert_sentiment_forward.1} parent=0 // pred_check_branch
    %66 = sbr.rel (0) target = $region73
  $region72: #{bert_sentiment_forward.1} parent=0 // pred_region
    _
  $region73: #{bert_sentiment_forward.1} parent=0 // pred_fallthru
    _
  // Predicated region
  $region74: #{bert_sentiment_forward.1} parent=0 // pred_check
    _
  $region75: #{bert_sentiment_forward.1} parent=0 // pred_check_branch
    %68 = sbr.rel (0) target = $region77
  $region76: #{bert_sentiment_forward.1} parent=0 // pred_region
    _
  $region77: #{bert_sentiment_forward.1} parent=0 // pred_fallthru
    _
  // Predicated region
  $region78: #{bert_sentiment_forward.1} parent=0 // pred_check
    _
  $region79: #{bert_sentiment_forward.1} parent=0 // pred_check_branch
    %70 = sbr.rel (0) target = $region81
  $region80: #{bert_sentiment_forward.1} parent=0 // pred_region
    _
  $region81: #{bert_sentiment_forward.1} parent=0 // pred_fallthru
    _
  // Predicated region
  $region82: #{bert_sentiment_forward.1} parent=0 // pred_check
    _
  $region83: #{bert_sentiment_forward.1} parent=0 // pred_check_branch
    %72 = sbr.rel (0) target = $region85
  $region84: #{bert_sentiment_forward.1} parent=0 // pred_region
    _
  $region85: #{bert_sentiment_forward.1} parent=0 // pred_fallthru
    _
  // Predicated region
  $region86: #{bert_sentiment_forward.1} parent=0 // pred_check
    _
  $region87: #{bert_sentiment_forward.1} parent=0 // pred_check_branch
    %74 = sbr.rel (0) target = $region89
  $region88: #{bert_sentiment_forward.1} parent=0 // pred_region
    _
  $region89: #{bert_sentiment_forward.1} parent=0 // pred_fallthru
    _
  // Predicated region
  $region90: #{bert_sentiment_forward.1} parent=0 // pred_check
    _
  $region91: #{bert_sentiment_forward.1} parent=0 // pred_check_branch
    %76 = sbr.rel (0) target = $region93
  $region92: #{bert_sentiment_forward.1} parent=0 // pred_region
    _
  $region93: #{bert_sentiment_forward.1} parent=0 // pred_fallthru
    _
  // Predicated region
  $region94: #{bert_sentiment_forward.1} parent=0 // pred_check
    _
  $region95: #{bert_sentiment_forward.1} parent=0 // pred_check_branch
    %78 = sbr.rel (0) target = $region97
  $region96: #{bert_sentiment_forward.1} parent=0 // pred_region
    _
  $region97: #{bert_sentiment_forward.1} parent=0 // pred_fallthru
    _
  %v79 = vld [vmem:[%s0] sm:$0xff]
  %v80 = vld [vmem:[%s0 + $0x8] sm:$0xff]
  %v81 = vld [vmem:[%s1] sm:$0xff]
  %v82 = vadd.f32 %v79, %v81
  %v83 = vadd.f32 %v80, %v81
  %v84 = vld [vmem:[%s2] sm:$0x1]
  %v86 = vlaneseq
  %v87 = vshrl.u32 %v86, 7
  %v88 = vsub.s32 0, %v87
  %v89 = vrot.slane %v84, %v88
  %v91 = vadd.f32 %v82, %v89
  %v92 = vadd.f32 %v83, %v89
  %v93 = vld [vmem:[%s4] sm:$0x1]
  %v94 = vld [vmem:[%s5] sm:$0x1]
  %vm95 = vcmask 261120
  %v96 = vsel %vm95, %v91, 0.0
  %97 = vadd.xlane.f32.xlu0 %v96
  %v98 = vpop.xlane.xlu0 %97
  %v99 = vsel %vm95, %v92, 0.0
  %100 = vadd.xlane.f32.xlu0 %v99
  %v101 = vpop.xlane.xlu0 %100
  %v102 = vrcp.pop 32.0
  %v103 = vmul.f32 %v98, %v102
  %v104 = vmul.f32 %v101, %v102
  %v105 = vsub.f32 %v91, %v103
  %v106 = vsub.f32 %v92, %v104
  %v107 = vmul.f32 %v105, %v105
  %v108 = vmul.f32 %v106, %v106
  %v109 = vsel %vm95, %v107, 0.0
  %110 = vadd.xlane.f32.xlu0 %v109
  %v111 = vpop.xlane.xlu0 %110
  %v112 = vsel %vm95, %v108, 0.0
  %113 = vadd.xlane.f32.xlu0 %v112
  %v114 = vpop.xlane.xlu0 %113
  %v115 = vmul.f32 %v111, %v102
  %v116 = vmul.f32 %v114, %v102
  %v117 = vadd.f32 %v115, 1e-12
  %v118 = vadd.f32 %v116, 1e-12
  %v119 = vrsqrt.pop %v117
  %v120 = vrsqrt.pop %v118
  %v121 = vmul.f32 %v105, %v119
  %v122 = vmul.f32 %v106, %v120
  %v124 = vlaneseq
  %v125 = vshrl.u32 %v124, 7
  %v126 = vsub.s32 0, %v125
  %v127 = vrot.slane %v93, %v126
  %v129 = vmul.f32 %v121, %v127
  %v130 = vmul.f32 %v122, %v127
  %v132 = vlaneseq
  %v133 = vshrl.u32 %v132, 7
  %v134 = vsub.s32 0, %v133
  %v135 = vrot.slane %v94, %v134
  %v137 = vadd.f32 %v129, %v135
  %v138 = vadd.f32 %v130, %v135
  %v139 = vld [vmem:[%s3] sm:$0x1]
  %v140 = vld [vmem:[%s3 + $0x1] sm:$0x1]
  %v141 = vld [vmem:[%s6] sm:$0xff]
  %v142 = vld [vmem:[%s6 + $0x8] sm:$0xff]
  %v143 = vld [vmem:[%s6 + $0x10] sm:$0xff]
  %v144 = vld [vmem:[%s6 + $0x18] sm:$0xff]
  %v145 = vld [vmem:[%s7] sm:$0x1]
  %v147 = vlaneseq
  %v148 = vshrl.u32 %v147, 7
  %v149 = vsub.s32 0, %v148
  %v150 = vrot.slane %v145, %v149
  %v153 = vsel %vm95, %v137, 0
  %v156 = vsel %vm95, %v138, 0
  %158 = vmatprep.subr.mxu0 0.0
  %159 = vmatpush1.msra.mxu0 %v141
  %160 = vmatprep.subr.mxu0 0.0
  %161 = vmatpush1.msra.mxu0 %v142
  %162 = vmatprep.subr.mxu0 0.0
  %163 = vmatpush1.msra.mxu0 %v143
  %164 = vmatprep.subr.mxu0 0.0
  %165 = vmatpush1.msra.mxu0 %v144
  %166 = vmatprep.subr.mxu0 0.0
  %167 = vmatpush1.msra.mxu0 0.0
  %168 = vmatprep.subr.mxu0 0.0
  %169 = vmatpush1.msra.mxu0 0.0
  %170 = vmatprep.subr.mxu0 0.0
  %171 = vmatpush1.msra.mxu0 0.0
  %172 = vmatprep.subr.mxu0 0.0
  %173 = vmatpush1.msra.mxu0 0.0
  %174 = vmatprep.subr.mxu0 0.0
  %175 = vmatpush1.msra.mxu0 0.0
  %176 = vmatprep.subr.mxu0 0.0
  %177 = vmatpush1.msra.mxu0 0.0
  %178 = vmatprep.subr.mxu0 0.0
  %179 = vmatpush1.msra.mxu0 0.0
  %180 = vmatprep.subr.mxu0 0.0
  %181 = vmatpush1.msra.mxu0 0.0
  %182 = vmatprep.subr.mxu0 0.0
  %183 = vmatpush1.msra.mxu0 0.0
  %184 = vmatprep.subr.mxu0 0.0
  %185 = vmatpush1.msra.mxu0 0.0
  %186 = vmatprep.subr.mxu0 0.0
  %187 = vmatpush1.msra.mxu0 0.0
  %188 = vmatprep.subr.mxu0 0.0
  %189 = vmatpush1.msra.mxu0 0.0
  %190 = vmatprep.subr.mxu0 0.0
  %191 = vmatpush1.msra.mxu0 0.0
  %192 = vmatprep.subr.mxu0 0.0
  %193 = vmatpush1.msra.mxu0 0.0
  %194 = vmatprep.subr.mxu0 0.0
  %195 = vmatpush1.msra.mxu0 0.0
  %196 = vmatprep.subr.mxu0 0.0
  %197 = vmatpush1.msra.mxu0 0.0
  %198 = vmatprep.subr.mxu0 0.0
  %199 = vmatpush1.msra.mxu0 0.0
  %200 = vmatprep.subr.mxu0 0.0
  %201 = vmatpush1.msra.mxu0 0.0
  %202 = vmatprep.subr.mxu0 0.0
  %203 = vmatpush1.msra.mxu0 0.0
  %204 = vmatprep.subr.mxu0 0.0
  %205 = vmatpush1.msra.mxu0 0.0
  %206 = vmatprep.subr.mxu0 0.0
  %207 = vmatpush1.msra.mxu0 0.0
  %208 = vmatprep.subr.mxu0 0.0
  %209 = vmatpush1.msra.mxu0 0.0
  %210 = vmatprep.subr.mxu0 0.0
  %211 = vmatpush1.msra.mxu0 0.0
  %212 = vmatprep.subr.mxu0 0.0
  %213 = vmatpush1.msra.mxu0 0.0
  %214 = vmatprep.subr.mxu0 0.0
  %215 = vmatpush1.msra.mxu0 0.0
  %216 = vmatprep.subr.mxu0 0.0
  %217 = vmatpush1.msra.mxu0 0.0
  %218 = vmatprep.subr.mxu0 0.0
  %219 = vmatpush1.msra.mxu0 0.0
  %220 = vmatprep.subr.mxu0 0.0
  %221 = vmatpush1.msra.mxu0 0.0
  %222 = vmatprep.mubr.f32.mxu0 0.0
  %223 = vmatmul.mubr.f32.gmra.mrb[0].mxu0 %v153
  %v224 = vpop.f32.mrb[0].mxu0
  %v225 = vadd.f32 %v150, %v224
  %v226 = vpop.f32.mrb[0].mxu0
  %227 = vmatprep.mubr.f32.mxu0 0.0
  %228 = vmatmul.mubr.f32.gmra.mrb[0].mxu0 %v156
  %v229 = vpop.f32.mrb[0].mxu0
  %v230 = vadd.f32 %v150, %v229
  %v231 = vpop.f32.mrb[0].mxu0
  %232 = vdwg.mxu0
  %234 = vrot.lane.b32.xlu0 %v225, 96
  %v235 = vpop.permute.xlu0 %234
  %vm236 = vcmask 130048
  %v237 = vsel %vm236, %v225, 0
  %v239 = vsel %vm236, %v235, 0
  %241 = vmatprep.subr.mxu0 0.0
  %242 = vmatpush1.xpose.msra.mxu0 %v239
  %243 = vmatprep.subr.mxu0 0.0
  %244 = vmatpush1.xpose.msra.mxu0 0.0
  %245 = vmatprep.subr.mxu0 0.0
  %246 = vmatpush1.xpose.msra.mxu0 0.0
  %247 = vmatprep.subr.mxu0 0.0
  %248 = vmatpush1.xpose.msra.mxu0 0.0
  %249 = vmatprep.subr.mxu0 0.0
  %250 = vmatpush1.xpose.msra.mxu0 0.0
  %251 = vmatprep.subr.mxu0 0.0
  %252 = vmatpush1.xpose.msra.mxu0 0.0
  %253 = vmatprep.subr.mxu0 0.0
  %254 = vmatpush1.xpose.msra.mxu0 0.0
  %255 = vmatprep.subr.mxu0 0.0
  %256 = vmatpush1.xpose.msra.mxu0 0.0
  %257 = vmatprep.subr.mxu0 0.0
  %258 = vmatpush1.xpose.msra.mxu0 0.0
  %259 = vmatprep.subr.mxu0 0.0
  %260 = vmatpush1.xpose.msra.mxu0 0.0
  %261 = vmatprep.subr.mxu0 0.0
  %262 = vmatpush1.xpose.msra.mxu0 0.0
  %263 = vmatprep.subr.mxu0 0.0
  %264 = vmatpush1.xpose.msra.mxu0 0.0
  %265 = vmatprep.subr.mxu0 0.0
  %266 = vmatpush1.xpose.msra.mxu0 0.0
  %267 = vmatprep.subr.mxu0 0.0
  %268 = vmatpush1.xpose.msra.mxu0 0.0
  %269 = vmatprep.subr.mxu0 0.0
  %270 = vmatpush1.xpose.msra.mxu0 0.0
  %271 = vmatprep.subr.mxu0 0.0
  %272 = vmatpush1.xpose.msra.mxu0 0.0
  %273 = vmatprep.subr.mxu0 0.0
  %274 = vmatpush1.xpose.msra.mxu0 0.0
  %275 = vmatprep.subr.mxu0 0.0
  %276 = vmatpush1.xpose.msra.mxu0 0.0
  %277 = vmatprep.subr.mxu0 0.0
  %278 = vmatpush1.xpose.msra.mxu0 0.0
  %279 = vmatprep.subr.mxu0 0.0
  %280 = vmatpush1.xpose.msra.mxu0 0.0
  %281 = vmatprep.subr.mxu0 0.0
  %282 = vmatpush1.xpose.msra.mxu0 0.0
  %283 = vmatprep.subr.mxu0 0.0
  %284 = vmatpush1.xpose.msra.mxu0 0.0
  %285 = vmatprep.subr.mxu0 0.0
  %286 = vmatpush1.xpose.msra.mxu0 0.0
  %287 = vmatprep.subr.mxu0 0.0
  %288 = vmatpush1.xpose.msra.mxu0 0.0
  %289 = vmatprep.subr.mxu0 0.0
  %290 = vmatpush1.xpose.msra.mxu0 0.0
  %291 = vmatprep.subr.mxu0 0.0
  %292 = vmatpush1.xpose.msra.mxu0 0.0
  %293 = vmatprep.subr.mxu0 0.0
  %294 = vmatpush1.xpose.msra.mxu0 0.0
  %295 = vmatprep.subr.mxu0 0.0
  %296 = vmatpush1.xpose.msra.mxu0 0.0
  %297 = vmatprep.subr.mxu0 0.0
  %298 = vmatpush1.xpose.msra.mxu0 0.0
  %299 = vmatprep.subr.mxu0 0.0
  %300 = vmatpush1.xpose.msra.mxu0 0.0
  %301 = vmatprep.subr.mxu0 0.0
  %302 = vmatpush1.xpose.msra.mxu0 0.0
  %303 = vmatprep.subr.mxu0 0.0
  %304 = vmatpush1.xpose.msra.mxu0 0.0
  %305 = vmatprep.mubr.f32.mxu0 0.0
  %306 = vmatmul.mubr.f32.gmra.mrb[0].mxu0 %v237
  %v307 = vpop.f32.mrb[0].mxu0
  %v308 = vadd.f32 0.0, %v307
  %v309 = vpop.f32.mrb[0].mxu0
  %310 = vdwg.mxu0
  %312 = vrot.lane.b32.xlu0 %v230, 96
  %v313 = vpop.permute.xlu0 %312
  %v314 = vsel %vm236, %v230, 0
  %v316 = vsel %vm236, %v313, 0
  %318 = vmatprep.subr.mxu0 0.0
  %319 = vmatpush1.xpose.msra.mxu0 %v316
  %320 = vmatprep.subr.mxu0 0.0
  %321 = vmatpush1.xpose.msra.mxu0 0.0
  %322 = vmatprep.subr.mxu0 0.0
  %323 = vmatpush1.xpose.msra.mxu0 0.0
  %324 = vmatprep.subr.mxu0 0.0
  %325 = vmatpush1.xpose.msra.mxu0 0.0
  %326 = vmatprep.subr.mxu0 0.0
  %327 = vmatpush1.xpose.msra.mxu0 0.0
  %328 = vmatprep.subr.mxu0 0.0
  %329 = vmatpush1.xpose.msra.mxu0 0.0
  %330 = vmatprep.subr.mxu0 0.0
  %331 = vmatpush1.xpose.msra.mxu0 0.0
  %332 = vmatprep.subr.mxu0 0.0
  %333 = vmatpush1.xpose.msra.mxu0 0.0
  %334 = vmatprep.subr.mxu0 0.0
  %335 = vmatpush1.xpose.msra.mxu0 0.0
  %336 = vmatprep.subr.mxu0 0.0
  %337 = vmatpush1.xpose.msra.mxu0 0.0
  %338 = vmatprep.subr.mxu0 0.0
  %339 = vmatpush1.xpose.msra.mxu0 0.0
  %340 = vmatprep.subr.mxu0 0.0
  %341 = vmatpush1.xpose.msra.mxu0 0.0
  %342 = vmatprep.subr.mxu0 0.0
  %343 = vmatpush1.xpose.msra.mxu0 0.0
  %344 = vmatprep.subr.mxu0 0.0
  %345 = vmatpush1.xpose.msra.mxu0 0.0
  %346 = vmatprep.subr.mxu0 0.0
  %347 = vmatpush1.xpose.msra.mxu0 0.0
  %348 = vmatprep.subr.mxu0 0.0
  %349 = vmatpush1.xpose.msra.mxu0 0.0
  %350 = vmatprep.subr.mxu0 0.0
  %351 = vmatpush1.xpose.msra.mxu0 0.0
  %352 = vmatprep.subr.mxu0 0.0
  %353 = vmatpush1.xpose.msra.mxu0 0.0
  %354 = vmatprep.subr.mxu0 0.0
  %355 = vmatpush1.xpose.msra.mxu0 0.0
  %356 = vmatprep.subr.mxu0 0.0
  %357 = vmatpush1.xpose.msra.mxu0 0.0
  %358 = vmatprep.subr.mxu0 0.0
  %359 = vmatpush1.xpose.msra.mxu0 0.0
  %360 = vmatprep.subr.mxu0 0.0
  %361 = vmatpush1.xpose.msra.mxu0 0.0
  %362 = vmatprep.subr.mxu0 0.0
  %363 = vmatpush1.xpose.msra.mxu0 0.0
  %364 = vmatprep.subr.mxu0 0.0
  %365 = vmatpush1.xpose.msra.mxu0 0.0
  %366 = vmatprep.subr.mxu0 0.0
  %367 = vmatpush1.xpose.msra.mxu0 0.0
  %368 = vmatprep.subr.mxu0 0.0
  %369 = vmatpush1.xpose.msra.mxu0 0.0
  %370 = vmatprep.subr.mxu0 0.0
  %371 = vmatpush1.xpose.msra.mxu0 0.0
  %372 = vmatprep.subr.mxu0 0.0
  %373 = vmatpush1.xpose.msra.mxu0 0.0
  %374 = vmatprep.subr.mxu0 0.0
  %375 = vmatpush1.xpose.msra.mxu0 0.0
  %376 = vmatprep.subr.mxu0 0.0
  %377 = vmatpush1.xpose.msra.mxu0 0.0
  %378 = vmatprep.subr.mxu0 0.0
  %379 = vmatpush1.xpose.msra.mxu0 0.0
  %380 = vmatprep.subr.mxu0 0.0
  %381 = vmatpush1.xpose.msra.mxu0 0.0
  %382 = vmatprep.mubr.f32.mxu0 0.0
  %383 = vmatmul.mubr.f32.gmra.mrb[0].mxu0 %v314
  %v384 = vpop.f32.mrb[0].mxu0
  %v385 = vadd.f32 0.0, %v384
  %v386 = vpop.f32.mrb[0].mxu0
  %387 = vdwg.mxu0
  %v388 = vmul.f32 %v308, 0.25
  %v389 = vmul.f32 %v385, 0.25
  %v392 = vlaneseq
  %v393 = vshrl.u32 %v392, 7
  %v394 = vsub.s32 0, %v393
  %v395 = vrot.slane %v139, %v394
  %v396 = vlaneseq
  %v397 = vshrl.u32 %v396, 7
  %v398 = vsub.s32 0, %v397
  %v399 = vrot.slane %v140, %v398
  %v402 = vadd.f32 %v388, %v395
  %v403 = vadd.f32 %v389, %v399
  %vm404 = vcmask 64512
  %v405 = vsel %vm404, %v402, -inf
  %406 = vmax.xlane.f32.xlu0 %v405
  %v407 = vpop.xlane.xlu0 %406
  %v408 = vsel %vm404, %v403, -inf
  %409 = vmax.xlane.f32.xlu0 %v408
  %v410 = vpop.xlane.xlu0 %409
  %v411 = vsub.f32 %v402, %v407
  %v412 = vsub.f32 %v403, %v410
  %v413 = vmul.f32 %v411, 1.442695
  %v414 = vpow.pop %v413
  %v415 = vmul.f32 %v412, 1.442695
  %v416 = vpow.pop %v415
  %v417 = vsel %vm404, %v414, 0.0
  %418 = vadd.xlane.f32.xlu0 %v417
  %v419 = vpop.xlane.xlu0 %418
  %v420 = vsel %vm404, %v416, 0.0
  %421 = vadd.xlane.f32.xlu0 %v420
  %v422 = vpop.xlane.xlu0 %421
  %v423 = vrcp.pop %v419
  %v424 = vrcp.pop %v422
  %v425 = vmul.f32 %v414, %v423
  %v426 = vmul.f32 %v416, %v424
  %427 = vrot.lane.b32.xlu0 %v225, 64
  %v428 = vpop.permute.xlu0 %427
  %v431 = vsel %vm404, %v425, 0
  %433 = vmatprep.subr.mxu0 0.0
  %434 = vmatpush1.msra.mxu0 %v428
  %435 = vmatprep.subr.mxu0 0.0
  %436 = vmatpush1.msra.mxu0 0.0
  %437 = vmatprep.subr.mxu0 0.0
  %438 = vmatpush1.msra.mxu0 0.0
  %439 = vmatprep.subr.mxu0 0.0
  %440 = vmatpush1.msra.mxu0 0.0
  %441 = vmatprep.subr.mxu0 0.0
  %442 = vmatpush1.msra.mxu0 0.0
  %443 = vmatprep.subr.mxu0 0.0
  %444 = vmatpush1.msra.mxu0 0.0
  %445 = vmatprep.subr.mxu0 0.0
  %446 = vmatpush1.msra.mxu0 0.0
  %447 = vmatprep.subr.mxu0 0.0
  %448 = vmatpush1.msra.mxu0 0.0
  %449 = vmatprep.subr.mxu0 0.0
  %450 = vmatpush1.msra.mxu0 0.0
  %451 = vmatprep.subr.mxu0 0.0
  %452 = vmatpush1.msra.mxu0 0.0
  %453 = vmatprep.subr.mxu0 0.0
  %454 = vmatpush1.msra.mxu0 0.0
  %455 = vmatprep.subr.mxu0 0.0
  %456 = vmatpush1.msra.mxu0 0.0
  %457 = vmatprep.subr.mxu0 0.0
  %458 = vmatpush1.msra.mxu0 0.0
  %459 = vmatprep.subr.mxu0 0.0
  %460 = vmatpush1.msra.mxu0 0.0
  %461 = vmatprep.subr.mxu0 0.0
  %462 = vmatpush1.msra.mxu0 0.0
  %463 = vmatprep.subr.mxu0 0.0
  %464 = vmatpush1.msra.mxu0 0.0
  %465 = vmatprep.subr.mxu0 0.0
  %466 = vmatpush1.msra.mxu0 0.0
  %467 = vmatprep.subr.mxu0 0.0
  %468 = vmatpush1.msra.mxu0 0.0
  %469 = vmatprep.subr.mxu0 0.0
  %470 = vmatpush1.msra.mxu0 0.0
  %471 = vmatprep.subr.mxu0 0.0
  %472 = vmatpush1.msra.mxu0 0.0
  %473 = vmatprep.subr.mxu0 0.0
  %474 = vmatpush1.msra.mxu0 0.0
  %475 = vmatprep.subr.mxu0 0.0
  %476 = vmatpush1.msra.mxu0 0.0
  %477 = vmatprep.subr.mxu0 0.0
  %478 = vmatpush1.msra.mxu0 0.0
  %479 = vmatprep.subr.mxu0 0.0
  %480 = vmatpush1.msra.mxu0 0.0
  %481 = vmatprep.subr.mxu0 0.0
  %482 = vmatpush1.msra.mxu0 0.0
  %483 = vmatprep.subr.mxu0 0.0
  %484 = vmatpush1.msra.mxu0 0.0
  %485 = vmatprep.subr.mxu0 0.0
  %486 = vmatpush1.msra.mxu0 0.0
  %487 = vmatprep.subr.mxu0 0.0
  %488 = vmatpush1.msra.mxu0 0.0
  %489 = vmatprep.subr.mxu0 0.0
  %490 = vmatpush1.msra.mxu0 0.0
  %491 = vmatprep.subr.mxu0 0.0
  %492 = vmatpush1.msra.mxu0 0.0
  %493 = vmatprep.subr.mxu0 0.0
  %494 = vmatpush1.msra.mxu0 0.0
  %495 = vmatprep.subr.mxu0 0.0
  %496 = vmatpush1.msra.mxu0 0.0
  %497 = vmatprep.mubr.f32.mxu0 0.0
  %498 = vmatmul.mubr.f32.gmra.mrb[0].mxu0 %v431
  %v499 = vpop.f32.mrb[0].mxu0
  %v500 = vadd.f32 0.0, %v499
  %v501 = vpop.f32.mrb[0].mxu0
  %502 = vdwg.mxu0
  %503 = vrot.lane.b32.xlu0 %v230, 64
  %v504 = vpop.permute.xlu0 %503
  %v507 = vsel %vm404, %v426, 0
  %509 = vmatprep.subr.mxu0 0.0
  %510 = vmatpush1.msra.mxu0 %v504
  %511 = vmatprep.subr.mxu0 0.0
  %512 = vmatpush1.msra.mxu0 0.0
  %513 = vmatprep.subr.mxu0 0.0
  %514 = vmatpush1.msra.mxu0 0.0
  %515 = vmatprep.subr.mxu0 0.0
  %516 = vmatpush1.msra.mxu0 0.0
  %517 = vmatprep.subr.mxu0 0.0
  %518 = vmatpush1.msra.mxu0 0.0
  %519 = vmatprep.subr.mxu0 0.0
  %520 = vmatpush1.msra.mxu0 0.0
  %521 = vmatprep.subr.mxu0 0.0
  %522 = vmatpush1.msra.mxu0 0.0
  %523 = vmatprep.subr.mxu0 0.0
  %524 = vmatpush1.msra.mxu0 0.0
  %525 = vmatprep.subr.mxu0 0.0
  %526 = vmatpush1.msra.mxu0 0.0
  %527 = vmatprep.subr.mxu0 0.0
  %528 = vmatpush1.msra.mxu0 0.0
  %529 = vmatprep.subr.mxu0 0.0
  %530 = vmatpush1.msra.mxu0 0.0
  %531 = vmatprep.subr.mxu0 0.0
  %532 = vmatpush1.msra.mxu0 0.0
  %533 = vmatprep.subr.mxu0 0.0
  %534 = vmatpush1.msra.mxu0 0.0
  %535 = vmatprep.subr.mxu0 0.0
  %536 = vmatpush1.msra.mxu0 0.0
  %537 = vmatprep.subr.mxu0 0.0
  %538 = vmatpush1.msra.mxu0 0.0
  %539 = vmatprep.subr.mxu0 0.0
  %540 = vmatpush1.msra.mxu0 0.0
  %541 = vmatprep.subr.mxu0 0.0
  %542 = vmatpush1.msra.mxu0 0.0
  %543 = vmatprep.subr.mxu0 0.0
  %544 = vmatpush1.msra.mxu0 0.0
  %545 = vmatprep.subr.mxu0 0.0
  %546 = vmatpush1.msra.mxu0 0.0
  %547 = vmatprep.subr.mxu0 0.0
  %548 = vmatpush1.msra.mxu0 0.0
  %549 = vmatprep.subr.mxu0 0.0
  %550 = vmatpush1.msra.mxu0 0.0
  %551 = vmatprep.subr.mxu0 0.0
  %552 = vmatpush1.msra.mxu0 0.0
  %553 = vmatprep.subr.mxu0 0.0
  %554 = vmatpush1.msra.mxu0 0.0
  %555 = vmatprep.subr.mxu0 0.0
  %556 = vmatpush1.msra.mxu0 0.0
  %557 = vmatprep.subr.mxu0 0.0
  %558 = vmatpush1.msra.mxu0 0.0
  %559 = vmatprep.subr.mxu0 0.0
  %560 = vmatpush1.msra.mxu0 0.0
  %561 = vmatprep.subr.mxu0 0.0
  %562 = vmatpush1.msra.mxu0 0.0
  %563 = vmatprep.subr.mxu0 0.0
  %564 = vmatpush1.msra.mxu0 0.0
  %565 = vmatprep.subr.mxu0 0.0
  %566 = vmatpush1.msra.mxu0 0.0
  %567 = vmatprep.subr.mxu0 0.0
  %568 = vmatpush1.msra.mxu0 0.0
  %569 = vmatprep.subr.mxu0 0.0
  %570 = vmatpush1.msra.mxu0 0.0
  %571 = vmatprep.subr.mxu0 0.0
  %572 = vmatpush1.msra.mxu0 0.0
  %573 = vmatprep.mubr.f32.mxu0 0.0
  %574 = vmatmul.mubr.f32.gmra.mrb[0].mxu0 %v507
  %v575 = vpop.f32.mrb[0].mxu0
  %v576 = vadd.f32 0.0, %v575
  %v577 = vpop.f32.mrb[0].mxu0
  %578 = vdwg.mxu0
  %579 = vrot.lane.b32.xlu0 %v225, 112
  %v580 = vpop.permute.xlu0 %579
  %581 = vrot.lane.b32.xlu0 %v225, 80
  %v582 = vpop.permute.xlu0 %581
  %v583 = vsel %vm236, %v580, 0
  %v585 = vsel %vm236, %v582, 0
  %587 = vmatprep.subr.mxu0 0.0
  %588 = vmatpush1.xpose.msra.mxu0 %v585
  %589 = vmatprep.subr.mxu0 0.0
  %590 = vmatpush1.xpose.msra.mxu0 0.0
  %591 = vmatprep.subr.mxu0 0.0
  %592 = vmatpush1.xpose.msra.mxu0 0.0
  %593 = vmatprep.subr.mxu0 0.0
  %594 = vmatpush1.xpose.msra.mxu0 0.0
  %595 = vmatprep.subr.mxu0 0.0
  %596 = vmatpush1.xpose.msra.mxu0 0.0
  %597 = vmatprep.subr.mxu0 0.0
  %598 = vmatpush1.xpose.msra.mxu0 0.0
  %599 = vmatprep.subr.mxu0 0.0
  %600 = vmatpush1.xpose.msra.mxu0 0.0
  %601 = vmatprep.subr.mxu0 0.0
  %602 = vmatpush1.xpose.msra.mxu0 0.0
  %603 = vmatprep.subr.mxu0 0.0
  %604 = vmatpush1.xpose.msra.mxu0 0.0
  %605 = vmatprep.subr.mxu0 0.0
  %606 = vmatpush1.xpose.msra.mxu0 0.0
  %607 = vmatprep.subr.mxu0 0.0
  %608 = vmatpush1.xpose.msra.mxu0 0.0
  %609 = vmatprep.subr.mxu0 0.0
  %610 = vmatpush1.xpose.msra.mxu0 0.0
  %611 = vmatprep.subr.mxu0 0.0
  %612 = vmatpush1.xpose.msra.mxu0 0.0
  %613 = vmatprep.subr.mxu0 0.0
  %614 = vmatpush1.xpose.msra.mxu0 0.0
  %615 = vmatprep.subr.mxu0 0.0
  %616 = vmatpush1.xpose.msra.mxu0 0.0
  %617 = vmatprep.subr.mxu0 0.0
  %618 = vmatpush1.xpose.msra.mxu0 0.0
  %619 = vmatprep.subr.mxu0 0.0
  %620 = vmatpush1.xpose.msra.mxu0 0.0
  %621 = vmatprep.subr.mxu0 0.0
  %622 = vmatpush1.xpose.msra.mxu0 0.0
  %623 = vmatprep.subr.mxu0 0.0
  %624 = vmatpush1.xpose.msra.mxu0 0.0
  %625 = vmatprep.subr.mxu0 0.0
  %626 = vmatpush1.xpose.msra.mxu0 0.0
  %627 = vmatprep.subr.mxu0 0.0
  %628 = vmatpush1.xpose.msra.mxu0 0.0
  %629 = vmatprep.subr.mxu0 0.0
  %630 = vmatpush1.xpose.msra.mxu0 0.0
  %631 = vmatprep.subr.mxu0 0.0
  %632 = vmatpush1.xpose.msra.mxu0 0.0
  %633 = vmatprep.subr.mxu0 0.0
  %634 = vmatpush1.xpose.msra.mxu0 0.0
  %635 = vmatprep.subr.mxu0 0.0
  %636 = vmatpush1.xpose.msra.mxu0 0.0
  %637 = vmatprep.subr.mxu0 0.0
  %638 = vmatpush1.xpose.msra.mxu0 0.0
  %639 = vmatprep.subr.mxu0 0.0
  %640 = vmatpush1.xpose.msra.mxu0 0.0
  %641 = vmatprep.subr.mxu0 0.0
  %642 = vmatpush1.xpose.msra.mxu0 0.0
  %643 = vmatprep.subr.mxu0 0.0
  %644 = vmatpush1.xpose.msra.mxu0 0.0
  %645 = vmatprep.subr.mxu0 0.0
  %646 = vmatpush1.xpose.msra.mxu0 0.0
  %647 = vmatprep.subr.mxu0 0.0
  %648 = vmatpush1.xpose.msra.mxu0 0.0
  %649 = vmatprep.subr.mxu0 0.0
  %650 = vmatpush1.xpose.msra.mxu0 0.0
  %651 = vmatprep.mubr.f32.mxu0 0.0
  %652 = vmatmul.mubr.f32.gmra.mrb[0].mxu0 %v583
  %v653 = vpop.f32.mrb[0].mxu0
  %v654 = vadd.f32 0.0, %v653
  %v655 = vpop.f32.mrb[0].mxu0
  %656 = vdwg.mxu0
  %657 = vrot.lane.b32.xlu0 %v230, 112
  %v658 = vpop.permute.xlu0 %657
  %659 = vrot.lane.b32.xlu0 %v230, 80
  %v660 = vpop.permute.xlu0 %659
  %v661 = vsel %vm236, %v658, 0
  %v663 = vsel %vm236, %v660, 0
  %665 = vmatprep.subr.mxu0 0.0
  %666 = vmatpush1.xpose.msra.mxu0 %v663
  %667 = vmatprep.subr.mxu0 0.0
  %668 = vmatpush1.xpose.msra.mxu0 0.0
  %669 = vmatprep.subr.mxu0 0.0
  %670 = vmatpush1.xpose.msra.mxu0 0.0
  %671 = vmatprep.subr.mxu0 0.0
  %672 = vmatpush1.xpose.msra.mxu0 0.0
  %673 = vmatprep.subr.mxu0 0.0
  %674 = vmatpush1.xpose.msra.mxu0 0.0
  %675 = vmatprep.subr.mxu0 0.0
  %676 = vmatpush1.xpose.msra.mxu0 0.0
  %677 = vmatprep.subr.mxu0 0.0
  %678 = vmatpush1.xpose.msra.mxu0 0.0
  %679 = vmatprep.subr.mxu0 0.0
  %680 = vmatpush1.xpose.msra.mxu0 0.0
  %681 = vmatprep.subr.mxu0 0.0
  %682 = vmatpush1.xpose.msra.mxu0 0.0
  %683 = vmatprep.subr.mxu0 0.0
  %684 = vmatpush1.xpose.msra.mxu0 0.0
  %685 = vmatprep.subr.mxu0 0.0
  %686 = vmatpush1.xpose.msra.mxu0 0.0
  %687 = vmatprep.subr.mxu0 0.0
  %688 = vmatpush1.xpose.msra.mxu0 0.0
  %689 = vmatprep.subr.mxu0 0.0
  %690 = vmatpush1.xpose.msra.mxu0 0.0
  %691 = vmatprep.subr.mxu0 0.0
  %692 = vmatpush1.xpose.msra.mxu0 0.0
  %693 = vmatprep.subr.mxu0 0.0
  %694 = vmatpush1.xpose.msra.mxu0 0.0
  %695 = vmatprep.subr.mxu0 0.0
  %696 = vmatpush1.xpose.msra.mxu0 0.0
  %697 = vmatprep.subr.mxu0 0.0
  %698 = vmatpush1.xpose.msra.mxu0 0.0
  %699 = vmatprep.subr.mxu0 0.0
  %700 = vmatpush1.xpose.msra.mxu0 0.0
  %701 = vmatprep.subr.mxu0 0.0
  %702 = vmatpush1.xpose.msra.mxu0 0.0
  %703 = vmatprep.subr.mxu0 0.0
  %704 = vmatpush1.xpose.msra.mxu0 0.0
  %705 = vmatprep.subr.mxu0 0.0
  %706 = vmatpush1.xpose.msra.mxu0 0.0
  %707 = vmatprep.subr.mxu0 0.0
  %708 = vmatpush1.xpose.msra.mxu0 0.0
  %709 = vmatprep.subr.mxu0 0.0
  %710 = vmatpush1.xpose.msra.mxu0 0.0
  %711 = vmatprep.subr.mxu0 0.0
  %712 = vmatpush1.xpose.msra.mxu0 0.0
  %713 = vmatprep.subr.mxu0 0.0
  %714 = vmatpush1.xpose.msra.mxu0 0.0
  %715 = vmatprep.subr.mxu0 0.0
  %716 = vmatpush1.xpose.msra.mxu0 0.0
  %717 = vmatprep.subr.mxu0 0.0
  %718 = vmatpush1.xpose.msra.mxu0 0.0
  %719 = vmatprep.subr.mxu0 0.0
  %720 = vmatpush1.xpose.msra.mxu0 0.0
  %721 = vmatprep.subr.mxu0 0.0
  %722 = vmatpush1.xpose.msra.mxu0 0.0
  %723 = vmatprep.subr.mxu0 0.0
  %724 = vmatpush1.xpose.msra.mxu0 0.0
  %725 = vmatprep.subr.mxu0 0.0
  %726 = vmatpush1.xpose.msra.mxu0 0.0
  %727 = vmatprep.subr.mxu0 0.0
  %728 = vmatpush1.xpose.msra.mxu0 0.0
  %729 = vmatprep.mubr.f32.mxu0 0.0
  %730 = vmatmul.mubr.f32.gmra.mrb[0].mxu0 %v661
  %v731 = vpop.f32.mrb[0].mxu0
  %v732 = vadd.f32 0.0, %v731
  %v733 = vpop.f32.mrb[0].mxu0
  %734 = vdwg.mxu0
  %v735 = vmul.f32 %v654, 0.25
  %v736 = vmul.f32 %v732, 0.25
  %v737 = vadd.f32 %v735, %v395
  %v738 = vadd.f32 %v736, %v399
  %v739 = vsel %vm404, %v737, -inf
  %740 = vmax.xlane.f32.xlu0 %v739
  %v741 = vpop.xlane.xlu0 %740
  %v742 = vsel %vm404, %v738, -inf
  %743 = vmax.xlane.f32.xlu0 %v742
  %v744 = vpop.xlane.xlu0 %743
  %v745 = vsub.f32 %v737, %v741
  %v746 = vsub.f32 %v738, %v744
  %v747 = vmul.f32 %v745, 1.442695
  %v748 = vpow.pop %v747
  %v749 = vmul.f32 %v746, 1.442695
  %v750 = vpow.pop %v749
  %v751 = vsel %vm404, %v748, 0.0
  %752 = vadd.xlane.f32.xlu0 %v751
  %v753 = vpop.xlane.xlu0 %752
  %v754 = vsel %vm404, %v750, 0.0
  %755 = vadd.xlane.f32.xlu0 %v754
  %v756 = vpop.xlane.xlu0 %755
  %v757 = vrcp.pop %v753
  %v758 = vrcp.pop %v756
  %v759 = vmul.f32 %v748, %v757
  %v760 = vmul.f32 %v750, %v758
  %761 = vrot.lane.b32.xlu0 %v225, 48
  %v762 = vpop.permute.xlu0 %761
  %v765 = vsel %vm404, %v759, 0
  %767 = vmatprep.subr.mxu0 0.0
  %768 = vmatpush1.msra.mxu0 %v762
  %769 = vmatprep.subr.mxu0 0.0
  %770 = vmatpush1.msra.mxu0 0.0
  %771 = vmatprep.subr.mxu0 0.0
  %772 = vmatpush1.msra.mxu0 0.0
  %773 = vmatprep.subr.mxu0 0.0
  %774 = vmatpush1.msra.mxu0 0.0
  %775 = vmatprep.subr.mxu0 0.0
  %776 = vmatpush1.msra.mxu0 0.0
  %777 = vmatprep.subr.mxu0 0.0
  %778 = vmatpush1.msra.mxu0 0.0
  %779 = vmatprep.subr.mxu0 0.0
  %780 = vmatpush1.msra.mxu0 0.0
  %781 = vmatprep.subr.mxu0 0.0
  %782 = vmatpush1.msra.mxu0 0.0
  %783 = vmatprep.subr.mxu0 0.0
  %784 = vmatpush1.msra.mxu0 0.0
  %785 = vmatprep.subr.mxu0 0.0
  %786 = vmatpush1.msra.mxu0 0.0
  %787 = vmatprep.subr.mxu0 0.0
  %788 = vmatpush1.msra.mxu0 0.0
  %789 = vmatprep.subr.mxu0 0.0
  %790 = vmatpush1.msra.mxu0 0.0
  %791 = vmatprep.subr.mxu0 0.0
  %792 = vmatpush1.msra.mxu0 0.0
  %793 = vmatprep.subr.mxu0 0.0
  %794 = vmatpush1.msra.mxu0 0.0
  %795 = vmatprep.subr.mxu0 0.0
  %796 = vmatpush1.msra.mxu0 0.0
  %797 = vmatprep.subr.mxu0 0.0
  %798 = vmatpush1.msra.mxu0 0.0
  %799 = vmatprep.subr.mxu0 0.0
  %800 = vmatpush1.msra.mxu0 0.0
  %801 = vmatprep.subr.mxu0 0.0
  %802 = vmatpush1.msra.mxu0 0.0
  %803 = vmatprep.subr.mxu0 0.0
  %804 = vmatpush1.msra.mxu0 0.0
  %805 = vmatprep.subr.mxu0 0.0
  %806 = vmatpush1.msra.mxu0 0.0
  %807 = vmatprep.subr.mxu0 0.0
  %808 = vmatpush1.msra.mxu0 0.0
  %809 = vmatprep.subr.mxu0 0.0
  %810 = vmatpush1.msra.mxu0 0.0
  %811 = vmatprep.subr.mxu0 0.0
  %812 = vmatpush1.msra.mxu0 0.0
  %813 = vmatprep.subr.mxu0 0.0
  %814 = vmatpush1.msra.mxu0 0.0
  %815 = vmatprep.subr.mxu0 0.0
  %816 = vmatpush1.msra.mxu0 0.0
  %817 = vmatprep.subr.mxu0 0.0
  %818 = vmatpush1.msra.mxu0 0.0
  %819 = vmatprep.subr.mxu0 0.0
  %820 = vmatpush1.msra.mxu0 0.0
  %821 = vmatprep.subr.mxu0 0.0
  %822 = vmatpush1.msra.mxu0 0.0
  %823 = vmatprep.subr.mxu0 0.0
  %824 = vmatpush1.msra.mxu0 0.0
  %825 = vmatprep.subr.mxu0 0.0
  %826 = vmatpush1.msra.mxu0 0.0
  %827 = vmatprep.subr.mxu0 0.0
  %828 = vmatpush1.msra.mxu0 0.0
  %829 = vmatprep.subr.mxu0 0.0
  %830 = vmatpush1.msra.mxu0 0.0
  %831 = vmatprep.mubr.f32.mxu0 0.0
  %832 = vmatmul.mubr.f32.gmra.mrb[0].mxu0 %v765
  %v833 = vpop.f32.mrb[0].mxu0
  %v834 = vadd.f32 0.0, %v833
  %v835 = vpop.f32.mrb[0].mxu0
  %836 = vdwg.mxu0
  %837 = vrot.lane.b32.xlu0 %v230, 48
  %v838 = vpop.permute.xlu0 %837
  %v841 = vsel %vm404, %v760, 0
  %843 = vmatprep.subr.mxu0 0.0
  %844 = vmatpush1.msra.mxu0 %v838
  %845 = vmatprep.subr.mxu0 0.0
  %846 = vmatpush1.msra.mxu0 0.0
  %847 = vmatprep.subr.mxu0 0.0
  %848 = vmatpush1.msra.mxu0 0.0
  %849 = vmatprep.subr.mxu0 0.0
  %850 = vmatpush1.msra.mxu0 0.0
  %851 = vmatprep.subr.mxu0 0.0
  %852 = vmatpush1.msra.mxu0 0.0
  %853 = vmatprep.subr.mxu0 0.0
  %854 = vmatpush1.msra.mxu0 0.0
  %855 = vmatprep.subr.mxu0 0.0
  %856 = vmatpush1.msra.mxu0 0.0
  %857 = vmatprep.subr.mxu0 0.0
  %858 = vmatpush1.msra.mxu0 0.0
  %859 = vmatprep.subr.mxu0 0.0
  %860 = vmatpush1.msra.mxu0 0.0
  %861 = vmatprep.subr.mxu0 0.0
  %862 = vmatpush1.msra.mxu0 0.0
  %863 = vmatprep.subr.mxu0 0.0
  %864 = vmatpush1.msra.mxu0 0.0
  %865 = vmatprep.subr.mxu0 0.0
  %866 = vmatpush1.msra.mxu0 0.0
  %867 = vmatprep.subr.mxu0 0.0
  %868 = vmatpush1.msra.mxu0 0.0
  %869 = vmatprep.subr.mxu0 0.0
  %870 = vmatpush1.msra.mxu0 0.0
  %871 = vmatprep.subr.mxu0 0.0
  %872 = vmatpush1.msra.mxu0 0.0
  %873 = vmatprep.subr.mxu0 0.0
  %874 = vmatpush1.msra.mxu0 0.0
  %875 = vmatprep.subr.mxu0 0.0
  %876 = vmatpush1.msra.mxu0 0.0
  %877 = vmatprep.subr.mxu0 0.0
  %878 = vmatpush1.msra.mxu0 0.0
  %879 = vmatprep.subr.mxu0 0.0
  %880 = vmatpush1.msra.mxu0 0.0
  %881 = vmatprep.subr.mxu0 0.0
  %882 = vmatpush1.msra.mxu0 0.0
  %883 = vmatprep.subr.mxu0 0.0
  %884 = vmatpush1.msra.mxu0 0.0
  %885 = vmatprep.subr.mxu0 0.0
  %886 = vmatpush1.msra.mxu0 0.0
  %887 = vmatprep.subr.mxu0 0.0
  %888 = vmatpush1.msra.mxu0 0.0
  %889 = vmatprep.subr.mxu0 0.0
  %890 = vmatpush1.msra.mxu0 0.0
  %891 = vmatprep.subr.mxu0 0.0
  %892 = vmatpush1.msra.mxu0 0.0
  %893 = vmatprep.subr.mxu0 0.0
  %894 = vmatpush1.msra.mxu0 0.0
  %895 = vmatprep.subr.mxu0 0.0
  %896 = vmatpush1.msra.mxu0 0.0
  %897 = vmatprep.subr.mxu0 0.0
  %898 = vmatpush1.msra.mxu0 0.0
  %899 = vmatprep.subr.mxu0 0.0
  %900 = vmatpush1.msra.mxu0 0.0
  %901 = vmatprep.subr.mxu0 0.0
  %902 = vmatpush1.msra.mxu0 0.0
  %903 = vmatprep.subr.mxu0 0.0
  %904 = vmatpush1.msra.mxu0 0.0
  %905 = vmatprep.subr.mxu0 0.0
  %906 = vmatpush1.msra.mxu0 0.0
  %907 = vmatprep.mubr.f32.mxu0 0.0
  %908 = vmatmul.mubr.f32.gmra.mrb[0].mxu0 %v841
  %v909 = vpop.f32.mrb[0].mxu0
  %v910 = vadd.f32 0.0, %v909
  %v911 = vpop.f32.mrb[0].mxu0
  %912 = vdwg.mxu0
  %915 = vrot.lane.b32.xlu0 %v834, 16
  %v916 = vpop.permute.xlu0 %915
  %917 = vrot.lane.b32.xlu0 %v910, 16
  %v918 = vpop.permute.xlu0 %917
  %v921 = vsel %vm236, %v500, %v916
  %v922 = vsel %vm236, %v576, %v918
  %v923 = vld [vmem:[%s8] sm:$0xff]
  %v924 = vld [vmem:[%s8 + $0x8] sm:$0xff]
  %v925 = vld [vmem:[%s8 + $0x10] sm:$0xff]
  %v926 = vld [vmem:[%s8 + $0x18] sm:$0xff]
  %v927 = vld [vmem:[%s9] sm:$0x1]
  %v929 = vlaneseq
  %v930 = vshrl.u32 %v929, 7
  %v931 = vsub.s32 0, %v930
  %v932 = vrot.slane %v927, %v931
  %v935 = vsel %vm95, %v921, 0
  %v938 = vsel %vm95, %v922, 0
  %940 = vmatprep.subr.mxu0 0.0
  %941 = vmatpush1.msra.mxu0 %v923
  %942 = vmatprep.subr.mxu0 0.0
  %943 = vmatpush1.msra.mxu0 %v924
  %944 = vmatprep.subr.mxu0 0.0
  %945 = vmatpush1.msra.mxu0 %v925
  %946 = vmatprep.subr.mxu0 0.0
  %947 = vmatpush1.msra.mxu0 %v926
  %948 = vmatprep.subr.mxu0 0.0
  %949 = vmatpush1.msra.mxu0 0.0
  %950 = vmatprep.subr.mxu0 0.0
  %951 = vmatpush1.msra.mxu0 0.0
  %952 = vmatprep.subr.mxu0 0.0
  %953 = vmatpush1.msra.mxu0 0.0
  %954 = vmatprep.subr.mxu0 0.0
  %955 = vmatpush1.msra.mxu0 0.0
  %956 = vmatprep.subr.mxu0 0.0
  %957 = vmatpush1.msra.mxu0 0.0
  %958 = vmatprep.subr.mxu0 0.0
  %959 = vmatpush1.msra.mxu0 0.0
  %960 = vmatprep.subr.mxu0 0.0
  %961 = vmatpush1.msra.mxu0 0.0
  %962 = vmatprep.subr.mxu0 0.0
  %963 = vmatpush1.msra.mxu0 0.0
  %964 = vmatprep.subr.mxu0 0.0
  %965 = vmatpush1.msra.mxu0 0.0
  %966 = vmatprep.subr.mxu0 0.0
  %967 = vmatpush1.msra.mxu0 0.0
  %968 = vmatprep.subr.mxu0 0.0
  %969 = vmatpush1.msra.mxu0 0.0
  %970 = vmatprep.subr.mxu0 0.0
  %971 = vmatpush1.msra.mxu0 0.0
  %972 = vmatprep.subr.mxu0 0.0
  %973 = vmatpush1.msra.mxu0 0.0
  %974 = vmatprep.subr.mxu0 0.0
  %975 = vmatpush1.msra.mxu0 0.0
  %976 = vmatprep.subr.mxu0 0.0
  %977 = vmatpush1.msra.mxu0 0.0
  %978 = vmatprep.subr.mxu0 0.0
  %979 = vmatpush1.msra.mxu0 0.0
  %980 = vmatprep.subr.mxu0 0.0
  %981 = vmatpush1.msra.mxu0 0.0
  %982 = vmatprep.subr.mxu0 0.0
  %983 = vmatpush1.msra.mxu0 0.0
  %984 = vmatprep.subr.mxu0 0.0
  %985 = vmatpush1.msra.mxu0 0.0
  %986 = vmatprep.subr.mxu0 0.0
  %987 = vmatpush1.msra.mxu0 0.0
  %988 = vmatprep.subr.mxu0 0.0
  %989 = vmatpush1.msra.mxu0 0.0
  %990 = vmatprep.subr.mxu0 0.0
  %991 = vmatpush1.msra.mxu0 0.0
  %992 = vmatprep.subr.mxu0 0.0
  %993 = vmatpush1.msra.mxu0 0.0
  %994 = vmatprep.subr.mxu0 0.0
  %995 = vmatpush1.msra.mxu0 0.0
  %996 = vmatprep.subr.mxu0 0.0
  %997 = vmatpush1.msra.mxu0 0.0
  %998 = vmatprep.subr.mxu0 0.0
  %999 = vmatpush1.msra.mxu0 0.0
  %1000 = vmatprep.subr.mxu0 0.0
  %1001 = vmatpush1.msra.mxu0 0.0
  %1002 = vmatprep.subr.mxu0 0.0
  %1003 = vmatpush1.msra.mxu0 0.0
  %1004 = vmatprep.mubr.f32.mxu0 0.0
  %1005 = vmatmul.mubr.f32.gmra.mrb[0].mxu0 %v935
  %v1006 = vpop.f32.mrb[0].mxu0
  %v1007 = vadd.f32 %v932, %v1006
  %v1008 = vpop.f32.mrb[0].mxu0
  %1009 = vmatprep.mubr.f32.mxu0 0.0
  %1010 = vmatmul.mubr.f32.gmra.mrb[0].mxu0 %v938
  %v1011 = vpop.f32.mrb[0].mxu0
  %v1012 = vadd.f32 %v932, %v1011
  %v1013 = vpop.f32.mrb[0].mxu0
  %1014 = vdwg.mxu0
  %v1015 = vadd.f32 %v1007, %v137
  %v1016 = vadd.f32 %v1012, %v138
  %v1017 = vld [vmem:[%s10] sm:$0x1]
  %v1018 = vld [vmem:[%s11] sm:$0x1]
  %v1019 = vsel %vm95, %v1015, 0.0
  %1020 = vadd.xlane.f32.xlu0 %v1019
  %v1021 = vpop.xlane.xlu0 %1020
  %v1022 = vsel %vm95, %v1016, 0.0
  %1023 = vadd.xlane.f32.xlu0 %v1022
  %v1024 = vpop.xlane.xlu0 %1023
  %v1025 = vmul.f32 %v1021, %v102
  %v1026 = vmul.f32 %v1024, %v102
  %v1027 = vsub.f32 %v1015, %v1025
  %v1028 = vsub.f32 %v1016, %v1026
  %v1029 = vmul.f32 %v1027, %v1027
  %v1030 = vmul.f32 %v1028, %v1028
  %v1031 = vsel %vm95, %v1029, 0.0
  %1032 = vadd.xlane.f32.xlu0 %v1031
  %v1033 = vpop.xlane.xlu0 %1032
  %v1034 = vsel %vm95, %v1030, 0.0
  %1035 = vadd.xlane.f32.xlu0 %v1034
  %v1036 = vpop.xlane.xlu0 %1035
  %v1037 = vmul.f32 %v1033, %v102
  %v1038 = vmul.f32 %v1036, %v102
  %v1039 = vadd.f32 %v1037, 1e-12
  %v1040 = vadd.f32 %v1038, 1e-12
  %v1041 = vrsqrt.pop %v1039
  %v1042 = vrsqrt.pop %v1040
  %v1043 = vmul.f32 %v1027, %v1041
  %v1044 = vmul.f32 %v1028, %v1042
  %v1046 = vlaneseq
  %v1047 = vshrl.u32 %v1046, 7
  %v1048 = vsub.s32 0, %v1047
  %v1049 = vrot.slane %v1017, %v1048
  %v1051 = vmul.f32 %v1043, %v1049
  %v1052 = vmul.f32 %v1044, %v1049
  %v1054 = vlaneseq
  %v1055 = vshrl.u32 %v1054, 7
  %v1056 = vsub.s32 0, %v1055
  %v1057 = vrot.slane %v1018, %v1056
  %v1059 = vadd.f32 %v1051, %v1057
  %v1060 = vadd.f32 %v1052, %v1057
  %v1061 = vld [vmem:[%s12] sm:$0xff]
  %v1062 = vld [vmem:[%s12 + $0x8] sm:$0xff]
  %v1063 = vld [vmem:[%s12 + $0x10] sm:$0xff]
  %v1064 = vld [vmem:[%s12 + $0x18] sm:$0xff]
  %v1065 = vld [vmem:[%s13] sm:$0x1]
  %v1067 = vlaneseq
  %v1068 = vshrl.u32 %v1067, 7
  %v1069 = vsub.s32 0, %v1068
  %v1070 = vrot.slane %v1065, %v1069
  %v1073 = vsel %vm95, %v1059, 0
  %v1076 = vsel %vm95, %v1060, 0
  %1078 = vmatprep.subr.mxu0 0.0
  %1079 = vmatpush1.msra.mxu0 %v1061
  %1080 = vmatprep.subr.mxu0 0.0
  %1081 = vmatpush1.msra.mxu0 %v1062
  %1082 = vmatprep.subr.mxu0 0.0
  %1083 = vmatpush1.msra.mxu0 %v1063
  %1084 = vmatprep.subr.mxu0 0.0
  %1085 = vmatpush1.msra.mxu0 %v1064
  %1086 = vmatprep.subr.mxu0 0.0
  %1087 = vmatpush1.msra.mxu0 0.0
  %1088 = vmatprep.subr.mxu0 0.0
  %1089 = vmatpush1.msra.mxu0 0.0
  %1090 = vmatprep.subr.mxu0 0.0
  %1091 = vmatpush1.msra.mxu0 0.0
  %1092 = vmatprep.subr.mxu0 0.0
  %1093 = vmatpush1.msra.mxu0 0.0
  %1094 = vmatprep.subr.mxu0 0.0
  %1095 = vmatpush1.msra.mxu0 0.0
  %1096 = vmatprep.subr.mxu0 0.0
  %1097 = vmatpush1.msra.mxu0 0.0
  %1098 = vmatprep.subr.mxu0 0.0
  %1099 = vmatpush1.msra.mxu0 0.0
  %1100 = vmatprep.subr.mxu0 0.0
  %1101 = vmatpush1.msra.mxu0 0.0
  %1102 = vmatprep.subr.mxu0 0.0
  %1103 = vmatpush1.msra.mxu0 0.0
  %1104 = vmatprep.subr.mxu0 0.0
  %1105 = vmatpush1.msra.mxu0 0.0
  %1106 = vmatprep.subr.mxu0 0.0
  %1107 = vmatpush1.msra.mxu0 0.0
  %1108 = vmatprep.subr.mxu0 0.0
  %1109 = vmatpush1.msra.mxu0 0.0
  %1110 = vmatprep.subr.mxu0 0.0
  %1111 = vmatpush1.msra.mxu0 0.0
  %1112 = vmatprep.subr.mxu0 0.0
  %1113 = vmatpush1.msra.mxu0 0.0
  %1114 = vmatprep.subr.mxu0 0.0
  %1115 = vmatpush1.msra.mxu0 0.0
  %1116 = vmatprep.subr.mxu0 0.0
  %1117 = vmatpush1.msra.mxu0 0.0
  %1118 = vmatprep.subr.mxu0 0.0
  %1119 = vmatpush1.msra.mxu0 0.0
  %1120 = vmatprep.subr.mxu0 0.0
  %1121 = vmatpush1.msra.mxu0 0.0
  %1122 = vmatprep.subr.mxu0 0.0
  %1123 = vmatpush1.msra.mxu0 0.0
  %1124 = vmatprep.subr.mxu0 0.0
  %1125 = vmatpush1.msra.mxu0 0.0
  %1126 = vmatprep.subr.mxu0 0.0
  %1127 = vmatpush1.msra.mxu0 0.0
  %1128 = vmatprep.subr.mxu0 0.0
  %1129 = vmatpush1.msra.mxu0 0.0
  %1130 = vmatprep.subr.mxu0 0.0
  %1131 = vmatpush1.msra.mxu0 0.0
  %1132 = vmatprep.subr.mxu0 0.0
  %1133 = vmatpush1.msra.mxu0 0.0
  %1134 = vmatprep.subr.mxu0 0.0
  %1135 = vmatpush1.msra.mxu0 0.0
  %1136 = vmatprep.subr.mxu0 0.0
  %1137 = vmatpush1.msra.mxu0 0.0
  %1138 = vmatprep.subr.mxu0 0.0
  %1139 = vmatpush1.msra.mxu0 0.0
  %1140 = vmatprep.subr.mxu0 0.0
  %1141 = vmatpush1.msra.mxu0 0.0
  %1142 = vmatprep.mubr.f32.mxu0 0.0
  %1143 = vmatmul.mubr.f32.gmra.mrb[0].mxu0 %v1073
  %v1144 = vpop.f32.mrb[0].mxu0
  %v1145 = vadd.f32 %v1070, %v1144
  %v1146 = vpop.f32.mrb[0].mxu0
  %1147 = vmatprep.mubr.f32.mxu0 0.0
  %1148 = vmatmul.mubr.f32.gmra.mrb[0].mxu0 %v1076
  %v1149 = vpop.f32.mrb[0].mxu0
  %v1150 = vadd.f32 %v1070, %v1149
  %v1151 = vpop.f32.mrb[0].mxu0
  %1152 = vdwg.mxu0
  %v1153 = vmul.f32 %v1145, %v1145
  %v1154 = vmul.f32 %v1150, %v1150
  %v1155 = vmul.f32 %v1145, %v1153
  %v1156 = vmul.f32 %v1150, %v1154
  %v1157 = vmul.f32 %v1155, 0.044715
  %v1158 = vmul.f32 %v1156, 0.044715
  %v1159 = vadd.f32 %v1145, %v1157
  %v1160 = vadd.f32 %v1150, %v1158
  %v1161 = vmul.f32 %v1159, 0.7978846
  %v1162 = vmul.f32 %v1160, 0.7978846
  %v1163 = vtanh.pop %v1161
  %v1164 = vtanh.pop %v1162
  %v1165 = vadd.f32 %v1163, 1.0
  %v1166 = vadd.f32 %v1164, 1.0
  %v1167 = vmul.f32 %v1165, 0.5
  %v1168 = vmul.f32 %v1166, 0.5
  %v1169 = vmul.f32 %v1145, %v1167
  %v1170 = vmul.f32 %v1150, %v1168
  %v1171 = vld [vmem:[%s14] sm:$0xff]
  %v1172 = vld [vmem:[%s14 + $0x8] sm:$0xff]
  %v1173 = vld [vmem:[%s14 + $0x10] sm:$0xff]
  %v1174 = vld [vmem:[%s14 + $0x18] sm:$0xff]
  %v1175 = vld [vmem:[%s14 + $0x20] sm:$0xff]
  %v1176 = vld [vmem:[%s14 + $0x28] sm:$0xff]
  %v1177 = vld [vmem:[%s14 + $0x30] sm:$0xff]
  %v1178 = vld [vmem:[%s14 + $0x38] sm:$0xff]
  %v1179 = vld [vmem:[%s15] sm:$0x1]
  %v1181 = vlaneseq
  %v1182 = vshrl.u32 %v1181, 7
  %v1183 = vsub.s32 0, %v1182
  %v1184 = vrot.slane %v1179, %v1183
  %vm1186 = vcmask 523264
  %v1188 = vsel %vm1186, %v1169, 0
  %v1191 = vsel %vm1186, %v1170, 0
  %1193 = vmatprep.subr.mxu0 0.0
  %1194 = vmatpush1.msra.mxu0 %v1171
  %1195 = vmatprep.subr.mxu0 0.0
  %1196 = vmatpush1.msra.mxu0 %v1172
  %1197 = vmatprep.subr.mxu0 0.0
  %1198 = vmatpush1.msra.mxu0 %v1173
  %1199 = vmatprep.subr.mxu0 0.0
  %1200 = vmatpush1.msra.mxu0 %v1174
  %1201 = vmatprep.subr.mxu0 0.0
  %1202 = vmatpush1.msra.mxu0 %v1175
  %1203 = vmatprep.subr.mxu0 0.0
  %1204 = vmatpush1.msra.mxu0 %v1176
  %1205 = vmatprep.subr.mxu0 0.0
  %1206 = vmatpush1.msra.mxu0 %v1177
  %1207 = vmatprep.subr.mxu0 0.0
  %1208 = vmatpush1.msra.mxu0 %v1178
  %1209 = vmatprep.subr.mxu0 0.0
  %1210 = vmatpush1.msra.mxu0 0.0
  %1211 = vmatprep.subr.mxu0 0.0
  %1212 = vmatpush1.msra.mxu0 0.0
  %1213 = vmatprep.subr.mxu0 0.0
  %1214 = vmatpush1.msra.mxu0 0.0
  %1215 = vmatprep.subr.mxu0 0.0
  %1216 = vmatpush1.msra.mxu0 0.0
  %1217 = vmatprep.subr.mxu0 0.0
  %1218 = vmatpush1.msra.mxu0 0.0
  %1219 = vmatprep.subr.mxu0 0.0
  %1220 = vmatpush1.msra.mxu0 0.0
  %1221 = vmatprep.subr.mxu0 0.0
  %1222 = vmatpush1.msra.mxu0 0.0
  %1223 = vmatprep.subr.mxu0 0.0
  %1224 = vmatpush1.msra.mxu0 0.0
  %1225 = vmatprep.subr.mxu0 0.0
  %1226 = vmatpush1.msra.mxu0 0.0
  %1227 = vmatprep.subr.mxu0 0.0
  %1228 = vmatpush1.msra.mxu0 0.0
  %1229 = vmatprep.subr.mxu0 0.0
  %1230 = vmatpush1.msra.mxu0 0.0
  %1231 = vmatprep.subr.mxu0 0.0
  %1232 = vmatpush1.msra.mxu0 0.0
  %1233 = vmatprep.subr.mxu0 0.0
  %1234 = vmatpush1.msra.mxu0 0.0
  %1235 = vmatprep.subr.mxu0 0.0
  %1236 = vmatpush1.msra.mxu0 0.0
  %1237 = vmatprep.subr.mxu0 0.0
  %1238 = vmatpush1.msra.mxu0 0.0
  %1239 = vmatprep.subr.mxu0 0.0
  %1240 = vmatpush1.msra.mxu0 0.0
  %1241 = vmatprep.subr.mxu0 0.0
  %1242 = vmatpush1.msra.mxu0 0.0
  %1243 = vmatprep.subr.mxu0 0.0
  %1244 = vmatpush1.msra.mxu0 0.0
  %1245 = vmatprep.subr.mxu0 0.0
  %1246 = vmatpush1.msra.mxu0 0.0
  %1247 = vmatprep.subr.mxu0 0.0
  %1248 = vmatpush1.msra.mxu0 0.0
  %1249 = vmatprep.subr.mxu0 0.0
  %1250 = vmatpush1.msra.mxu0 0.0
  %1251 = vmatprep.subr.mxu0 0.0
  %1252 = vmatpush1.msra.mxu0 0.0
  %1253 = vmatprep.subr.mxu0 0.0
  %1254 = vmatpush1.msra.mxu0 0.0
  %1255 = vmatprep.subr.mxu0 0.0
  %1256 = vmatpush1.msra.mxu0 0.0
  %1257 = vmatprep.mubr.f32.mxu0 0.0
  %1258 = vmatmul.mubr.f32.gmra.mrb[0].mxu0 %v1188
  %v1259 = vpop.f32.mrb[0].mxu0
  %v1260 = vadd.f32 %v1184, %v1259
  %v1261 = vpop.f32.mrb[0].mxu0
  %1262 = vmatprep.mubr.f32.mxu0 0.0
  %1263 = vmatmul.mubr.f32.gmra.mrb[0].mxu0 %v1191
  %v1264 = vpop.f32.mrb[0].mxu0
  %v1265 = vadd.f32 %v1184, %v1264
  %v1266 = vpop.f32.mrb[0].mxu0
  %1267 = vdwg.mxu0
  %v1268 = vadd.f32 %v1260, %v1059
  %v1269 = vadd.f32 %v1265, %v1060
  %v1270 = vld [vmem:[%s16] sm:$0x1]
  %v1271 = vld [vmem:[%s17] sm:$0x1]
  %v1272 = vsel %vm95, %v1268, 0.0
  %1273 = vadd.xlane.f32.xlu0 %v1272
  %v1274 = vpop.xlane.xlu0 %1273
  %v1275 = vsel %vm95, %v1269, 0.0
  %1276 = vadd.xlane.f32.xlu0 %v1275
  %v1277 = vpop.xlane.xlu0 %1276
  %v1278 = vmul.f32 %v1274, %v102
  %v1279 = vmul.f32 %v1277, %v102
  %v1280 = vsub.f32 %v1268, %v1278
  %v1281 = vsub.f32 %v1269, %v1279
  %v1282 = vmul.f32 %v1280, %v1280
  %v1283 = vmul.f32 %v1281, %v1281
  %v1284 = vsel %vm95, %v1282, 0.0
  %1285 = vadd.xlane.f32.xlu0 %v1284
  %v1286 = vpop.xlane.xlu0 %1285
  %v1287 = vsel %vm95, %v1283, 0.0
  %1288 = vadd.xlane.f32.xlu0 %v1287
  %v1289 = vpop.xlane.xlu0 %1288
  %v1290 = vmul.f32 %v1286, %v102
  %v1291 = vmul.f32 %v1289, %v102
  %v1292 = vadd.f32 %v1290, 1e-12
  %v1293 = vadd.f32 %v1291, 1e-12
  %v1294 = vrsqrt.pop %v1292
  %v1295 = vrsqrt.pop %v1293
  %v1296 = vmul.f32 %v1280, %v1294
  %v1297 = vmul.f32 %v1281, %v1295
  %v1299 = vlaneseq
  %v1300 = vshrl.u32 %v1299, 7
  %v1301 = vsub.s32 0, %v1300
  %v1302 = vrot.slane %v1270, %v1301
  %v1304 = vmul.f32 %v1296, %v1302
  %v1305 = vmul.f32 %v1297, %v1302
  %v1307 = vlaneseq
  %v1308 = vshrl.u32 %v1307, 7
  %v1309 = vsub.s32 0, %v1308
  %v1310 = vrot.slane %v1271, %v1309
  %v1312 = vadd.f32 %v1304, %v1310
  %v1313 = vadd.f32 %v1305, %v1310
  %s1314 = scalar_lea.vmem %s6, 32
  %v1315 = vld [vmem:[%s1314] sm:$0xff]
  %v1316 = vld [vmem:[%s1314 + $0x8] sm:$0xff]
  %v1317 = vld [vmem:[%s1314 + $0x10] sm:$0xff]
  %v1318 = vld [vmem:[%s1314 + $0x18] sm:$0xff]
  %s1319 = scalar_lea.vmem %s7, 1
  %v1320 = vld [vmem:[%s1319] sm:$0x1]
  %v1322 = vlaneseq
  %v1323 = vshrl.u32 %v1322, 7
  %v1324 = vsub.s32 0, %v1323
  %v1325 = vrot.slane %v1320, %v1324
  %v1328 = vsel %vm95, %v1312, 0
  %v1331 = vsel %vm95, %v1313, 0
  %1333 = vmatprep.subr.mxu0 0.0
  %1334 = vmatpush1.msra.mxu0 %v1315
  %1335 = vmatprep.subr.mxu0 0.0
  %1336 = vmatpush1.msra.mxu0 %v1316
  %1337 = vmatprep.subr.mxu0 0.0
  %1338 = vmatpush1.msra.mxu0 %v1317
  %1339 = vmatprep.subr.mxu0 0.0
  %1340 = vmatpush1.msra.mxu0 %v1318
  %1341 = vmatprep.subr.mxu0 0.0
  %1342 = vmatpush1.msra.mxu0 0.0
  %1343 = vmatprep.subr.mxu0 0.0
  %1344 = vmatpush1.msra.mxu0 0.0
  %1345 = vmatprep.subr.mxu0 0.0
  %1346 = vmatpush1.msra.mxu0 0.0
  %1347 = vmatprep.subr.mxu0 0.0
  %1348 = vmatpush1.msra.mxu0 0.0
  %1349 = vmatprep.subr.mxu0 0.0
  %1350 = vmatpush1.msra.mxu0 0.0
  %1351 = vmatprep.subr.mxu0 0.0
  %1352 = vmatpush1.msra.mxu0 0.0
  %1353 = vmatprep.subr.mxu0 0.0
  %1354 = vmatpush1.msra.mxu0 0.0
  %1355 = vmatprep.subr.mxu0 0.0
  %1356 = vmatpush1.msra.mxu0 0.0
  %1357 = vmatprep.subr.mxu0 0.0
  %1358 = vmatpush1.msra.mxu0 0.0
  %1359 = vmatprep.subr.mxu0 0.0
  %1360 = vmatpush1.msra.mxu0 0.0
  %1361 = vmatprep.subr.mxu0 0.0
  %1362 = vmatpush1.msra.mxu0 0.0
  %1363 = vmatprep.subr.mxu0 0.0
  %1364 = vmatpush1.msra.mxu0 0.0
  %1365 = vmatprep.subr.mxu0 0.0
  %1366 = vmatpush1.msra.mxu0 0.0
  %1367 = vmatprep.subr.mxu0 0.0
  %1368 = vmatpush1.msra.mxu0 0.0
  %1369 = vmatprep.subr.mxu0 0.0
  %1370 = vmatpush1.msra.mxu0 0.0
  %1371 = vmatprep.subr.mxu0 0.0
  %1372 = vmatpush1.msra.mxu0 0.0
  %1373 = vmatprep.subr.mxu0 0.0
  %1374 = vmatpush1.msra.mxu0 0.0
  %1375 = vmatprep.subr.mxu0 0.0
  %1376 = vmatpush1.msra.mxu0 0.0
  %1377 = vmatprep.subr.mxu0 0.0
  %1378 = vmatpush1.msra.mxu0 0.0
  %1379 = vmatprep.subr.mxu0 0.0
  %1380 = vmatpush1.msra.mxu0 0.0
  %1381 = vmatprep.subr.mxu0 0.0
  %1382 = vmatpush1.msra.mxu0 0.0
  %1383 = vmatprep.subr.mxu0 0.0
  %1384 = vmatpush1.msra.mxu0 0.0
  %1385 = vmatprep.subr.mxu0 0.0
  %1386 = vmatpush1.msra.mxu0 0.0
  %1387 = vmatprep.subr.mxu0 0.0
  %1388 = vmatpush1.msra.mxu0 0.0
  %1389 = vmatprep.subr.mxu0 0.0
  %1390 = vmatpush1.msra.mxu0 0.0
  %1391 = vmatprep.subr.mxu0 0.0
  %1392 = vmatpush1.msra.mxu0 0.0
  %1393 = vmatprep.subr.mxu0 0.0
  %1394 = vmatpush1.msra.mxu0 0.0
  %1395 = vmatprep.subr.mxu0 0.0
  %1396 = vmatpush1.msra.mxu0 0.0
  %1397 = vmatprep.mubr.f32.mxu0 0.0
  %1398 = vmatmul.mubr.f32.gmra.mrb[0].mxu0 %v1328
  %v1399 = vpop.f32.mrb[0].mxu0
  %v1400 = vadd.f32 %v1325, %v1399
  %v1401 = vpop.f32.mrb[0].mxu0
  %1402 = vmatprep.mubr.f32.mxu0 0.0
  %1403 = vmatmul.mubr.f32.gmra.mrb[0].mxu0 %v1331
  %v1404 = vpop.f32.mrb[0].mxu0
  %v1405 = vadd.f32 %v1325, %v1404
  %v1406 = vpop.f32.mrb[0].mxu0
  %1407 = vdwg.mxu0
  %1409 = vrot.lane.b32.xlu0 %v1400, 96
  %v1410 = vpop.permute.xlu0 %1409
  %v1411 = vsel %vm236, %v1400, 0
  %v1413 = vsel %vm236, %v1410, 0
  %1415 = vmatprep.subr.mxu0 0.0
  %1416 = vmatpush1.xpose.msra.mxu0 %v1413
  %1417 = vmatprep.subr.mxu0 0.0
  %1418 = vmatpush1.xpose.msra.mxu0 0.0
  %1419 = vmatprep.subr.mxu0 0.0
  %1420 = vmatpush1.xpose.msra.mxu0 0.0
  %1421 = vmatprep.subr.mxu0 0.0
  %1422 = vmatpush1.xpose.msra.mxu0 0.0
  %1423 = vmatprep.subr.mxu0 0.0
  %1424 = vmatpush1.xpose.msra.mxu0 0.0
  %1425 = vmatprep.subr.mxu0 0.0
  %1426 = vmatpush1.xpose.msra.mxu0 0.0
  %1427 = vmatprep.subr.mxu0 0.0
  %1428 = vmatpush1.xpose.msra.mxu0 0.0
  %1429 = vmatprep.subr.mxu0 0.0
  %1430 = vmatpush1.xpose.msra.mxu0 0.0
  %1431 = vmatprep.subr.mxu0 0.0
  %1432 = vmatpush1.xpose.msra.mxu0 0.0
  %1433 = vmatprep.subr.mxu0 0.0
  %1434 = vmatpush1.xpose.msra.mxu0 0.0
  %1435 = vmatprep.subr.mxu0 0.0
  %1436 = vmatpush1.xpose.msra.mxu0 0.0
  %1437 = vmatprep.subr.mxu0 0.0
  %1438 = vmatpush1.xpose.msra.mxu0 0.0
  %1439 = vmatprep.subr.mxu0 0.0
  %1440 = vmatpush1.xpose.msra.mxu0 0.0
  %1441 = vmatprep.subr.mxu0 0.0
  %1442 = vmatpush1.xpose.msra.mxu0 0.0
  %1443 = vmatprep.subr.mxu0 0.0
  %1444 = vmatpush1.xpose.msra.mxu0 0.0
  %1445 = vmatprep.subr.mxu0 0.0
  %1446 = vmatpush1.xpose.msra.mxu0 0.0
  %1447 = vmatprep.subr.mxu0 0.0
  %1448 = vmatpush1.xpose.msra.mxu0 0.0
  %1449 = vmatprep.subr.mxu0 0.0
  %1450 = vmatpush1.xpose.msra.mxu0 0.0
  %1451 = vmatprep.subr.mxu0 0.0
  %1452 = vmatpush1.xpose.msra.mxu0 0.0
  %1453 = vmatprep.subr.mxu0 0.0
  %1454 = vmatpush1.xpose.msra.mxu0 0.0
  %1455 = vmatprep.subr.mxu0 0.0
  %1456 = vmatpush1.xpose.msra.mxu0 0.0
  %1457 = vmatprep.subr.mxu0 0.0
  %1458 = vmatpush1.xpose.msra.mxu0 0.0
  %1459 = vmatprep.subr.mxu0 0.0
  %1460 = vmatpush1.xpose.msra.mxu0 0.0
  %1461 = vmatprep.subr.mxu0 0.0
  %1462 = vmatpush1.xpose.msra.mxu0 0.0
  %1463 = vmatprep.subr.mxu0 0.0
  %1464 = vmatpush1.xpose.msra.mxu0 0.0
  %1465 = vmatprep.subr.mxu0 0.0
  %1466 = vmatpush1.xpose.msra.mxu0 0.0
  %1467 = vmatprep.subr.mxu0 0.0
  %1468 = vmatpush1.xpose.msra.mxu0 0.0
  %1469 = vmatprep.subr.mxu0 0.0
  %1470 = vmatpush1.xpose.msra.mxu0 0.0
  %1471 = vmatprep.subr.mxu0 0.0
  %1472 = vmatpush1.xpose.msra.mxu0 0.0
  %1473 = vmatprep.subr.mxu0 0.0
  %1474 = vmatpush1.xpose.msra.mxu0 0.0
  %1475 = vmatprep.subr.mxu0 0.0
  %1476 = vmatpush1.xpose.msra.mxu0 0.0
  %1477 = vmatprep.subr.mxu0 0.0
  %1478 = vmatpush1.xpose.msra.mxu0 0.0
  %1479 = vmatprep.mubr.f32.mxu0 0.0
  %1480 = vmatmul.mubr.f32.gmra.mrb[0].mxu0 %v1411
  %v1481 = vpop.f32.mrb[0].mxu0
  %v1482 = vadd.f32 0.0, %v1481
  %v1483 = vpop.f32.mrb[0].mxu0
  %1484 = vdwg.mxu0
  %1486 = vrot.lane.b32.xlu0 %v1405, 96
  %v1487 = vpop.permute.xlu0 %1486
  %v1488 = vsel %vm236, %v1405, 0
  %v1490 = vsel %vm236, %v1487, 0
  %1492 = vmatprep.subr.mxu0 0.0
  %1493 = vmatpush1.xpose.msra.mxu0 %v1490
  %1494 = vmatprep.subr.mxu0 0.0
  %1495 = vmatpush1.xpose.msra.mxu0 0.0
  %1496 = vmatprep.subr.mxu0 0.0
  %1497 = vmatpush1.xpose.msra.mxu0 0.0
  %1498 = vmatprep.subr.mxu0 0.0
  %1499 = vmatpush1.xpose.msra.mxu0 0.0
  %1500 = vmatprep.subr.mxu0 0.0
  %1501 = vmatpush1.xpose.msra.mxu0 0.0
  %1502 = vmatprep.subr.mxu0 0.0
  %1503 = vmatpush1.xpose.msra.mxu0 0.0
  %1504 = vmatprep.subr.mxu0 0.0
  %1505 = vmatpush1.xpose.msra.mxu0 0.0
  %1506 = vmatprep.subr.mxu0 0.0
  %1507 = vmatpush1.xpose.msra.mxu0 0.0
  %1508 = vmatprep.subr.mxu0 0.0
  %1509 = vmatpush1.xpose.msra.mxu0 0.0
  %1510 = vmatprep.subr.mxu0 0.0
  %1511 = vmatpush1.xpose.msra.mxu0 0.0
  %1512 = vmatprep.subr.mxu0 0.0
  %1513 = vmatpush1.xpose.msra.mxu0 0.0
  %1514 = vmatprep.subr.mxu0 0.0
  %1515 = vmatpush1.xpose.msra.mxu0 0.0
  %1516 = vmatprep.subr.mxu0 0.0
  %1517 = vmatpush1.xpose.msra.mxu0 0.0
  %1518 = vmatprep.subr.mxu0 0.0
  %1519 = vmatpush1.xpose.msra.mxu0 0.0
  %1520 = vmatprep.subr.mxu0 0.0
  %1521 = vmatpush1.xpose.msra.mxu0 0.0
  %1522 = vmatprep.subr.mxu0 0.0
  %1523 = vmatpush1.xpose.msra.mxu0 0.0
  %1524 = vmatprep.subr.mxu0 0.0
  %1525 = vmatpush1.xpose.msra.mxu0 0.0
  %1526 = vmatprep.subr.mxu0 0.0
  %1527 = vmatpush1.xpose.msra.mxu0 0.0
  %1528 = vmatprep.subr.mxu0 0.0
  %1529 = vmatpush1.xpose.msra.mxu0 0.0
  %1530 = vmatprep.subr.mxu0 0.0
  %1531 = vmatpush1.xpose.msra.mxu0 0.0
  %1532 = vmatprep.subr.mxu0 0.0
  %1533 = vmatpush1.xpose.msra.mxu0 0.0
  %1534 = vmatprep.subr.mxu0 0.0
  %1535 = vmatpush1.xpose.msra.mxu0 0.0
  %1536 = vmatprep.subr.mxu0 0.0
  %1537 = vmatpush1.xpose.msra.mxu0 0.0
  %1538 = vmatprep.subr.mxu0 0.0
  %1539 = vmatpush1.xpose.msra.mxu0 0.0
  %1540 = vmatprep.subr.mxu0 0.0
  %1541 = vmatpush1.xpose.msra.mxu0 0.0
  %1542 = vmatprep.subr.mxu0 0.0
  %1543 = vmatpush1.xpose.msra.mxu0 0.0
  %1544 = vmatprep.subr.mxu0 0.0
  %1545 = vmatpush1.xpose.msra.mxu0 0.0
  %1546 = vmatprep.subr.mxu0 0.0
  %1547 = vmatpush1.xpose.msra.mxu0 0.0
  %1548 = vmatprep.subr.mxu0 0.0
  %1549 = vmatpush1.xpose.msra.mxu0 0.0
  %1550 = vmatprep.subr.mxu0 0.0
  %1551 = vmatpush1.xpose.msra.mxu0 0.0
  %1552 = vmatprep.subr.mxu0 0.0
  %1553 = vmatpush1.xpose.msra.mxu0 0.0
  %1554 = vmatprep.subr.mxu0 0.0
  %1555 = vmatpush1.xpose.msra.mxu0 0.0
  %1556 = vmatprep.mubr.f32.mxu0 0.0
  %1557 = vmatmul.mubr.f32.gmra.mrb[0].mxu0 %v1488
  %v1558 = vpop.f32.mrb[0].mxu0
  %v1559 = vadd.f32 0.0, %v1558
  %v1560 = vpop.f32.mrb[0].mxu0
  %1561 = vdwg.mxu0
  %v1562 = vmul.f32 %v1482, 0.25
  %v1563 = vmul.f32 %v1559, 0.25
  %v1564 = vadd.f32 %v1562, %v395
  %v1565 = vadd.f32 %v1563, %v399
  %v1566 = vsel %vm404, %v1564, -inf
  %1567 = vmax.xlane.f32.xlu0 %v1566
  %v1568 = vpop.xlane.xlu0 %1567
  %v1569 = vsel %vm404, %v1565, -inf
  %1570 = vmax.xlane.f32.xlu0 %v1569
  %v1571 = vpop.xlane.xlu0 %1570
  %v1572 = vsub.f32 %v1564, %v1568
  %v1573 = vsub.f32 %v1565, %v1571
  %v1574 = vmul.f32 %v1572, 1.442695
  %v1575 = vpow.pop %v1574
  %v1576 = vmul.f32 %v1573, 1.442695
  %v1577 = vpow.pop %v1576
  %v1578 = vsel %vm404, %v1575, 0.0
  %1579 = vadd.xlane.f32.xlu0 %v1578
  %v1580 = vpop.xlane.xlu0 %1579
  %v1581 = vsel %vm404, %v1577, 0.0
  %1582 = vadd.xlane.f32.xlu0 %v1581
  %v1583 = vpop.xlane.xlu0 %1582
  %v1584 = vrcp.pop %v1580
  %v1585 = vrcp.pop %v1583
  %v1586 = vmul.f32 %v1575, %v1584
  %v1587 = vmul.f32 %v1577, %v1585
  %1588 = vrot.lane.b32.xlu0 %v1400, 64
  %v1589 = vpop.permute.xlu0 %1588
  %v1592 = vsel %vm404, %v1586, 0
  %1594 = vmatprep.subr.mxu0 0.0
  %1595 = vmatpush1.msra.mxu0 %v1589
  %1596 = vmatprep.subr.mxu0 0.0
  %1597 = vmatpush1.msra.mxu0 0.0
  %1598 = vmatprep.subr.mxu0 0.0
  %1599 = vmatpush1.msra.mxu0 0.0
  %1600 = vmatprep.subr.mxu0 0.0
  %1601 = vmatpush1.msra.mxu0 0.0
  %1602 = vmatprep.subr.mxu0 0.0
  %1603 = vmatpush1.msra.mxu0 0.0
  %1604 = vmatprep.subr.mxu0 0.0
  %1605 = vmatpush1.msra.mxu0 0.0
  %1606 = vmatprep.subr.mxu0 0.0
  %1607 = vmatpush1.msra.mxu0 0.0
  %1608 = vmatprep.subr.mxu0 0.0
  %1609 = vmatpush1.msra.mxu0 0.0
  %1610 = vmatprep.subr.mxu0 0.0
  %1611 = vmatpush1.msra.mxu0 0.0
  %1612 = vmatprep.subr.mxu0 0.0
  %1613 = vmatpush1.msra.mxu0 0.0
  %1614 = vmatprep.subr.mxu0 0.0
  %1615 = vmatpush1.msra.mxu0 0.0
  %1616 = vmatprep.subr.mxu0 0.0
  %1617 = vmatpush1.msra.mxu0 0.0
  %1618 = vmatprep.subr.mxu0 0.0
  %1619 = vmatpush1.msra.mxu0 0.0
  %1620 = vmatprep.subr.mxu0 0.0
  %1621 = vmatpush1.msra.mxu0 0.0
  %1622 = vmatprep.subr.mxu0 0.0
  %1623 = vmatpush1.msra.mxu0 0.0
  %1624 = vmatprep.subr.mxu0 0.0
  %1625 = vmatpush1.msra.mxu0 0.0
  %1626 = vmatprep.subr.mxu0 0.0
  %1627 = vmatpush1.msra.mxu0 0.0
  %1628 = vmatprep.subr.mxu0 0.0
  %1629 = vmatpush1.msra.mxu0 0.0
  %1630 = vmatprep.subr.mxu0 0.0
  %1631 = vmatpush1.msra.mxu0 0.0
  %1632 = vmatprep.subr.mxu0 0.0
  %1633 = vmatpush1.msra.mxu0 0.0
  %1634 = vmatprep.subr.mxu0 0.0
  %1635 = vmatpush1.msra.mxu0 0.0
  %1636 = vmatprep.subr.mxu0 0.0
  %1637 = vmatpush1.msra.mxu0 0.0
  %1638 = vmatprep.subr.mxu0 0.0
  %1639 = vmatpush1.msra.mxu0 0.0
  %1640 = vmatprep.subr.mxu0 0.0
  %1641 = vmatpush1.msra.mxu0 0.0
  %1642 = vmatprep.subr.mxu0 0.0
  %1643 = vmatpush1.msra.mxu0 0.0
  %1644 = vmatprep.subr.mxu0 0.0
  %1645 = vmatpush1.msra.mxu0 0.0
  %1646 = vmatprep.subr.mxu0 0.0
  %1647 = vmatpush1.msra.mxu0 0.0
  %1648 = vmatprep.subr.mxu0 0.0
  %1649 = vmatpush1.msra.mxu0 0.0
  %1650 = vmatprep.subr.mxu0 0.0
  %1651 = vmatpush1.msra.mxu0 0.0
  %1652 = vmatprep.subr.mxu0 0.0
  %1653 = vmatpush1.msra.mxu0 0.0
  %1654 = vmatprep.subr.mxu0 0.0
  %1655 = vmatpush1.msra.mxu0 0.0
  %1656 = vmatprep.subr.mxu0 0.0
  %1657 = vmatpush1.msra.mxu0 0.0
  %1658 = vmatprep.mubr.f32.mxu0 0.0
  %1659 = vmatmul.mubr.f32.gmra.mrb[0].mxu0 %v1592
  %v1660 = vpop.f32.mrb[0].mxu0
  %v1661 = vadd.f32 0.0, %v1660
  %v1662 = vpop.f32.mrb[0].mxu0
  %1663 = vdwg.mxu0
  %1664 = vrot.lane.b32.xlu0 %v1405, 64
  %v1665 = vpop.permute.xlu0 %1664
  %v1668 = vsel %vm404, %v1587, 0
  %1670 = vmatprep.subr.mxu0 0.0
  %1671 = vmatpush1.msra.mxu0 %v1665
  %1672 = vmatprep.subr.mxu0 0.0
  %1673 = vmatpush1.msra.mxu0 0.0
  %1674 = vmatprep.subr.mxu0 0.0
  %1675 = vmatpush1.msra.mxu0 0.0
  %1676 = vmatprep.subr.mxu0 0.0
  %1677 = vmatpush1.msra.mxu0 0.0
  %1678 = vmatprep.subr.mxu0 0.0
  %1679 = vmatpush1.msra.mxu0 0.0
  %1680 = vmatprep.subr.mxu0 0.0
  %1681 = vmatpush1.msra.mxu0 0.0
  %1682 = vmatprep.subr.mxu0 0.0
  %1683 = vmatpush1.msra.mxu0 0.0
  %1684 = vmatprep.subr.mxu0 0.0
  %1685 = vmatpush1.msra.mxu0 0.0
  %1686 = vmatprep.subr.mxu0 0.0
  %1687 = vmatpush1.msra.mxu0 0.0
  %1688 = vmatprep.subr.mxu0 0.0
  %1689 = vmatpush1.msra.mxu0 0.0
  %1690 = vmatprep.subr.mxu0 0.0
  %1691 = vmatpush1.msra.mxu0 0.0
  %1692 = vmatprep.subr.mxu0 0.0
  %1693 = vmatpush1.msra.mxu0 0.0
  %1694 = vmatprep.subr.mxu0 0.0
  %1695 = vmatpush1.msra.mxu0 0.0
  %1696 = vmatprep.subr.mxu0 0.0
  %1697 = vmatpush1.msra.mxu0 0.0
  %1698 = vmatprep.subr.mxu0 0.0
  %1699 = vmatpush1.msra.mxu0 0.0
  %1700 = vmatprep.subr.mxu0 0.0
  %1701 = vmatpush1.msra.mxu0 0.0
  %1702 = vmatprep.subr.mxu0 0.0
  %1703 = vmatpush1.msra.mxu0 0.0
  %1704 = vmatprep.subr.mxu0 0.0
  %1705 = vmatpush1.msra.mxu0 0.0
  %1706 = vmatprep.subr.mxu0 0.0
  %1707 = vmatpush1.msra.mxu0 0.0
  %1708 = vmatprep.subr.mxu0 0.0
  %1709 = vmatpush1.msra.mxu0 0.0
  %1710 = vmatprep.subr.mxu0 0.0
  %1711 = vmatpush1.msra.mxu0 0.0
  %1712 = vmatprep.subr.mxu0 0.0
  %1713 = vmatpush1.msra.mxu0 0.0
  %1714 = vmatprep.subr.mxu0 0.0
  %1715 = vmatpush1.msra.mxu0 0.0
  %1716 = vmatprep.subr.mxu0 0.0
  %1717 = vmatpush1.msra.mxu0 0.0
  %1718 = vmatprep.subr.mxu0 0.0
  %1719 = vmatpush1.msra.mxu0 0.0
  %1720 = vmatprep.subr.mxu0 0.0
  %1721 = vmatpush1.msra.mxu0 0.0
  %1722 = vmatprep.subr.mxu0 0.0
  %1723 = vmatpush1.msra.mxu0 0.0
  %1724 = vmatprep.subr.mxu0 0.0
  %1725 = vmatpush1.msra.mxu0 0.0
  %1726 = vmatprep.subr.mxu0 0.0
  %1727 = vmatpush1.msra.mxu0 0.0
  %1728 = vmatprep.subr.mxu0 0.0
  %1729 = vmatpush1.msra.mxu0 0.0
  %1730 = vmatprep.subr.mxu0 0.0
  %1731 = vmatpush1.msra.mxu0 0.0
  %1732 = vmatprep.subr.mxu0 0.0
  %1733 = vmatpush1.msra.mxu0 0.0
  %1734 = vmatprep.mubr.f32.mxu0 0.0
  %1735 = vmatmul.mubr.f32.gmra.mrb[0].mxu0 %v1668
  %v1736 = vpop.f32.mrb[0].mxu0
  %v1737 = vadd.f32 0.0, %v1736
  %v1738 = vpop.f32.mrb[0].mxu0
  %1739 = vdwg.mxu0
  %1740 = vrot.lane.b32.xlu0 %v1400, 112
  %v1741 = vpop.permute.xlu0 %1740
  %1742 = vrot.lane.b32.xlu0 %v1400, 80
  %v1743 = vpop.permute.xlu0 %1742
  %v1744 = vsel %vm236, %v1741, 0
  %v1746 = vsel %vm236, %v1743, 0
  %1748 = vmatprep.subr.mxu0 0.0
  %1749 = vmatpush1.xpose.msra.mxu0 %v1746
  %1750 = vmatprep.subr.mxu0 0.0
  %1751 = vmatpush1.xpose.msra.mxu0 0.0
  %1752 = vmatprep.subr.mxu0 0.0
  %1753 = vmatpush1.xpose.msra.mxu0 0.0
  %1754 = vmatprep.subr.mxu0 0.0
  %1755 = vmatpush1.xpose.msra.mxu0 0.0
  %1756 = vmatprep.subr.mxu0 0.0
  %1757 = vmatpush1.xpose.msra.mxu0 0.0
  %1758 = vmatprep.subr.mxu0 0.0
  %1759 = vmatpush1.xpose.msra.mxu0 0.0
  %1760 = vmatprep.subr.mxu0 0.0
  %1761 = vmatpush1.xpose.msra.mxu0 0.0
  %1762 = vmatprep.subr.mxu0 0.0
  %1763 = vmatpush1.xpose.msra.mxu0 0.0
  %1764 = vmatprep.subr.mxu0 0.0
  %1765 = vmatpush1.xpose.msra.mxu0 0.0
  %1766 = vmatprep.subr.mxu0 0.0
  %1767 = vmatpush1.xpose.msra.mxu0 0.0
  %1768 = vmatprep.subr.mxu0 0.0
  %1769 = vmatpush1.xpose.msra.mxu0 0.0
  %1770 = vmatprep.subr.mxu0 0.0
  %1771 = vmatpush1.xpose.msra.mxu0 0.0
  %1772 = vmatprep.subr.mxu0 0.0
  %1773 = vmatpush1.xpose.msra.mxu0 0.0
  %1774 = vmatprep.subr.mxu0 0.0
  %1775 = vmatpush1.xpose.msra.mxu0 0.0
  %1776 = vmatprep.subr.mxu0 0.0
  %1777 = vmatpush1.xpose.msra.mxu0 0.0
  %1778 = vmatprep.subr.mxu0 0.0
  %1779 = vmatpush1.xpose.msra.mxu0 0.0
  %1780 = vmatprep.subr.mxu0 0.0
  %1781 = vmatpush1.xpose.msra.mxu0 0.0
  %1782 = vmatprep.subr.mxu0 0.0
  %1783 = vmatpush1.xpose.msra.mxu0 0.0
  %1784 = vmatprep.subr.mxu0 0.0
  %1785 = vmatpush1.xpose.msra.mxu0 0.0
  %1786 = vmatprep.subr.mxu0 0.0
  %1787 = vmatpush1.xpose.msra.mxu0 0.0
  %1788 = vmatprep.subr.mxu0 0.0
  %1789 = vmatpush1.xpose.msra.mxu0 0.0
  %1790 = vmatprep.subr.mxu0 0.0
  %1791 = vmatpush1.xpose.msra.mxu0 0.0
  %1792 = vmatprep.subr.mxu0 0.0
  %1793 = vmatpush1.xpose.msra.mxu0 0.0
  %1794 = vmatprep.subr.mxu0 0.0
  %1795 = vmatpush1.xpose.msra.mxu0 0.0
  %1796 = vmatprep.subr.mxu0 0.0
  %1797 = vmatpush1.xpose.msra.mxu0 0.0
  %1798 = vmatprep.subr.mxu0 0.0
  %1799 = vmatpush1.xpose.msra.mxu0 0.0
  %1800 = vmatprep.subr.mxu0 0.0
  %1801 = vmatpush1.xpose.msra.mxu0 0.0
  %1802 = vmatprep.subr.mxu0 0.0
  %1803 = vmatpush1.xpose.msra.mxu0 0.0
  %1804 = vmatprep.subr.mxu0 0.0
  %1805 = vmatpush1.xpose.msra.mxu0 0.0
  %1806 = vmatprep.subr.mxu0 0.0
  %1807 = vmatpush1.xpose.msra.mxu0 0.0
  %1808 = vmatprep.subr.mxu0 0.0
  %1809 = vmatpush1.xpose.msra.mxu0 0.0
  %1810 = vmatprep.subr.mxu0 0.0
  %1811 = vmatpush1.xpose.msra.mxu0 0.0
  %1812 = vmatprep.mubr.f32.mxu0 0.0
  %1813 = vmatmul.mubr.f32.gmra.mrb[0].mxu0 %v1744
  %v1814 = vpop.f32.mrb[0].mxu0
  %v1815 = vadd.f32 0.0, %v1814
  %v1816 = vpop.f32.mrb[0].mxu0
  %1817 = vdwg.mxu0
  %1818 = vrot.lane.b32.xlu0 %v1405, 112
  %v1819 = vpop.permute.xlu0 %1818
  %1820 = vrot.lane.b32.xlu0 %v1405, 80
  %v1821 = vpop.permute.xlu0 %1820
  %v1822 = vsel %vm236, %v1819, 0
  %v1824 = vsel %vm236, %v1821, 0
  %1826 = vmatprep.subr.mxu0 0.0
  %1827 = vmatpush1.xpose.msra.mxu0 %v1824
  %1828 = vmatprep.subr.mxu0 0.0
  %1829 = vmatpush1.xpose.msra.mxu0 0.0
  %1830 = vmatprep.subr.mxu0 0.0
  %1831 = vmatpush1.xpose.msra.mxu0 0.0
  %1832 = vmatprep.subr.mxu0 0.0
  %1833 = vmatpush1.xpose.msra.mxu0 0.0
  %1834 = vmatprep.subr.mxu0 0.0
  %1835 = vmatpush1.xpose.msra.mxu0 0.0
  %1836 = vmatprep.subr.mxu0 0.0
  %1837 = vmatpush1.xpose.msra.mxu0 0.0
  %1838 = vmatprep.subr.mxu0 0.0
  %1839 = vmatpush1.xpose.msra.mxu0 0.0
  %1840 = vmatprep.subr.mxu0 0.0
  %1841 = vmatpush1.xpose.msra.mxu0 0.0
  %1842 = vmatprep.subr.mxu0 0.0
  %1843 = vmatpush1.xpose.msra.mxu0 0.0
  %1844 = vmatprep.subr.mxu0 0.0
  %1845 = vmatpush1.xpose.msra.mxu0 0.0
  %1846 = vmatprep.subr.mxu0 0.0
  %1847 = vmatpush1.xpose.msra.mxu0 0.0
  %1848 = vmatprep.subr.mxu0 0.0
  %1849 = vmatpush1.xpose.msra.mxu0 0.0
  %1850 = vmatprep.subr.mxu0 0.0
  %1851 = vmatpush1.xpose.msra.mxu0 0.0
  %1852 = vmatprep.subr.mxu0 0.0
  %1853 = vmatpush1.xpose.msra.mxu0 0.0
  %1854 = vmatprep.subr.mxu0 0.0
  %1855 = vmatpush1.xpose.msra.mxu0 0.0
  %1856 = vmatprep.subr.mxu0 0.0
  %1857 = vmatpush1.xpose.msra.mxu0 0.0
  %1858 = vmatprep.subr.mxu0 0.0
  %1859 = vmatpush1.xpose.msra.mxu0 0.0
  %1860 = vmatprep.subr.mxu0 0.0
  %1861 = vmatpush1.xpose.msra.mxu0 0.0
  %1862 = vmatprep.subr.mxu0 0.0
  %1863 = vmatpush1.xpose.msra.mxu0 0.0
  %1864 = vmatprep.subr.mxu0 0.0
  %1865 = vmatpush1.xpose.msra.mxu0 0.0
  %1866 = vmatprep.subr.mxu0 0.0
  %1867 = vmatpush1.xpose.msra.mxu0 0.0
  %1868 = vmatprep.subr.mxu0 0.0
  %1869 = vmatpush1.xpose.msra.mxu0 0.0
  %1870 = vmatprep.subr.mxu0 0.0
  %1871 = vmatpush1.xpose.msra.mxu0 0.0
  %1872 = vmatprep.subr.mxu0 0.0
  %1873 = vmatpush1.xpose.msra.mxu0 0.0
  %1874 = vmatprep.subr.mxu0 0.0
  %1875 = vmatpush1.xpose.msra.mxu0 0.0
  %1876 = vmatprep.subr.mxu0 0.0
  %1877 = vmatpush1.xpose.msra.mxu0 0.0
  %1878 = vmatprep.subr.mxu0 0.0
  %1879 = vmatpush1.xpose.msra.mxu0 0.0
  %1880 = vmatprep.subr.mxu0 0.0
  %1881 = vmatpush1.xpose.msra.mxu0 0.0
  %1882 = vmatprep.subr.mxu0 0.0
  %1883 = vmatpush1.xpose.msra.mxu0 0.0
  %1884 = vmatprep.subr.mxu0 0.0
  %1885 = vmatpush1.xpose.msra.mxu0 0.0
  %1886 = vmatprep.subr.mxu0 0.0
  %1887 = vmatpush1.xpose.msra.mxu0 0.0
  %1888 = vmatprep.subr.mxu0 0.0
  %1889 = vmatpush1.xpose.msra.mxu0 0.0
  %1890 = vmatprep.mubr.f32.mxu0 0.0
  %1891 = vmatmul.mubr.f32.gmra.mrb[0].mxu0 %v1822
  %v1892 = vpop.f32.mrb[0].mxu0
  %v1893 = vadd.f32 0.0, %v1892
  %v1894 = vpop.f32.mrb[0].mxu0
  %1895 = vdwg.mxu0
  %v1896 = vmul.f32 %v1815, 0.25
  %v1897 = vmul.f32 %v1893, 0.25
  %v1898 = vadd.f32 %v1896, %v395
  %v1899 = vadd.f32 %v1897, %v399
  %v1900 = vsel %vm404, %v1898, -inf
  %1901 = vmax.xlane.f32.xlu0 %v1900
  %v1902 = vpop.xlane.xlu0 %1901
  %v1903 = vsel %vm404, %v1899, -inf
  %1904 = vmax.xlane.f32.xlu0 %v1903
  %v1905 = vpop.xlane.xlu0 %1904
  %v1906 = vsub.f32 %v1898, %v1902
  %v1907 = vsub.f32 %v1899, %v1905
  %v1908 = vmul.f32 %v1906, 1.442695
  %v1909 = vpow.pop %v1908
  %v1910 = vmul.f32 %v1907, 1.442695
  %v1911 = vpow.pop %v1910
  %v1912 = vsel %vm404, %v1909, 0.0
  %1913 = vadd.xlane.f32.xlu0 %v1912
  %v1914 = vpop.xlane.xlu0 %1913
  %v1915 = vsel %vm404, %v1911, 0.0
  %1916 = vadd.xlane.f32.xlu0 %v1915
  %v1917 = vpop.xlane.xlu0 %1916
  %v1918 = vrcp.pop %v1914
  %v1919 = vrcp.pop %v1917
  %v1920 = vmul.f32 %v1909, %v1918
  %v1921 = vmul.f32 %v1911, %v1919
  %1922 = vrot.lane.b32.xlu0 %v1400, 48
  %v1923 = vpop.permute.xlu0 %1922
  %v1926 = vsel %vm404, %v1920, 0
  %1928 = vmatprep.subr.mxu0 0.0
  %1929 = vmatpush1.msra.mxu0 %v1923
  %1930 = vmatprep.subr.mxu0 0.0
  %1931 = vmatpush1.msra.mxu0 0.0
  %1932 = vmatprep.subr.mxu0 0.0
  %1933 = vmatpush1.msra.mxu0 0.0
  %1934 = vmatprep.subr.mxu0 0.0
  %1935 = vmatpush1.msra.mxu0 0.0
  %1936 = vmatprep.subr.mxu0 0.0
  %1937 = vmatpush1.msra.mxu0 0.0
  %1938 = vmatprep.subr.mxu0 0.0
  %1939 = vmatpush1.msra.mxu0 0.0
  %1940 = vmatprep.subr.mxu0 0.0
  %1941 = vmatpush1.msra.mxu0 0.0
  %1942 = vmatprep.subr.mxu0 0.0
  %1943 = vmatpush1.msra.mxu0 0.0
  %1944 = vmatprep.subr.mxu0 0.0
  %1945 = vmatpush1.msra.mxu0 0.0
  %1946 = vmatprep.subr.mxu0 0.0
  %1947 = vmatpush1.msra.mxu0 0.0
  %1948 = vmatprep.subr.mxu0 0.0
  %1949 = vmatpush1.msra.mxu0 0.0
  %1950 = vmatprep.subr.mxu0 0.0
  %1951 = vmatpush1.msra.mxu0 0.0
  %1952 = vmatprep.subr.mxu0 0.0
  %1953 = vmatpush1.msra.mxu0 0.0
  %1954 = vmatprep.subr.mxu0 0.0
  %1955 = vmatpush1.msra.mxu0 0.0
  %1956 = vmatprep.subr.mxu0 0.0
  %1957 = vmatpush1.msra.mxu0 0.0
  %1958 = vmatprep.subr.mxu0 0.0
  %1959 = vmatpush1.msra.mxu0 0.0
  %1960 = vmatprep.subr.mxu0 0.0
  %1961 = vmatpush1.msra.mxu0 0.0
  %1962 = vmatprep.subr.mxu0 0.0
  %1963 = vmatpush1.msra.mxu0 0.0
  %1964 = vmatprep.subr.mxu0 0.0
  %1965 = vmatpush1.msra.mxu0 0.0
  %1966 = vmatprep.subr.mxu0 0.0
  %1967 = vmatpush1.msra.mxu0 0.0
  %1968 = vmatprep.subr.mxu0 0.0
  %1969 = vmatpush1.msra.mxu0 0.0
  %1970 = vmatprep.subr.mxu0 0.0
  %1971 = vmatpush1.msra.mxu0 0.0
  %1972 = vmatprep.subr.mxu0 0.0
  %1973 = vmatpush1.msra.mxu0 0.0
  %1974 = vmatprep.subr.mxu0 0.0
  %1975 = vmatpush1.msra.mxu0 0.0
  %1976 = vmatprep.subr.mxu0 0.0
  %1977 = vmatpush1.msra.mxu0 0.0
  %1978 = vmatprep.subr.mxu0 0.0
  %1979 = vmatpush1.msra.mxu0 0.0
  %1980 = vmatprep.subr.mxu0 0.0
  %1981 = vmatpush1.msra.mxu0 0.0
  %1982 = vmatprep.subr.mxu0 0.0
  %1983 = vmatpush1.msra.mxu0 0.0
  %1984 = vmatprep.subr.mxu0 0.0
  %1985 = vmatpush1.msra.mxu0 0.0
  %1986 = vmatprep.subr.mxu0 0.0
  %1987 = vmatpush1.msra.mxu0 0.0
  %1988 = vmatprep.subr.mxu0 0.0
  %1989 = vmatpush1.msra.mxu0 0.0
  %1990 = vmatprep.subr.mxu0 0.0
  %1991 = vmatpush1.msra.mxu0 0.0
  %1992 = vmatprep.mubr.f32.mxu0 0.0
  %1993 = vmatmul.mubr.f32.gmra.mrb[0].mxu0 %v1926
  %v1994 = vpop.f32.mrb[0].mxu0
  %v1995 = vadd.f32 0.0, %v1994
  %v1996 = vpop.f32.mrb[0].mxu0
  %1997 = vdwg.mxu0
  %1998 = vrot.lane.b32.xlu0 %v1405, 48
  %v1999 = vpop.permute.xlu0 %1998
  %v2002 = vsel %vm404, %v1921, 0
  %2004 = vmatprep.subr.mxu0 0.0
  %2005 = vmatpush1.msra.mxu0 %v1999
  %2006 = vmatprep.subr.mxu0 0.0
  %2007 = vmatpush1.msra.mxu0 0.0
  %2008 = vmatprep.subr.mxu0 0.0
  %2009 = vmatpush1.msra.mxu0 0.0
  %2010 = vmatprep.subr.mxu0 0.0
  %2011 = vmatpush1.msra.mxu0 0.0
  %2012 = vmatprep.subr.mxu0 0.0
  %2013 = vmatpush1.msra.mxu0 0.0
  %2014 = vmatprep.subr.mxu0 0.0
  %2015 = vmatpush1.msra.mxu0 0.0
  %2016 = vmatprep.subr.mxu0 0.0
  %2017 = vmatpush1.msra.mxu0 0.0
  %2018 = vmatprep.subr.mxu0 0.0
  %2019 = vmatpush1.msra.mxu0 0.0
  %2020 = vmatprep.subr.mxu0 0.0
  %2021 = vmatpush1.msra.mxu0 0.0
  %2022 = vmatprep.subr.mxu0 0.0
  %2023 = vmatpush1.msra.mxu0 0.0
  %2024 = vmatprep.subr.mxu0 0.0
  %2025 = vmatpush1.msra.mxu0 0.0
  %2026 = vmatprep.subr.mxu0 0.0
  %2027 = vmatpush1.msra.mxu0 0.0
  %2028 = vmatprep.subr.mxu0 0.0
  %2029 = vmatpush1.msra.mxu0 0.0
  %2030 = vmatprep.subr.mxu0 0.0
  %2031 = vmatpush1.msra.mxu0 0.0
  %2032 = vmatprep.subr.mxu0 0.0
  %2033 = vmatpush1.msra.mxu0 0.0
  %2034 = vmatprep.subr.mxu0 0.0
  %2035 = vmatpush1.msra.mxu0 0.0
  %2036 = vmatprep.subr.mxu0 0.0
  %2037 = vmatpush1.msra.mxu0 0.0
  %2038 = vmatprep.subr.mxu0 0.0
  %2039 = vmatpush1.msra.mxu0 0.0
  %2040 = vmatprep.subr.mxu0 0.0
  %2041 = vmatpush1.msra.mxu0 0.0
  %2042 = vmatprep.subr.mxu0 0.0
  %2043 = vmatpush1.msra.mxu0 0.0
  %2044 = vmatprep.subr.mxu0 0.0
  %2045 = vmatpush1.msra.mxu0 0.0
  %2046 = vmatprep.subr.mxu0 0.0
  %2047 = vmatpush1.msra.mxu0 0.0
  %2048 = vmatprep.subr.mxu0 0.0
  %2049 = vmatpush1.msra.mxu0 0.0
  %2050 = vmatprep.subr.mxu0 0.0
  %2051 = vmatpush1.msra.mxu0 0.0
  %2052 = vmatprep.subr.mxu0 0.0
  %2053 = vmatpush1.msra.mxu0 0.0
  %2054 = vmatprep.subr.mxu0 0.0
  %2055 = vmatpush1.msra.mxu0 0.0
  %2056 = vmatprep.subr.mxu0 0.0
  %2057 = vmatpush1.msra.mxu0 0.0
  %2058 = vmatprep.subr.mxu0 0.0
  %2059 = vmatpush1.msra.mxu0 0.0
  %2060 = vmatprep.subr.mxu0 0.0
  %2061 = vmatpush1.msra.mxu0 0.0
  %2062 = vmatprep.subr.mxu0 0.0
  %2063 = vmatpush1.msra.mxu0 0.0
  %2064 = vmatprep.subr.mxu0 0.0
  %2065 = vmatpush1.msra.mxu0 0.0
  %2066 = vmatprep.subr.mxu0 0.0
  %2067 = vmatpush1.msra.mxu0 0.0
  %2068 = vmatprep.mubr.f32.mxu0 0.0
  %2069 = vmatmul.mubr.f32.gmra.mrb[0].mxu0 %v2002
  %v2070 = vpop.f32.mrb[0].mxu0
  %v2071 = vadd.f32 0.0, %v2070
  %v2072 = vpop.f32.mrb[0].mxu0
  %2073 = vdwg.mxu0
  %2076 = vrot.lane.b32.xlu0 %v1995, 16
  %v2077 = vpop.permute.xlu0 %2076
  %2078 = vrot.lane.b32.xlu0 %v2071, 16
  %v2079 = vpop.permute.xlu0 %2078
  %v2082 = vsel %vm236, %v1661, %v2077
  %v2083 = vsel %vm236, %v1737, %v2079
  %s2084 = scalar_lea.vmem %s8, 32
  %v2085 = vld [vmem:[%s2084] sm:$0xff]
  %v2086 = vld [vmem:[%s2084 + $0x8] sm:$0xff]
  %v2087 = vld [vmem:[%s2084 + $0x10] sm:$0xff]
  %v2088 = vld [vmem:[%s2084 + $0x18] sm:$0xff]
  %s2089 = scalar_lea.vmem %s9, 1
  %v2090 = vld [vmem:[%s2089] sm:$0x1]
  %v2092 = vlaneseq
  %v2093 = vshrl.u32 %v2092, 7
  %v2094 = vsub.s32 0, %v2093
  %v2095 = vrot.slane %v2090, %v2094
  %v2098 = vsel %vm95, %v2082, 0
  %v2101 = vsel %vm95, %v2083, 0
  %2103 = vmatprep.subr.mxu0 0.0
  %2104 = vmatpush1.msra.mxu0 %v2085
  %2105 = vmatprep.subr.mxu0 0.0
  %2106 = vmatpush1.msra.mxu0 %v2086
  %2107 = vmatprep.subr.mxu0 0.0
  %2108 = vmatpush1.msra.mxu0 %v2087
  %2109 = vmatprep.subr.mxu0 0.0
  %2110 = vmatpush1.msra.mxu0 %v2088
  %2111 = vmatprep.subr.mxu0 0.0
  %2112 = vmatpush1.msra.mxu0 0.0
  %2113 = vmatprep.subr.mxu0 0.0
  %2114 = vmatpush1.msra.mxu0 0.0
  %2115 = vmatprep.subr.mxu0 0.0
  %2116 = vmatpush1.msra.mxu0 0.0
  %2117 = vmatprep.subr.mxu0 0.0
  %2118 = vmatpush1.msra.mxu0 0.0
  %2119 = vmatprep.subr.mxu0 0.0
  %2120 = vmatpush1.msra.mxu0 0.0
  %2121 = vmatprep.subr.mxu0 0.0
  %2122 = vmatpush1.msra.mxu0 0.0
  %2123 = vmatprep.subr.mxu0 0.0
  %2124 = vmatpush1.msra.mxu0 0.0
  %2125 = vmatprep.subr.mxu0 0.0
  %2126 = vmatpush1.msra.mxu0 0.0
  %2127 = vmatprep.subr.mxu0 0.0
  %2128 = vmatpush1.msra.mxu0 0.0
  %2129 = vmatprep.subr.mxu0 0.0
  %2130 = vmatpush1.msra.mxu0 0.0
  %2131 = vmatprep.subr.mxu0 0.0
  %2132 = vmatpush1.msra.mxu0 0.0
  %2133 = vmatprep.subr.mxu0 0.0
  %2134 = vmatpush1.msra.mxu0 0.0
  %2135 = vmatprep.subr.mxu0 0.0
  %2136 = vmatpush1.msra.mxu0 0.0
  %2137 = vmatprep.subr.mxu0 0.0
  %2138 = vmatpush1.msra.mxu0 0.0
  %2139 = vmatprep.subr.mxu0 0.0
  %2140 = vmatpush1.msra.mxu0 0.0
  %2141 = vmatprep.subr.mxu0 0.0
  %2142 = vmatpush1.msra.mxu0 0.0
  %2143 = vmatprep.subr.mxu0 0.0
  %2144 = vmatpush1.msra.mxu0 0.0
  %2145 = vmatprep.subr.mxu0 0.0
  %2146 = vmatpush1.msra.mxu0 0.0
  %2147 = vmatprep.subr.mxu0 0.0
  %2148 = vmatpush1.msra.mxu0 0.0
  %2149 = vmatprep.subr.mxu0 0.0
  %2150 = vmatpush1.msra.mxu0 0.0
  %2151 = vmatprep.subr.mxu0 0.0
  %2152 = vmatpush1.msra.mxu0 0.0
  %2153 = vmatprep.subr.mxu0 0.0
  %2154 = vmatpush1.msra.mxu0 0.0
  %2155 = vmatprep.subr.mxu0 0.0
  %2156 = vmatpush1.msra.mxu0 0.0
  %2157 = vmatprep.subr.mxu0 0.0
  %2158 = vmatpush1.msra.mxu0 0.0
  %2159 = vmatprep.subr.mxu0 0.0
  %2160 = vmatpush1.msra.mxu0 0.0
  %2161 = vmatprep.subr.mxu0 0.0
  %2162 = vmatpush1.msra.mxu0 0.0
  %2163 = vmatprep.subr.mxu0 0.0
  %2164 = vmatpush1.msra.mxu0 0.0
  %2165 = vmatprep.subr.mxu0 0.0
  %2166 = vmatpush1.msra.mxu0 0.0
  %2167 = vmatprep.mubr.f32.mxu0 0.0
  %2168 = vmatmul.mubr.f32.gmra.mrb[0].mxu0 %v2098
  %v2169 = vpop.f32.mrb[0].mxu0
  %v2170 = vadd.f32 %v2095, %v2169
  %v2171 = vpop.f32.mrb[0].mxu0
  %2172 = vmatprep.mubr.f32.mxu0 0.0
  %2173 = vmatmul.mubr.f32.gmra.mrb[0].mxu0 %v2101
  %v2174 = vpop.f32.mrb[0].mxu0
  %v2175 = vadd.f32 %v2095, %v2174
  %v2176 = vpop.f32.mrb[0].mxu0
  %2177 = vdwg.mxu0
  %v2178 = vadd.f32 %v2170, %v1312
  %v2179 = vadd.f32 %v2175, %v1313
  %s2180 = scalar_lea.vmem %s10, 1
  %v2181 = vld [vmem:[%s2180] sm:$0x1]
  %s2182 = scalar_lea.vmem %s11, 1
  %v2183 = vld [vmem:[%s2182] sm:$0x1]
  %v2184 = vsel %vm95, %v2178, 0.0
  %2185 = vadd.xlane.f32.xlu0 %v2184
  %v2186 = vpop.xlane.xlu0 %2185
  %v2187 = vsel %vm95, %v2179, 0.0
  %2188 = vadd.xlane.f32.xlu0 %v2187
  %v2189 = vpop.xlane.xlu0 %2188
  %v2190 = vmul.f32 %v2186, %v102
  %v2191 = vmul.f32 %v2189, %v102
  %v2192 = vsub.f32 %v2178, %v2190
  %v2193 = vsub.f32 %v2179, %v2191
  %v2194 = vmul.f32 %v2192, %v2192
  %v2195 = vmul.f32 %v2193, %v2193
  %v2196 = vsel %vm95, %v2194, 0.0
  %2197 = vadd.xlane.f32.xlu0 %v2196
  %v2198 = vpop.xlane.xlu0 %2197
  %v2199 = vsel %vm95, %v2195, 0.0
  %2200 = vadd.xlane.f32.xlu0 %v2199
  %v2201 = vpop.xlane.xlu0 %2200
  %v2202 = vmul.f32 %v2198, %v102
  %v2203 = vmul.f32 %v2201, %v102
  %v2204 = vadd.f32 %v2202, 1e-12
  %v2205 = vadd.f32 %v2203, 1e-12
  %v2206 = vrsqrt.pop %v2204
  %v2207 = vrsqrt.pop %v2205
  %v2208 = vmul.f32 %v2192, %v2206
  %v2209 = vmul.f32 %v2193, %v2207
  %v2211 = vlaneseq
  %v2212 = vshrl.u32 %v2211, 7
  %v2213 = vsub.s32 0, %v2212
  %v2214 = vrot.slane %v2181, %v2213
  %v2216 = vmul.f32 %v2208, %v2214
  %v2217 = vmul.f32 %v2209, %v2214
  %v2219 = vlaneseq
  %v2220 = vshrl.u32 %v2219, 7
  %v2221 = vsub.s32 0, %v2220
  %v2222 = vrot.slane %v2183, %v2221
  %v2224 = vadd.f32 %v2216, %v2222
  %v2225 = vadd.f32 %v2217, %v2222
  %s2226 = scalar_lea.vmem %s12, 32
  %v2227 = vld [vmem:[%s2226] sm:$0xff]
  %v2228 = vld [vmem:[%s2226 + $0x8] sm:$0xff]
  %v2229 = vld [vmem:[%s2226 + $0x10] sm:$0xff]
  %v2230 = vld [vmem:[%s2226 + $0x18] sm:$0xff]
  %s2231 = scalar_lea.vmem %s13, 1
  %v2232 = vld [vmem:[%s2231] sm:$0x1]
  %v2234 = vlaneseq
  %v2235 = vshrl.u32 %v2234, 7
  %v2236 = vsub.s32 0, %v2235
  %v2237 = vrot.slane %v2232, %v2236
  %v2240 = vsel %vm95, %v2224, 0
  %v2243 = vsel %vm95, %v2225, 0
  %2245 = vmatprep.subr.mxu0 0.0
  %2246 = vmatpush1.msra.mxu0 %v2227
  %2247 = vmatprep.subr.mxu0 0.0
  %2248 = vmatpush1.msra.mxu0 %v2228
  %2249 = vmatprep.subr.mxu0 0.0
  %2250 = vmatpush1.msra.mxu0 %v2229
  %2251 = vmatprep.subr.mxu0 0.0
  %2252 = vmatpush1.msra.mxu0 %v2230
  %2253 = vmatprep.subr.mxu0 0.0
  %2254 = vmatpush1.msra.mxu0 0.0
  %2255 = vmatprep.subr.mxu0 0.0
  %2256 = vmatpush1.msra.mxu0 0.0
  %2257 = vmatprep.subr.mxu0 0.0
  %2258 = vmatpush1.msra.mxu0 0.0
  %2259 = vmatprep.subr.mxu0 0.0
  %2260 = vmatpush1.msra.mxu0 0.0
  %2261 = vmatprep.subr.mxu0 0.0
  %2262 = vmatpush1.msra.mxu0 0.0
  %2263 = vmatprep.subr.mxu0 0.0
  %2264 = vmatpush1.msra.mxu0 0.0
  %2265 = vmatprep.subr.mxu0 0.0
  %2266 = vmatpush1.msra.mxu0 0.0
  %2267 = vmatprep.subr.mxu0 0.0
  %2268 = vmatpush1.msra.mxu0 0.0
  %2269 = vmatprep.subr.mxu0 0.0
  %2270 = vmatpush1.msra.mxu0 0.0
  %2271 = vmatprep.subr.mxu0 0.0
  %2272 = vmatpush1.msra.mxu0 0.0
  %2273 = vmatprep.subr.mxu0 0.0
  %2274 = vmatpush1.msra.mxu0 0.0
  %2275 = vmatprep.subr.mxu0 0.0
  %2276 = vmatpush1.msra.mxu0 0.0
  %2277 = vmatprep.subr.mxu0 0.0
  %2278 = vmatpush1.msra.mxu0 0.0
  %2279 = vmatprep.subr.mxu0 0.0
  %2280 = vmatpush1.msra.mxu0 0.0
  %2281 = vmatprep.subr.mxu0 0.0
  %2282 = vmatpush1.msra.mxu0 0.0
  %2283 = vmatprep.subr.mxu0 0.0
  %2284 = vmatpush1.msra.mxu0 0.0
  %2285 = vmatprep.subr.mxu0 0.0
  %2286 = vmatpush1.msra.mxu0 0.0
  %2287 = vmatprep.subr.mxu0 0.0
  %2288 = vmatpush1.msra.mxu0 0.0
  %2289 = vmatprep.subr.mxu0 0.0
  %2290 = vmatpush1.msra.mxu0 0.0
  %2291 = vmatprep.subr.mxu0 0.0
  %2292 = vmatpush1.msra.mxu0 0.0
  %2293 = vmatprep.subr.mxu0 0.0
  %2294 = vmatpush1.msra.mxu0 0.0
  %2295 = vmatprep.subr.mxu0 0.0
  %2296 = vmatpush1.msra.mxu0 0.0
  %2297 = vmatprep.subr.mxu0 0.0
  %2298 = vmatpush1.msra.mxu0 0.0
  %2299 = vmatprep.subr.mxu0 0.0
  %2300 = vmatpush1.msra.mxu0 0.0
  %2301 = vmatprep.subr.mxu0 0.0
  %2302 = vmatpush1.msra.mxu0 0.0
  %2303 = vmatprep.subr.mxu0 0.0
  %2304 = vmatpush1.msra.mxu0 0.0
  %2305 = vmatprep.subr.mxu0 0.0
  %2306 = vmatpush1.msra.mxu0 0.0
  %2307 = vmatprep.subr.mxu0 0.0
  %2308 = vmatpush1.msra.mxu0 0.0
  %2309 = vmatprep.mubr.f32.mxu0 0.0
  %2310 = vmatmul.mubr.f32.gmra.mrb[0].mxu0 %v2240
  %v2311 = vpop.f32.mrb[0].mxu0
  %v2312 = vadd.f32 %v2237, %v2311
  %v2313 = vpop.f32.mrb[0].mxu0
  %2314 = vmatprep.mubr.f32.mxu0 0.0
  %2315 = vmatmul.mubr.f32.gmra.mrb[0].mxu0 %v2243
  %v2316 = vpop.f32.mrb[0].mxu0
  %v2317 = vadd.f32 %v2237, %v2316
  %v2318 = vpop.f32.mrb[0].mxu0
  %2319 = vdwg.mxu0
  %v2320 = vmul.f32 %v2312, %v2312
  %v2321 = vmul.f32 %v2317, %v2317
  %v2322 = vmul.f32 %v2312, %v2320
  %v2323 = vmul.f32 %v2317, %v2321
  %v2324 = vmul.f32 %v2322, 0.044715
  %v2325 = vmul.f32 %v2323, 0.044715
  %v2326 = vadd.f32 %v2312, %v2324
  %v2327 = vadd.f32 %v2317, %v2325
  %v2328 = vmul.f32 %v2326, 0.7978846
  %v2329 = vmul.f32 %v2327, 0.7978846
  %v2330 = vtanh.pop %v2328
  %v2331 = vtanh.pop %v2329
  %v2332 = vadd.f32 %v2330, 1.0
  %v2333 = vadd.f32 %v2331, 1.0
  %v2334 = vmul.f32 %v2332, 0.5
  %v2335 = vmul.f32 %v2333, 0.5
  %v2336 = vmul.f32 %v2312, %v2334
  %v2337 = vmul.f32 %v2317, %v2335
  %s2338 = scalar_lea.vmem %s14, 64
  %v2339 = vld [vmem:[%s2338] sm:$0xff]
  %v2340 = vld [vmem:[%s2338 + $0x8] sm:$0xff]
  %v2341 = vld [vmem:[%s2338 + $0x10] sm:$0xff]
  %v2342 = vld [vmem:[%s2338 + $0x18] sm:$0xff]
  %v2343 = vld [vmem:[%s2338 + $0x20] sm:$0xff]
  %v2344 = vld [vmem:[%s2338 + $0x28] sm:$0xff]
  %v2345 = vld [vmem:[%s2338 + $0x30] sm:$0xff]
  %v2346 = vld [vmem:[%s2338 + $0x38] sm:$0xff]
  %s2347 = scalar_lea.vmem %s15, 1
  %v2348 = vld [vmem:[%s2347] sm:$0x1]
  %v2350 = vlaneseq
  %v2351 = vshrl.u32 %v2350, 7
  %v2352 = vsub.s32 0, %v2351
  %v2353 = vrot.slane %v2348, %v2352
  %v2356 = vsel %vm1186, %v2336, 0
  %v2359 = vsel %vm1186, %v2337, 0
  %2361 = vmatprep.subr.mxu0 0.0
  %2362 = vmatpush1.msra.mxu0 %v2339
  %2363 = vmatprep.subr.mxu0 0.0
  %2364 = vmatpush1.msra.mxu0 %v2340
  %2365 = vmatprep.subr.mxu0 0.0
  %2366 = vmatpush1.msra.mxu0 %v2341
  %2367 = vmatprep.subr.mxu0 0.0
  %2368 = vmatpush1.msra.mxu0 %v2342
  %2369 = vmatprep.subr.mxu0 0.0
  %2370 = vmatpush1.msra.mxu0 %v2343
  %2371 = vmatprep.subr.mxu0 0.0
  %2372 = vmatpush1.msra.mxu0 %v2344
  %2373 = vmatprep.subr.mxu0 0.0
  %2374 = vmatpush1.msra.mxu0 %v2345
  %2375 = vmatprep.subr.mxu0 0.0
  %2376 = vmatpush1.msra.mxu0 %v2346
  %2377 = vmatprep.subr.mxu0 0.0
  %2378 = vmatpush1.msra.mxu0 0.0
  %2379 = vmatprep.subr.mxu0 0.0
  %2380 = vmatpush1.msra.mxu0 0.0
  %2381 = vmatprep.subr.mxu0 0.0
  %2382 = vmatpush1.msra.mxu0 0.0
  %2383 = vmatprep.subr.mxu0 0.0
  %2384 = vmatpush1.msra.mxu0 0.0
  %2385 = vmatprep.subr.mxu0 0.0
  %2386 = vmatpush1.msra.mxu0 0.0
  %2387 = vmatprep.subr.mxu0 0.0
  %2388 = vmatpush1.msra.mxu0 0.0
  %2389 = vmatprep.subr.mxu0 0.0
  %2390 = vmatpush1.msra.mxu0 0.0
  %2391 = vmatprep.subr.mxu0 0.0
  %2392 = vmatpush1.msra.mxu0 0.0
  %2393 = vmatprep.subr.mxu0 0.0
  %2394 = vmatpush1.msra.mxu0 0.0
  %2395 = vmatprep.subr.mxu0 0.0
  %2396 = vmatpush1.msra.mxu0 0.0
  %2397 = vmatprep.subr.mxu0 0.0
  %2398 = vmatpush1.msra.mxu0 0.0
  %2399 = vmatprep.subr.mxu0 0.0
  %2400 = vmatpush1.msra.mxu0 0.0
  %2401 = vmatprep.subr.mxu0 0.0
  %2402 = vmatpush1.msra.mxu0 0.0
  %2403 = vmatprep.subr.mxu0 0.0
  %2404 = vmatpush1.msra.mxu0 0.0
  %2405 = vmatprep.subr.mxu0 0.0
  %2406 = vmatpush1.msra.mxu0 0.0
  %2407 = vmatprep.subr.mxu0 0.0
  %2408 = vmatpush1.msra.mxu0 0.0
  %2409 = vmatprep.subr.mxu0 0.0
  %2410 = vmatpush1.msra.mxu0 0.0
  %2411 = vmatprep.subr.mxu0 0.0
  %2412 = vmatpush1.msra.mxu0 0.0
  %2413 = vmatprep.subr.mxu0 0.0
  %2414 = vmatpush1.msra.mxu0 0.0
  %2415 = vmatprep.subr.mxu0 0.0
  %2416 = vmatpush1.msra.mxu0 0.0
  %2417 = vmatprep.subr.mxu0 0.0
  %2418 = vmatpush1.msra.mxu0 0.0
  %2419 = vmatprep.subr.mxu0 0.0
  %2420 = vmatpush1.msra.mxu0 0.0
  %2421 = vmatprep.subr.mxu0 0.0
  %2422 = vmatpush1.msra.mxu0 0.0
  %2423 = vmatprep.subr.mxu0 0.0
  %2424 = vmatpush1.msra.mxu0 0.0
  %2425 = vmatprep.mubr.f32.mxu0 0.0
  %2426 = vmatmul.mubr.f32.gmra.mrb[0].mxu0 %v2356
  %v2427 = vpop.f32.mrb[0].mxu0
  %v2428 = vadd.f32 %v2353, %v2427
  %v2429 = vpop.f32.mrb[0].mxu0
  %2430 = vmatprep.mubr.f32.mxu0 0.0
  %2431 = vmatmul.mubr.f32.gmra.mrb[0].mxu0 %v2359
  %v2432 = vpop.f32.mrb[0].mxu0
  %v2433 = vadd.f32 %v2353, %v2432
  %v2434 = vpop.f32.mrb[0].mxu0
  %2435 = vdwg.mxu0
  %v2436 = vadd.f32 %v2428, %v2224
  %v2437 = vadd.f32 %v2433, %v2225
  %s2438 = scalar_lea.vmem %s16, 1
  %v2439 = vld [vmem:[%s2438] sm:$0x1]
  %s2440 = scalar_lea.vmem %s17, 1
  %v2441 = vld [vmem:[%s2440] sm:$0x1]
  %v2442 = vsel %vm95, %v2436, 0.0
  %2443 = vadd.xlane.f32.xlu0 %v2442
  %v2444 = vpop.xlane.xlu0 %2443
  %v2445 = vsel %vm95, %v2437, 0.0
  %2446 = vadd.xlane.f32.xlu0 %v2445
  %v2447 = vpop.xlane.xlu0 %2446
  %v2448 = vmul.f32 %v2444, %v102
  %v2449 = vmul.f32 %v2447, %v102
  %v2450 = vsub.f32 %v2436, %v2448
  %v2451 = vsub.f32 %v2437, %v2449
  %v2452 = vmul.f32 %v2450, %v2450
  %v2453 = vmul.f32 %v2451, %v2451
  %v2454 = vsel %vm95, %v2452, 0.0
  %2455 = vadd.xlane.f32.xlu0 %v2454
  %v2456 = vpop.xlane.xlu0 %2455
  %v2457 = vsel %vm95, %v2453, 0.0
  %2458 = vadd.xlane.f32.xlu0 %v2457
  %v2459 = vpop.xlane.xlu0 %2458
  %v2460 = vmul.f32 %v2456, %v102
  %v2461 = vmul.f32 %v2459, %v102
  %v2462 = vadd.f32 %v2460, 1e-12
  %v2463 = vadd.f32 %v2461, 1e-12
  %v2464 = vrsqrt.pop %v2462
  %v2465 = vrsqrt.pop %v2463
  %v2466 = vmul.f32 %v2450, %v2464
  %v2467 = vmul.f32 %v2451, %v2465
  %v2469 = vlaneseq
  %v2470 = vshrl.u32 %v2469, 7
  %v2471 = vsub.s32 0, %v2470
  %v2472 = vrot.slane %v2439, %v2471
  %v2474 = vmul.f32 %v2466, %v2472
  %v2475 = vmul.f32 %v2467, %v2472
  %v2477 = vlaneseq
  %v2478 = vshrl.u32 %v2477, 7
  %v2479 = vsub.s32 0, %v2478
  %v2480 = vrot.slane %v2441, %v2479
  %v2482 = vadd.f32 %v2474, %v2480
  %v2483 = vadd.f32 %v2475, %v2480
  %v2484 = vld [vmem:[%s18] sm:$0xff]
  %v2485 = vld [vmem:[%s18 + $0x8] sm:$0xff]
  %v2486 = vld [vmem:[%s18 + $0x10] sm:$0xff]
  %v2487 = vld [vmem:[%s18 + $0x18] sm:$0xff]
  %v2488 = vld [vmem:[%s19] sm:$0x1]
  %v2490 = vlaneseq
  %v2491 = vshrl.u32 %v2490, 7
  %v2492 = vsub.s32 0, %v2491
  %v2493 = vrot.slane %v2488, %v2492
  %v2497 = vrot.slane %v2483, 7
  %vm2498 = vcmask 1041409
  %v2499 = vsel %vm2498, %v2497, %v2482
  %v2500 = vsel %vm95, %v2499, 0
  %2502 = vmatprep.subr.mxu0 0.0
  %2503 = vmatpush1.msra.mxu0 %v2484
  %2504 = vmatprep.subr.mxu0 0.0
  %2505 = vmatpush1.msra.mxu0 %v2485
  %2506 = vmatprep.subr.mxu0 0.0
  %2507 = vmatpush1.msra.mxu0 %v2486
  %2508 = vmatprep.subr.mxu0 0.0
  %2509 = vmatpush1.msra.mxu0 %v2487
  %2510 = vmatprep.subr.mxu0 0.0
  %2511 = vmatpush1.msra.mxu0 0.0
  %2512 = vmatprep.subr.mxu0 0.0
  %2513 = vmatpush1.msra.mxu0 0.0
  %2514 = vmatprep.subr.mxu0 0.0
  %2515 = vmatpush1.msra.mxu0 0.0
  %2516 = vmatprep.subr.mxu0 0.0
  %2517 = vmatpush1.msra.mxu0 0.0
  %2518 = vmatprep.subr.mxu0 0.0
  %2519 = vmatpush1.msra.mxu0 0.0
  %2520 = vmatprep.subr.mxu0 0.0
  %2521 = vmatpush1.msra.mxu0 0.0
  %2522 = vmatprep.subr.mxu0 0.0
  %2523 = vmatpush1.msra.mxu0 0.0
  %2524 = vmatprep.subr.mxu0 0.0
  %2525 = vmatpush1.msra.mxu0 0.0
  %2526 = vmatprep.subr.mxu0 0.0
  %2527 = vmatpush1.msra.mxu0 0.0
  %2528 = vmatprep.subr.mxu0 0.0
  %2529 = vmatpush1.msra.mxu0 0.0
  %2530 = vmatprep.subr.mxu0 0.0
  %2531 = vmatpush1.msra.mxu0 0.0
  %2532 = vmatprep.subr.mxu0 0.0
  %2533 = vmatpush1.msra.mxu0 0.0
  %2534 = vmatprep.subr.mxu0 0.0
  %2535 = vmatpush1.msra.mxu0 0.0
  %2536 = vmatprep.subr.mxu0 0.0
  %2537 = vmatpush1.msra.mxu0 0.0
  %2538 = vmatprep.subr.mxu0 0.0
  %2539 = vmatpush1.msra.mxu0 0.0
  %2540 = vmatprep.subr.mxu0 0.0
  %2541 = vmatpush1.msra.mxu0 0.0
  %2542 = vmatprep.subr.mxu0 0.0
  %2543 = vmatpush1.msra.mxu0 0.0
  %2544 = vmatprep.subr.mxu0 0.0
  %2545 = vmatpush1.msra.mxu0 0.0
  %2546 = vmatprep.subr.mxu0 0.0
  %2547 = vmatpush1.msra.mxu0 0.0
  %2548 = vmatprep.subr.mxu0 0.0
  %2549 = vmatpush1.msra.mxu0 0.0
  %2550 = vmatprep.subr.mxu0 0.0
  %2551 = vmatpush1.msra.mxu0 0.0
  %2552 = vmatprep.subr.mxu0 0.0
  %2553 = vmatpush1.msra.mxu0 0.0
  %2554 = vmatprep.subr.mxu0 0.0
  %2555 = vmatpush1.msra.mxu0 0.0
  %2556 = vmatprep.subr.mxu0 0.0
  %2557 = vmatpush1.msra.mxu0 0.0
  %2558 = vmatprep.subr.mxu0 0.0
  %2559 = vmatpush1.msra.mxu0 0.0
  %2560 = vmatprep.subr.mxu0 0.0
  %2561 = vmatpush1.msra.mxu0 0.0
  %2562 = vmatprep.subr.mxu0 0.0
  %2563 = vmatpush1.msra.mxu0 0.0
  %2564 = vmatprep.subr.mxu0 0.0
  %2565 = vmatpush1.msra.mxu0 0.0
  %2566 = vmatprep.mubr.f32.mxu0 0.0
  %2567 = vmatmul.mubr.f32.gmra.mrb[0].mxu0 %v2500
  %v2568 = vpop.f32.mrb[0].mxu0
  %v2569 = vadd.f32 %v2493, %v2568
  %v2570 = vpop.f32.mrb[0].mxu0
  %2571 = vdwg.mxu0
  %v2572 = vtanh.pop %v2569
  %v2573 = vld [vmem:[%s20] sm:$0xff]
  %v2574 = vld [vmem:[%s20 + $0x8] sm:$0xff]
  %v2575 = vld [vmem:[%s20 + $0x10] sm:$0xff]
  %v2576 = vld [vmem:[%s20 + $0x18] sm:$0xff]
  %v2577 = vld [vmem:[%s21] sm:$0x1]
  %v2579 = vlaneseq
  %v2580 = vshrl.u32 %v2579, 7
  %v2581 = vsub.s32 0, %v2580
  %v2582 = vrot.slane %v2577, %v2581
  %v2585 = vsel %vm95, %v2572, 0
  %2587 = vmatprep.subr.mxu0 0.0
  %2588 = vmatpush1.msra.mxu0 %v2573
  %2589 = vmatprep.subr.mxu0 0.0
  %2590 = vmatpush1.msra.mxu0 %v2574
  %2591 = vmatprep.subr.mxu0 0.0
  %2592 = vmatpush1.msra.mxu0 %v2575
  %2593 = vmatprep.subr.mxu0 0.0
  %2594 = vmatpush1.msra.mxu0 %v2576
  %2595 = vmatprep.subr.mxu0 0.0
  %2596 = vmatpush1.msra.mxu0 0.0
  %2597 = vmatprep.subr.mxu0 0.0
  %2598 = vmatpush1.msra.mxu0 0.0
  %2599 = vmatprep.subr.mxu0 0.0
  %2600 = vmatpush1.msra.mxu0 0.0
  %2601 = vmatprep.subr.mxu0 0.0
  %2602 = vmatpush1.msra.mxu0 0.0
  %2603 = vmatprep.subr.mxu0 0.0
  %2604 = vmatpush1.msra.mxu0 0.0
  %2605 = vmatprep.subr.mxu0 0.0
  %2606 = vmatpush1.msra.mxu0 0.0
  %2607 = vmatprep.subr.mxu0 0.0
  %2608 = vmatpush1.msra.mxu0 0.0
  %2609 = vmatprep.subr.mxu0 0.0
  %2610 = vmatpush1.msra.mxu0 0.0
  %2611 = vmatprep.subr.mxu0 0.0
  %2612 = vmatpush1.msra.mxu0 0.0
  %2613 = vmatprep.subr.mxu0 0.0
  %2614 = vmatpush1.msra.mxu0 0.0
  %2615 = vmatprep.subr.mxu0 0.0
  %2616 = vmatpush1.msra.mxu0 0.0
  %2617 = vmatprep.subr.mxu0 0.0
  %2618 = vmatpush1.msra.mxu0 0.0
  %2619 = vmatprep.subr.mxu0 0.0
  %2620 = vmatpush1.msra.mxu0 0.0
  %2621 = vmatprep.subr.mxu0 0.0
  %2622 = vmatpush1.msra.mxu0 0.0
  %2623 = vmatprep.subr.mxu0 0.0
  %2624 = vmatpush1.msra.mxu0 0.0
  %2625 = vmatprep.subr.mxu0 0.0
  %2626 = vmatpush1.msra.mxu0 0.0
  %2627 = vmatprep.subr.mxu0 0.0
  %2628 = vmatpush1.msra.mxu0 0.0
  %2629 = vmatprep.subr.mxu0 0.0
  %2630 = vmatpush1.msra.mxu0 0.0
  %2631 = vmatprep.subr.mxu0 0.0
  %2632 = vmatpush1.msra.mxu0 0.0
  %2633 = vmatprep.subr.mxu0 0.0
  %2634 = vmatpush1.msra.mxu0 0.0
  %2635 = vmatprep.subr.mxu0 0.0
  %2636 = vmatpush1.msra.mxu0 0.0
  %2637 = vmatprep.subr.mxu0 0.0
  %2638 = vmatpush1.msra.mxu0 0.0
  %2639 = vmatprep.subr.mxu0 0.0
  %2640 = vmatpush1.msra.mxu0 0.0
  %2641 = vmatprep.subr.mxu0 0.0
  %2642 = vmatpush1.msra.mxu0 0.0
  %2643 = vmatprep.subr.mxu0 0.0
  %2644 = vmatpush1.msra.mxu0 0.0
  %2645 = vmatprep.subr.mxu0 0.0
  %2646 = vmatpush1.msra.mxu0 0.0
  %2647 = vmatprep.subr.mxu0 0.0
  %2648 = vmatpush1.msra.mxu0 0.0
  %2649 = vmatprep.subr.mxu0 0.0
  %2650 = vmatpush1.msra.mxu0 0.0
  %2651 = vmatprep.mubr.f32.mxu0 0.0
  %2652 = vmatmul.mubr.f32.gmra.mrb[0].mxu0 %v2585
  %v2653 = vpop.f32.mrb[0].mxu0
  %v2654 = vadd.f32 %v2582, %v2653
  %v2655 = vpop.f32.mrb[0].mxu0
  %2656 = vdwg.mxu0
  %v2657 = vmax.f32 %v2654, 0.0
  %v2658 = vld [vmem:[%s22] sm:$0xff]
  %v2659 = vld [vmem:[%s22 + $0x8] sm:$0xff]
  %v2660 = vld [vmem:[%s22 + $0x10] sm:$0xff]
  %v2661 = vld [vmem:[%s22 + $0x18] sm:$0xff]
  %v2662 = vld [vmem:[#allocation2] sm:$0x1]
  %v2664 = vlaneseq
  %v2665 = vshrl.u32 %v2664, 7
  %v2666 = vsub.s32 0, %v2665
  %v2667 = vrot.slane %v2662, %v2666
  %v2670 = vsel %vm95, %v2657, 0
  %2672 = vmatprep.subr.mxu0 0.0
  %2673 = vmatpush1.msra.mxu0 %v2658
  %2674 = vmatprep.subr.mxu0 0.0
  %2675 = vmatpush1.msra.mxu0 %v2659
  %2676 = vmatprep.subr.mxu0 0.0
  %2677 = vmatpush1.msra.mxu0 %v2660
  %2678 = vmatprep.subr.mxu0 0.0
  %2679 = vmatpush1.msra.mxu0 %v2661
  %2680 = vmatprep.subr.mxu0 0.0
  %2681 = vmatpush1.msra.mxu0 0.0
  %2682 = vmatprep.subr.mxu0 0.0
  %2683 = vmatpush1.msra.mxu0 0.0
  %2684 = vmatprep.subr.mxu0 0.0
  %2685 = vmatpush1.msra.mxu0 0.0
  %2686 = vmatprep.subr.mxu0 0.0
  %2687 = vmatpush1.msra.mxu0 0.0
  %2688 = vmatprep.subr.mxu0 0.0
  %2689 = vmatpush1.msra.mxu0 0.0
  %2690 = vmatprep.subr.mxu0 0.0
  %2691 = vmatpush1.msra.mxu0 0.0
  %2692 = vmatprep.subr.mxu0 0.0
  %2693 = vmatpush1.msra.mxu0 0.0
  %2694 = vmatprep.subr.mxu0 0.0
  %2695 = vmatpush1.msra.mxu0 0.0
  %2696 = vmatprep.subr.mxu0 0.0
  %2697 = vmatpush1.msra.mxu0 0.0
  %2698 = vmatprep.subr.mxu0 0.0
  %2699 = vmatpush1.msra.mxu0 0.0
  %2700 = vmatprep.subr.mxu0 0.0
  %2701 = vmatpush1.msra.mxu0 0.0
  %2702 = vmatprep.subr.mxu0 0.0
  %2703 = vmatpush1.msra.mxu0 0.0
  %2704 = vmatprep.subr.mxu0 0.0
  %2705 = vmatpush1.msra.mxu0 0.0
  %2706 = vmatprep.subr.mxu0 0.0
  %2707 = vmatpush1.msra.mxu0 0.0
  %2708 = vmatprep.subr.mxu0 0.0
  %2709 = vmatpush1.msra.mxu0 0.0
  %2710 = vmatprep.subr.mxu0 0.0
  %2711 = vmatpush1.msra.mxu0 0.0
  %2712 = vmatprep.subr.mxu0 0.0
  %2713 = vmatpush1.msra.mxu0 0.0
  %2714 = vmatprep.subr.mxu0 0.0
  %2715 = vmatpush1.msra.mxu0 0.0
  %2716 = vmatprep.subr.mxu0 0.0
  %2717 = vmatpush1.msra.mxu0 0.0
  %2718 = vmatprep.subr.mxu0 0.0
  %2719 = vmatpush1.msra.mxu0 0.0
  %2720 = vmatprep.subr.mxu0 0.0
  %2721 = vmatpush1.msra.mxu0 0.0
  %2722 = vmatprep.subr.mxu0 0.0
  %2723 = vmatpush1.msra.mxu0 0.0
  %2724 = vmatprep.subr.mxu0 0.0
  %2725 = vmatpush1.msra.mxu0 0.0
  %2726 = vmatprep.subr.mxu0 0.0
  %2727 = vmatpush1.msra.mxu0 0.0
  %2728 = vmatprep.subr.mxu0 0.0
  %2729 = vmatpush1.msra.mxu0 0.0
  %2730 = vmatprep.subr.mxu0 0.0
  %2731 = vmatpush1.msra.mxu0 0.0
  %2732 = vmatprep.subr.mxu0 0.0
  %2733 = vmatpush1.msra.mxu0 0.0
  %2734 = vmatprep.subr.mxu0 0.0
  %2735 = vmatpush1.msra.mxu0 0.0
  %2736 = vmatprep.mubr.f32.mxu0 0.0
  %2737 = vmatmul.mubr.f32.gmra.mrb[0].mxu0 %v2670
  %v2738 = vpop.f32.mrb[0].mxu0
  %v2739 = vadd.f32 %v2667, %v2738
  %v2740 = vpop.f32.mrb[0].mxu0
  %2741 = vdwg.mxu0
  %vm2742 = vcmask 1024
  %2743 = vst.msk [vmem:[%s24] sm:$0x3] %vm2742, %v2739
  // Predicated region
  $region98: #{bert_sentiment_forward.1} parent=0 // pred_check
    _
  $region99: #{bert_sentiment_forward.1} parent=0 // pred_check_branch
    %2745 = sbr.rel (0) target = $region101
  $region100: #{bert_sentiment_forward.1} parent=0 // pred_region
    _
  $region101: #{bert_sentiment_forward.1} parent=0 // pred_fallthru
    _
  // Predicated region
  $region102: #{bert_sentiment_forward.1} parent=0 // pred_check
    _
  $region103: #{bert_sentiment_forward.1} parent=0 // pred_check_branch
    %2747 = sbr.rel (0) target = $region105
  $region104: #{bert_sentiment_forward.1} parent=0 // pred_region
    _
  $region105: #{bert_sentiment_forward.1} parent=0 // pred_fallthru
    _

</llo_original>
